<compile_context>
chip_gen: v5e
topology: v5e:2x2
jax: 0.10.0
libtpu: 0.0.40
codegen_flags: <defaults>
</compile_context>

<pallas_src>
import jax
import jax.numpy as jnp
import numpy as np
from jax import lax
from jax.experimental import pallas as pl
from jax.experimental.pallas import tpu as pltpu

_LANE = 128
_SUBLANE = 8
# PyTorch LSTM block order is [i, f, g, o]; we reorder columns to [i, f, o, g]
# so the three sigmoid gates are contiguous (one EUP call) and g is last.
_GATE_PERM = (0, 1, 3, 2)  # packed block k <- PyTorch block _GATE_PERM[k]


def _round_up(n, m):
    return ((n + m - 1) // m) * m


# ----------------------------------------------------------------------------
# Kernel
# ----------------------------------------------------------------------------
def _blink_lstm_kernel(x_ref,
                       w_ih0_ref, w_hh0_ref, b0_ref,
                       w_ih1_ref, w_hh1_ref, b1_ref,
                       w_ih2_ref, w_hh2_ref, b2_ref,
                       w_fc_ref, b_fc_ref,
                       out_ref,
                       hbuf_ref, pg_ref):
    """3 stacked LSTM layers + Linear head on the last timestep."""
    T, Bp, Dp = x_ref.shape
    Hp = w_hh0_ref.shape[0]
    G = 4 * Hp

    def hoist_pregates(src2d, w_ih, b):
        # One big MXU matmul per layer: (T*Bp, in_pad) @ (in_pad, 4*Hp) + b.
        pg = jnp.dot(src2d.astype(w_ih.dtype), w_ih,
                     preferred_element_type=jnp.float32) + b
        pg_ref[...] = pg.reshape(T, Bp, G)

    def run_recurrence(w_hh, write_h):
        def step(t, carry):
            h, c = carry
            gates = pg_ref[t] + jnp.dot(h.astype(w_hh.dtype), w_hh,
                                        preferred_element_type=jnp.float32)
            # Gate layout is [i | f | o | g]; all slices are 128-lane aligned.
            sig = jax.nn.sigmoid(gates[:, 0:3 * Hp])      # i, f, o in one call
            i_g = sig[:, 0:Hp]
            f_g = sig[:, Hp:2 * Hp]
            o_g = sig[:, 2 * Hp:3 * Hp]
            g_g = jnp.tanh(gates[:, 3 * Hp:4 * Hp])
            c_new = f_g * c + i_g * g_g
            h_new = o_g * jnp.tanh(c_new)
            if write_h:                       # top layer skips these stores
                hbuf_ref[t] = h_new
            return (h_new, c_new)

        init = (jnp.zeros((Bp, Hp), jnp.float32),
                jnp.zeros((Bp, Hp), jnp.float32))
        h_last, _ = lax.fori_loop(0, T, step, init, unroll=True)
        return h_last

    # Layer 0: pre-gates from the raw input sequence.
    hoist_pregates(x_ref[...].reshape(T * Bp, Dp), w_ih0_ref[...], b0_ref[...])
    run_recurrence(w_hh0_ref[...], write_h=True)

    # Layer 1: pre-gates from layer-0 hiddens (computed BEFORE hbuf is reused).
    hoist_pregates(hbuf_ref[...].reshape(T * Bp, Hp),
                   w_ih1_ref[...], b1_ref[...])
    run_recurrence(w_hh1_ref[...], write_h=True)

    # Layer 2 (top): pre-gates from layer-1 hiddens; no hbuf writes needed.
    hoist_pregates(hbuf_ref[...].reshape(T * Bp, Hp),
                   w_ih2_ref[...], b2_ref[...])
    h_last = run_recurrence(w_hh2_ref[...], write_h=False)

    # Linear head on the final timestep of the top layer.
    out = (jnp.dot(h_last.astype(w_fc_ref.dtype), w_fc_ref[...],
                   preferred_element_type=jnp.float32) + b_fc_ref[...])
    out_ref[...] = out.astype(out_ref.dtype)


# ----------------------------------------------------------------------------
# Wrapper
# ----------------------------------------------------------------------------
def blink_lstm_forward(x, kp):
    """x: (B, T, input_size) float32 -> (B, num_classes) float32."""
    B, T, D = x.shape
    Hp, Dp, C = kp["Hp"], kp["Dp"], kp["C"]
    Bp = _round_up(B, _SUBLANE)

    # Time-major, zero-padded to sublane/lane-dense tiles.
    x_tm = jnp.transpose(x, (1, 0, 2)).astype(jnp.float32)      # (T, B, D)
    x_p = jnp.zeros((T, Bp, Dp), jnp.float32).at[:, :B, :D].set(x_tm)

    args = (x_p,
            kp["w_ih0"], kp["w_hh0"], kp["b0"],
            kp["w_ih1"], kp["w_hh1"], kp["b1"],
            kp["w_ih2"], kp["w_hh2"], kp["b2"],
            kp["w_fc"], kp["b_fc"])

    vmem = pl.BlockSpec(memory_space=pltpu.MemorySpace.VMEM)
    scratch = [pltpu.VMEM((T, Bp, Hp), jnp.float32),        # per-step hiddens
               pltpu.VMEM((T, Bp, 4 * Hp), jnp.float32)]    # hoisted pre-gates

    # Size the scoped VMEM limit from the T-scaling buffers (v7x has 64 MiB
    # physical / 32 MiB default scoped); keep generous headroom but cap it.
    needed = sum(int(a.size) * a.dtype.itemsize for a in args)
    needed += Bp * C * 4 + T * Bp * Hp * 4 + T * Bp * 4 * Hp * 4
    vmem_limit = int(min(max(2 * needed + (4 << 20), 16 << 20), 64 << 20))

    out_p = pl.pallas_call(
        _blink_lstm_kernel,
        out_shape=jax.ShapeDtypeStruct((Bp, C), jnp.float32),
        in_specs=[vmem] * len(args),
        out_specs=vmem,
        scratch_shapes=scratch,
        compiler_params=pltpu.CompilerParams(vmem_limit_bytes=vmem_limit),
    )(*args)
    return out_p[:B]
    # TODO(synk): for production batch sizes on v7x, add a batch grid with
    # dimension_semantics=("parallel",) so both TensorCores are used.


# ----------------------------------------------------------------------------
# Parameters (PyTorch layout) + packing into the kernel's padded layout
# ----------------------------------------------------------------------------
def init_torch_params(key, input_size=4, hidden_size=64, num_layers=3,
                      num_classes=2):
    """nn.LSTM / nn.Linear shaped params, U(-1/sqrt(H), 1/sqrt(H)) init."""
    k = float(1.0 / np.sqrt(hidden_size))
    keys = jax.random.split(key, 4 * num_layers + 2)
    p, idx = {}, 0
    for l in range(num_layers):
        in_dim = input_size if l == 0 else hidden_size
        p[f"w_ih_l{l}"] = jax.random.uniform(
            keys[idx], (4 * hidden_size, in_dim), jnp.float32, -k, k); idx += 1
        p[f"w_hh_l{l}"] = jax.random.uniform(
            keys[idx], (4 * hidden_size, hidden_size), jnp.float32, -k, k); idx += 1
        p[f"b_ih_l{l}"] = jax.random.uniform(
            keys[idx], (4 * hidden_size,), jnp.float32, -k, k); idx += 1
        p[f"b_hh_l{l}"] = jax.random.uniform(
            keys[idx], (4 * hidden_size,), jnp.float32, -k, k); idx += 1
    p["fc_w"] = jax.random.uniform(
        keys[idx], (num_classes, hidden_size), jnp.float32, -k, k); idx += 1
    p["fc_b"] = jax.random.uniform(
        keys[idx], (num_classes,), jnp.float32, -k, k)
    return p


def prepare_pallas_params(tp, *, input_size, hidden_size, num_layers,
                          num_classes, weights_dtype=jnp.float32):
    """Reorder gates to [i,f,o,g], pre-transpose, pre-sum biases, zero-pad
    hidden to 128 lanes and input to 128 lanes. Semantics are preserved:
    padded gate columns see zero pre-activations, so padded h/c lanes stay 0.
    Set weights_dtype=jnp.bfloat16 on v6e/v7x (f32 accumulation kept)."""
    H = hidden_size
    Hp = _round_up(H, _LANE)
    Dp = _round_up(input_size, _LANE)
    kp = {"H": H, "Hp": Hp, "Dp": Dp, "C": num_classes}

    def pack_w(w, in_dim, in_pad):
        w = np.asarray(w, np.float32)                    # (4H, in_dim)
        out = np.zeros((in_pad, 4 * Hp), np.float32)
        for k, src in enumerate(_GATE_PERM):
            out[:in_dim, k * Hp:k * Hp + H] = w[src * H:(src + 1) * H, :].T
        return jnp.asarray(out, weights_dtype)

    def pack_b(b_ih, b_hh):
        b = np.asarray(b_ih, np.float32) + np.asarray(b_hh, np.float32)
        out = np.zeros((1, 4 * Hp), np.float32)
        for k, src in enumerate(_GATE_PERM):
            out[0, k * Hp:k * Hp + H] = b[src * H:(src + 1) * H]
        return jnp.asarray(out)                          # bias stays f32

    for l in range(num_layers):
        in_dim = input_size if l == 0 else H
        in_pad = Dp if l == 0 else Hp
        kp[f"w_ih{l}"] = pack_w(tp[f"w_ih_l{l}"], in_dim, in_pad)
        kp[f"w_hh{l}"] = pack_w(tp[f"w_hh_l{l}"], H, Hp)
        kp[f"b{l}"] = pack_b(tp[f"b_ih_l{l}"], tp[f"b_hh_l{l}"])

    w_fc_p = np.zeros((Hp, num_classes), np.float32)
    w_fc_p[:H, :] = np.asarray(tp["fc_w"], np.float32).T
    kp["w_fc"] = jnp.asarray(w_fc_p, weights_dtype)
    kp["b_fc"] = jnp.asarray(
        np.asarray(tp["fc_b"], np.float32).reshape(1, num_classes))
    return kp


# ----------------------------------------------------------------------------
# Pure-JAX reference of the PyTorch forward (independent of kernel packing)
# ----------------------------------------------------------------------------
def reference_forward(x, tp, *, hidden_size=64, num_layers=3):
    B, T, _ = x.shape
    H = hidden_size
    seq = x.astype(jnp.float32)
    for l in range(num_layers):
        w_ih = tp[f"w_ih_l{l}"].T
        w_hh = tp[f"w_hh_l{l}"].T
        b = (tp[f"b_ih_l{l}"] + tp[f"b_hh_l{l}"]).reshape(1, -1)
        h = jnp.zeros((B, H), jnp.float32)
        c = jnp.zeros((B, H), jnp.float32)
        outs = []
        for t in range(T):
            gates = seq[:, t, :] @ w_ih + h @ w_hh + b
            i = jax.nn.sigmoid(gates[:, 0 * H:1 * H])
            f = jax.nn.sigmoid(gates[:, 1 * H:2 * H])
            g = jnp.tanh(gates[:, 2 * H:3 * H])
            o = jax.nn.sigmoid(gates[:, 3 * H:4 * H])
            c = f * c + i * g
            h = o * jnp.tanh(c)
            outs.append(h)
        seq = jnp.stack(outs, axis=1)
    return seq[:, -1, :] @ tp["fc_w"].T + tp["fc_b"].reshape(1, -1)


if __name__ == "__main__":
    key = jax.random.PRNGKey(0)
    k_param, k_x = jax.random.split(key)

    B, T, D, H, C = 2, 8, 4, 64, 2          # module defaults, small shapes
    torch_params = init_torch_params(k_param, input_size=D, hidden_size=H,
                                     num_layers=3, num_classes=C)
    # Use weights_dtype=jnp.bfloat16 on v6e/v7x for MXU-native weights.
    kp = prepare_pallas_params(torch_params, input_size=D, hidden_size=H,
                               num_layers=3, num_classes=C,
                               weights_dtype=jnp.float32)
    x = jax.random.normal(k_x, (B, T, D), jnp.float32)

    out = jax.block_until_ready(blink_lstm_forward(x, kp))
    ref = jax.block_until_ready(reference_forward(x, torch_params,
                                                  hidden_size=H, num_layers=3))

    assert out.shape == (B, C)
    np.testing.assert_allclose(np.asarray(out), np.asarray(ref),
                               rtol=1e-4, atol=1e-5)
    print("KERNEL_OK")
</pallas_src>

<mosaic_0001>
module attributes {stable_mosaic.version = 11 : i64} {
  func.func @_blink_lstm_kernel(%arg0: memref<8x8x128xf32, #tpu.memory_space<vmem>>, %arg1: memref<128x512xf32, #tpu.memory_space<vmem>>, %arg2: memref<128x512xf32, #tpu.memory_space<vmem>>, %arg3: memref<1x512xf32, #tpu.memory_space<vmem>>, %arg4: memref<128x512xf32, #tpu.memory_space<vmem>>, %arg5: memref<128x512xf32, #tpu.memory_space<vmem>>, %arg6: memref<1x512xf32, #tpu.memory_space<vmem>>, %arg7: memref<128x512xf32, #tpu.memory_space<vmem>>, %arg8: memref<128x512xf32, #tpu.memory_space<vmem>>, %arg9: memref<1x512xf32, #tpu.memory_space<vmem>>, %arg10: memref<128x2xf32, #tpu.memory_space<vmem>>, %arg11: memref<1x2xf32, #tpu.memory_space<vmem>>, %arg12: memref<8x2xf32, #tpu.memory_space<vmem>>, %arg13: memref<8x8x128xf32, #tpu.memory_space<vmem>>, %arg14: memref<8x8x512xf32, #tpu.memory_space<vmem>>) attributes {dimension_semantics = [], scalar_prefetch = 0 : i64, scratch_operands = 2 : i64, tpu.core_type = #tpu.core_type<tc>} {
    %c0 = arith.constant 0 : index
    %c0_0 = arith.constant 0 : index
    %c0_1 = arith.constant 0 : index
    %0 = vector.load %arg0[%c0, %c0_0, %c0_1] : memref<8x8x128xf32, #tpu.memory_space<vmem>>, vector<8x8x128xf32>
    %1 = vector.shape_cast %0 : vector<8x8x128xf32> to vector<64x128xf32>
    %c0_2 = arith.constant 0 : index
    %c0_3 = arith.constant 0 : index
    %2 = vector.load %arg1[%c0_2, %c0_3] : memref<128x512xf32, #tpu.memory_space<vmem>>, vector<128x512xf32>
    %c0_4 = arith.constant 0 : index
    %c0_5 = arith.constant 0 : index
    %3 = vector.load %arg3[%c0_4, %c0_5] : memref<1x512xf32, #tpu.memory_space<vmem>>, vector<1x512xf32>
    %cst = arith.constant dense<0.000000e+00> : vector<64x512xf32>
    %4 = tpu.matmul %1, %2, %cst {dimension_numbers = #tpu.dot_dimension_numbers<[1], [0], [0], [1], [0, 0, 1, 1], [], []>} : vector<64x128xf32>, vector<128x512xf32>, vector<64x512xf32> -> vector<64x512xf32>
    %5 = vector.broadcast %3 : vector<1x512xf32> to vector<64x512xf32>
    %6 = arith.addf %4, %5 : vector<64x512xf32>
    %7 = vector.shape_cast %6 : vector<64x512xf32> to vector<8x8x512xf32>
    %c0_6 = arith.constant 0 : index
    %c0_7 = arith.constant 0 : index
    %c0_8 = arith.constant 0 : index
    %8 = vector.load %arg14[%c0_6, %c0_7, %c0_8] : memref<8x8x512xf32, #tpu.memory_space<vmem>>, vector<8x8x512xf32>
    tpu.vector_store %arg14[%c0_6, %c0_7, %c0_8], %7 {strides = array<i32>} : memref<8x8x512xf32, #tpu.memory_space<vmem>>, vector<8x8x512xf32>,
    %c0_9 = arith.constant 0 : index
    %c0_10 = arith.constant 0 : index
    %9 = vector.load %arg2[%c0_9, %c0_10] : memref<128x512xf32, #tpu.memory_space<vmem>>, vector<128x512xf32>
    %cst_11 = arith.constant 0.000000e+00 : f32
    %10 = vector.broadcast %cst_11 : f32 to vector<8x128xf32>
    %cst_12 = arith.constant 0.000000e+00 : f32
    %11 = vector.broadcast %cst_12 : f32 to vector<8x128xf32>
    %c0_i32 = arith.constant 0 : i32
    %12 = arith.index_cast %c0_i32 : i32 to index
    %c0_13 = arith.constant 0 : index
    %c0_14 = arith.constant 0 : index
    %13 = vector.load %arg14[%12, %c0_13, %c0_14] : memref<8x8x512xf32, #tpu.memory_space<vmem>>, vector<1x8x512xf32>
    %14 = vector.shape_cast %13 : vector<1x8x512xf32> to vector<8x512xf32>
    %cst_15 = arith.constant dense<0.000000e+00> : vector<8x512xf32>
    %15 = tpu.matmul %10, %9, %cst_15 {dimension_numbers = #tpu.dot_dimension_numbers<[1], [0], [0], [1], [0, 0, 1, 1], [], []>} : vector<8x128xf32>, vector<128x512xf32>, vector<8x512xf32> -> vector<8x512xf32>
    %16 = arith.addf %14, %15 : vector<8x512xf32>
    %17 = vector.extract_strided_slice %16 {offsets = [0, 0], sizes = [8, 384], strides = [1, 1]} : vector<8x512xf32> to vector<8x384xf32>
    %18 = arith.negf %17 : vector<8x384xf32>
    %19 = math.exp %18 : vector<8x384xf32>
    %cst_16 = arith.constant 1.000000e+00 : f32
    %20 = vector.broadcast %cst_16 : f32 to vector<8x384xf32>
    %21 = arith.addf %20, %19 : vector<8x384xf32>
    %22 = arith.divf %20, %21 : vector<8x384xf32>
    %23 = vector.extract_strided_slice %22 {offsets = [0, 0], sizes = [8, 128], strides = [1, 1]} : vector<8x384xf32> to vector<8x128xf32>
    %24 = vector.extract_strided_slice %22 {offsets = [0, 128], sizes = [8, 128], strides = [1, 1]} : vector<8x384xf32> to vector<8x128xf32>
    %25 = vector.extract_strided_slice %22 {offsets = [0, 256], sizes = [8, 128], strides = [1, 1]} : vector<8x384xf32> to vector<8x128xf32>
    %26 = vector.extract_strided_slice %16 {offsets = [0, 384], sizes = [8, 128], strides = [1, 1]} : vector<8x512xf32> to vector<8x128xf32>
    %27 = math.tanh %26 : vector<8x128xf32>
    %28 = arith.mulf %24, %11 : vector<8x128xf32>
    %29 = arith.mulf %23, %27 : vector<8x128xf32>
    %30 = arith.addf %28, %29 : vector<8x128xf32>
    %31 = math.tanh %30 : vector<8x128xf32>
    %32 = arith.mulf %25, %31 : vector<8x128xf32>
    %33 = arith.index_cast %c0_i32 : i32 to index
    %c0_17 = arith.constant 0 : index
    %c0_18 = arith.constant 0 : index
    %34 = vector.load %arg13[%33, %c0_17, %c0_18] : memref<8x8x128xf32, #tpu.memory_space<vmem>>, vector<1x8x128xf32>
    %35 = vector.shape_cast %34 : vector<1x8x128xf32> to vector<8x128xf32>
    %36 = vector.shape_cast %32 : vector<8x128xf32> to vector<1x8x128xf32>
    tpu.vector_store %arg13[%33, %c0_17, %c0_18], %36 {strides = array<i32>} : memref<8x8x128xf32, #tpu.memory_space<vmem>>, vector<1x8x128xf32>,
    %c1_i32 = arith.constant 1 : i32
    %37 = arith.index_cast %c1_i32 : i32 to index
    %c0_19 = arith.constant 0 : index
    %c0_20 = arith.constant 0 : index
    %38 = vector.load %arg14[%37, %c0_19, %c0_20] : memref<8x8x512xf32, #tpu.memory_space<vmem>>, vector<1x8x512xf32>
    %39 = vector.shape_cast %38 : vector<1x8x512xf32> to vector<8x512xf32>
    %cst_21 = arith.constant dense<0.000000e+00> : vector<8x512xf32>
    %40 = tpu.matmul %32, %9, %cst_21 {dimension_numbers = #tpu.dot_dimension_numbers<[1], [0], [0], [1], [0, 0, 1, 1], [], []>} : vector<8x128xf32>, vector<128x512xf32>, vector<8x512xf32> -> vector<8x512xf32>
    %41 = arith.addf %39, %40 : vector<8x512xf32>
    %42 = vector.extract_strided_slice %41 {offsets = [0, 0], sizes = [8, 384], strides = [1, 1]} : vector<8x512xf32> to vector<8x384xf32>
    %43 = arith.negf %42 : vector<8x384xf32>
    %44 = math.exp %43 : vector<8x384xf32>
    %cst_22 = arith.constant 1.000000e+00 : f32
    %45 = vector.broadcast %cst_22 : f32 to vector<8x384xf32>
    %46 = arith.addf %45, %44 : vector<8x384xf32>
    %47 = arith.divf %45, %46 : vector<8x384xf32>
    %48 = vector.extract_strided_slice %47 {offsets = [0, 0], sizes = [8, 128], strides = [1, 1]} : vector<8x384xf32> to vector<8x128xf32>
    %49 = vector.extract_strided_slice %47 {offsets = [0, 128], sizes = [8, 128], strides = [1, 1]} : vector<8x384xf32> to vector<8x128xf32>
    %50 = vector.extract_strided_slice %47 {offsets = [0, 256], sizes = [8, 128], strides = [1, 1]} : vector<8x384xf32> to vector<8x128xf32>
    %51 = vector.extract_strided_slice %41 {offsets = [0, 384], sizes = [8, 128], strides = [1, 1]} : vector<8x512xf32> to vector<8x128xf32>
    %52 = math.tanh %51 : vector<8x128xf32>
    %53 = arith.mulf %49, %30 : vector<8x128xf32>
    %54 = arith.mulf %48, %52 : vector<8x128xf32>
    %55 = arith.addf %53, %54 : vector<8x128xf32>
    %56 = math.tanh %55 : vector<8x128xf32>
    %57 = arith.mulf %50, %56 : vector<8x128xf32>
    %58 = arith.index_cast %c1_i32 : i32 to index
    %c0_23 = arith.constant 0 : index
    %c0_24 = arith.constant 0 : index
    %59 = vector.load %arg13[%58, %c0_23, %c0_24] : memref<8x8x128xf32, #tpu.memory_space<vmem>>, vector<1x8x128xf32>
    %60 = vector.shape_cast %59 : vector<1x8x128xf32> to vector<8x128xf32>
    %61 = vector.shape_cast %57 : vector<8x128xf32> to vector<1x8x128xf32>
    tpu.vector_store %arg13[%58, %c0_23, %c0_24], %61 {strides = array<i32>} : memref<8x8x128xf32, #tpu.memory_space<vmem>>, vector<1x8x128xf32>,
    %c2_i32 = arith.constant 2 : i32
    %62 = arith.index_cast %c2_i32 : i32 to index
    %c0_25 = arith.constant 0 : index
    %c0_26 = arith.constant 0 : index
    %63 = vector.load %arg14[%62, %c0_25, %c0_26] : memref<8x8x512xf32, #tpu.memory_space<vmem>>, vector<1x8x512xf32>
    %64 = vector.shape_cast %63 : vector<1x8x512xf32> to vector<8x512xf32>
    %cst_27 = arith.constant dense<0.000000e+00> : vector<8x512xf32>
    %65 = tpu.matmul %57, %9, %cst_27 {dimension_numbers = #tpu.dot_dimension_numbers<[1], [0], [0], [1], [0, 0, 1, 1], [], []>} : vector<8x128xf32>, vector<128x512xf32>, vector<8x512xf32> -> vector<8x512xf32>
    %66 = arith.addf %64, %65 : vector<8x512xf32>
    %67 = vector.extract_strided_slice %66 {offsets = [0, 0], sizes = [8, 384], strides = [1, 1]} : vector<8x512xf32> to vector<8x384xf32>
    %68 = arith.negf %67 : vector<8x384xf32>
    %69 = math.exp %68 : vector<8x384xf32>
    %cst_28 = arith.constant 1.000000e+00 : f32
    %70 = vector.broadcast %cst_28 : f32 to vector<8x384xf32>
    %71 = arith.addf %70, %69 : vector<8x384xf32>
    %72 = arith.divf %70, %71 : vector<8x384xf32>
    %73 = vector.extract_strided_slice %72 {offsets = [0, 0], sizes = [8, 128], strides = [1, 1]} : vector<8x384xf32> to vector<8x128xf32>
    %74 = vector.extract_strided_slice %72 {offsets = [0, 128], sizes = [8, 128], strides = [1, 1]} : vector<8x384xf32> to vector<8x128xf32>
    %75 = vector.extract_strided_slice %72 {offsets = [0, 256], sizes = [8, 128], strides = [1, 1]} : vector<8x384xf32> to vector<8x128xf32>
    %76 = vector.extract_strided_slice %66 {offsets = [0, 384], sizes = [8, 128], strides = [1, 1]} : vector<8x512xf32> to vector<8x128xf32>
    %77 = math.tanh %76 : vector<8x128xf32>
    %78 = arith.mulf %74, %55 : vector<8x128xf32>
    %79 = arith.mulf %73, %77 : vector<8x128xf32>
    %80 = arith.addf %78, %79 : vector<8x128xf32>
    %81 = math.tanh %80 : vector<8x128xf32>
    %82 = arith.mulf %75, %81 : vector<8x128xf32>
    %83 = arith.index_cast %c2_i32 : i32 to index
    %c0_29 = arith.constant 0 : index
    %c0_30 = arith.constant 0 : index
    %84 = vector.load %arg13[%83, %c0_29, %c0_30] : memref<8x8x128xf32, #tpu.memory_space<vmem>>, vector<1x8x128xf32>
    %85 = vector.shape_cast %84 : vector<1x8x128xf32> to vector<8x128xf32>
    %86 = vector.shape_cast %82 : vector<8x128xf32> to vector<1x8x128xf32>
    tpu.vector_store %arg13[%83, %c0_29, %c0_30], %86 {strides = array<i32>} : memref<8x8x128xf32, #tpu.memory_space<vmem>>, vector<1x8x128xf32>,
    %c3_i32 = arith.constant 3 : i32
    %87 = arith.index_cast %c3_i32 : i32 to index
    %c0_31 = arith.constant 0 : index
    %c0_32 = arith.constant 0 : index
    %88 = vector.load %arg14[%87, %c0_31, %c0_32] : memref<8x8x512xf32, #tpu.memory_space<vmem>>, vector<1x8x512xf32>
    %89 = vector.shape_cast %88 : vector<1x8x512xf32> to vector<8x512xf32>
    %cst_33 = arith.constant dense<0.000000e+00> : vector<8x512xf32>
    %90 = tpu.matmul %82, %9, %cst_33 {dimension_numbers = #tpu.dot_dimension_numbers<[1], [0], [0], [1], [0, 0, 1, 1], [], []>} : vector<8x128xf32>, vector<128x512xf32>, vector<8x512xf32> -> vector<8x512xf32>
    %91 = arith.addf %89, %90 : vector<8x512xf32>
    %92 = vector.extract_strided_slice %91 {offsets = [0, 0], sizes = [8, 384], strides = [1, 1]} : vector<8x512xf32> to vector<8x384xf32>
    %93 = arith.negf %92 : vector<8x384xf32>
    %94 = math.exp %93 : vector<8x384xf32>
    %cst_34 = arith.constant 1.000000e+00 : f32
    %95 = vector.broadcast %cst_34 : f32 to vector<8x384xf32>
    %96 = arith.addf %95, %94 : vector<8x384xf32>
    %97 = arith.divf %95, %96 : vector<8x384xf32>
    %98 = vector.extract_strided_slice %97 {offsets = [0, 0], sizes = [8, 128], strides = [1, 1]} : vector<8x384xf32> to vector<8x128xf32>
    %99 = vector.extract_strided_slice %97 {offsets = [0, 128], sizes = [8, 128], strides = [1, 1]} : vector<8x384xf32> to vector<8x128xf32>
    %100 = vector.extract_strided_slice %97 {offsets = [0, 256], sizes = [8, 128], strides = [1, 1]} : vector<8x384xf32> to vector<8x128xf32>
    %101 = vector.extract_strided_slice %91 {offsets = [0, 384], sizes = [8, 128], strides = [1, 1]} : vector<8x512xf32> to vector<8x128xf32>
    %102 = math.tanh %101 : vector<8x128xf32>
    %103 = arith.mulf %99, %80 : vector<8x128xf32>
    %104 = arith.mulf %98, %102 : vector<8x128xf32>
    %105 = arith.addf %103, %104 : vector<8x128xf32>
    %106 = math.tanh %105 : vector<8x128xf32>
    %107 = arith.mulf %100, %106 : vector<8x128xf32>
    %108 = arith.index_cast %c3_i32 : i32 to index
    %c0_35 = arith.constant 0 : index
    %c0_36 = arith.constant 0 : index
    %109 = vector.load %arg13[%108, %c0_35, %c0_36] : memref<8x8x128xf32, #tpu.memory_space<vmem>>, vector<1x8x128xf32>
    %110 = vector.shape_cast %109 : vector<1x8x128xf32> to vector<8x128xf32>
    %111 = vector.shape_cast %107 : vector<8x128xf32> to vector<1x8x128xf32>
    tpu.vector_store %arg13[%108, %c0_35, %c0_36], %111 {strides = array<i32>} : memref<8x8x128xf32, #tpu.memory_space<vmem>>, vector<1x8x128xf32>,
    %c4_i32 = arith.constant 4 : i32
    %112 = arith.index_cast %c4_i32 : i32 to index
    %c0_37 = arith.constant 0 : index
    %c0_38 = arith.constant 0 : index
    %113 = vector.load %arg14[%112, %c0_37, %c0_38] : memref<8x8x512xf32, #tpu.memory_space<vmem>>, vector<1x8x512xf32>
    %114 = vector.shape_cast %113 : vector<1x8x512xf32> to vector<8x512xf32>
    %cst_39 = arith.constant dense<0.000000e+00> : vector<8x512xf32>
    %115 = tpu.matmul %107, %9, %cst_39 {dimension_numbers = #tpu.dot_dimension_numbers<[1], [0], [0], [1], [0, 0, 1, 1], [], []>} : vector<8x128xf32>, vector<128x512xf32>, vector<8x512xf32> -> vector<8x512xf32>
    %116 = arith.addf %114, %115 : vector<8x512xf32>
    %117 = vector.extract_strided_slice %116 {offsets = [0, 0], sizes = [8, 384], strides = [1, 1]} : vector<8x512xf32> to vector<8x384xf32>
    %118 = arith.negf %117 : vector<8x384xf32>
    %119 = math.exp %118 : vector<8x384xf32>
    %cst_40 = arith.constant 1.000000e+00 : f32
    %120 = vector.broadcast %cst_40 : f32 to vector<8x384xf32>
    %121 = arith.addf %120, %119 : vector<8x384xf32>
    %122 = arith.divf %120, %121 : vector<8x384xf32>
    %123 = vector.extract_strided_slice %122 {offsets = [0, 0], sizes = [8, 128], strides = [1, 1]} : vector<8x384xf32> to vector<8x128xf32>
    %124 = vector.extract_strided_slice %122 {offsets = [0, 128], sizes = [8, 128], strides = [1, 1]} : vector<8x384xf32> to vector<8x128xf32>
    %125 = vector.extract_strided_slice %122 {offsets = [0, 256], sizes = [8, 128], strides = [1, 1]} : vector<8x384xf32> to vector<8x128xf32>
    %126 = vector.extract_strided_slice %116 {offsets = [0, 384], sizes = [8, 128], strides = [1, 1]} : vector<8x512xf32> to vector<8x128xf32>
    %127 = math.tanh %126 : vector<8x128xf32>
    %128 = arith.mulf %124, %105 : vector<8x128xf32>
    %129 = arith.mulf %123, %127 : vector<8x128xf32>
    %130 = arith.addf %128, %129 : vector<8x128xf32>
    %131 = math.tanh %130 : vector<8x128xf32>
    %132 = arith.mulf %125, %131 : vector<8x128xf32>
    %133 = arith.index_cast %c4_i32 : i32 to index
    %c0_41 = arith.constant 0 : index
    %c0_42 = arith.constant 0 : index
    %134 = vector.load %arg13[%133, %c0_41, %c0_42] : memref<8x8x128xf32, #tpu.memory_space<vmem>>, vector<1x8x128xf32>
    %135 = vector.shape_cast %134 : vector<1x8x128xf32> to vector<8x128xf32>
    %136 = vector.shape_cast %132 : vector<8x128xf32> to vector<1x8x128xf32>
    tpu.vector_store %arg13[%133, %c0_41, %c0_42], %136 {strides = array<i32>} : memref<8x8x128xf32, #tpu.memory_space<vmem>>, vector<1x8x128xf32>,
    %c5_i32 = arith.constant 5 : i32
    %137 = arith.index_cast %c5_i32 : i32 to index
    %c0_43 = arith.constant 0 : index
    %c0_44 = arith.constant 0 : index
    %138 = vector.load %arg14[%137, %c0_43, %c0_44] : memref<8x8x512xf32, #tpu.memory_space<vmem>>, vector<1x8x512xf32>
    %139 = vector.shape_cast %138 : vector<1x8x512xf32> to vector<8x512xf32>
    %cst_45 = arith.constant dense<0.000000e+00> : vector<8x512xf32>
    %140 = tpu.matmul %132, %9, %cst_45 {dimension_numbers = #tpu.dot_dimension_numbers<[1], [0], [0], [1], [0, 0, 1, 1], [], []>} : vector<8x128xf32>, vector<128x512xf32>, vector<8x512xf32> -> vector<8x512xf32>
    %141 = arith.addf %139, %140 : vector<8x512xf32>
    %142 = vector.extract_strided_slice %141 {offsets = [0, 0], sizes = [8, 384], strides = [1, 1]} : vector<8x512xf32> to vector<8x384xf32>
    %143 = arith.negf %142 : vector<8x384xf32>
    %144 = math.exp %143 : vector<8x384xf32>
    %cst_46 = arith.constant 1.000000e+00 : f32
    %145 = vector.broadcast %cst_46 : f32 to vector<8x384xf32>
    %146 = arith.addf %145, %144 : vector<8x384xf32>
    %147 = arith.divf %145, %146 : vector<8x384xf32>
    %148 = vector.extract_strided_slice %147 {offsets = [0, 0], sizes = [8, 128], strides = [1, 1]} : vector<8x384xf32> to vector<8x128xf32>
    %149 = vector.extract_strided_slice %147 {offsets = [0, 128], sizes = [8, 128], strides = [1, 1]} : vector<8x384xf32> to vector<8x128xf32>
    %150 = vector.extract_strided_slice %147 {offsets = [0, 256], sizes = [8, 128], strides = [1, 1]} : vector<8x384xf32> to vector<8x128xf32>
    %151 = vector.extract_strided_slice %141 {offsets = [0, 384], sizes = [8, 128], strides = [1, 1]} : vector<8x512xf32> to vector<8x128xf32>
    %152 = math.tanh %151 : vector<8x128xf32>
    %153 = arith.mulf %149, %130 : vector<8x128xf32>
    %154 = arith.mulf %148, %152 : vector<8x128xf32>
    %155 = arith.addf %153, %154 : vector<8x128xf32>
    %156 = math.tanh %155 : vector<8x128xf32>
    %157 = arith.mulf %150, %156 : vector<8x128xf32>
    %158 = arith.index_cast %c5_i32 : i32 to index
    %c0_47 = arith.constant 0 : index
    %c0_48 = arith.constant 0 : index
    %159 = vector.load %arg13[%158, %c0_47, %c0_48] : memref<8x8x128xf32, #tpu.memory_space<vmem>>, vector<1x8x128xf32>
    %160 = vector.shape_cast %159 : vector<1x8x128xf32> to vector<8x128xf32>
    %161 = vector.shape_cast %157 : vector<8x128xf32> to vector<1x8x128xf32>
    tpu.vector_store %arg13[%158, %c0_47, %c0_48], %161 {strides = array<i32>} : memref<8x8x128xf32, #tpu.memory_space<vmem>>, vector<1x8x128xf32>,
    %c6_i32 = arith.constant 6 : i32
    %162 = arith.index_cast %c6_i32 : i32 to index
    %c0_49 = arith.constant 0 : index
    %c0_50 = arith.constant 0 : index
    %163 = vector.load %arg14[%162, %c0_49, %c0_50] : memref<8x8x512xf32, #tpu.memory_space<vmem>>, vector<1x8x512xf32>
    %164 = vector.shape_cast %163 : vector<1x8x512xf32> to vector<8x512xf32>
    %cst_51 = arith.constant dense<0.000000e+00> : vector<8x512xf32>
    %165 = tpu.matmul %157, %9, %cst_51 {dimension_numbers = #tpu.dot_dimension_numbers<[1], [0], [0], [1], [0, 0, 1, 1], [], []>} : vector<8x128xf32>, vector<128x512xf32>, vector<8x512xf32> -> vector<8x512xf32>
    %166 = arith.addf %164, %165 : vector<8x512xf32>
    %167 = vector.extract_strided_slice %166 {offsets = [0, 0], sizes = [8, 384], strides = [1, 1]} : vector<8x512xf32> to vector<8x384xf32>
    %168 = arith.negf %167 : vector<8x384xf32>
    %169 = math.exp %168 : vector<8x384xf32>
    %cst_52 = arith.constant 1.000000e+00 : f32
    %170 = vector.broadcast %cst_52 : f32 to vector<8x384xf32>
    %171 = arith.addf %170, %169 : vector<8x384xf32>
    %172 = arith.divf %170, %171 : vector<8x384xf32>
    %173 = vector.extract_strided_slice %172 {offsets = [0, 0], sizes = [8, 128], strides = [1, 1]} : vector<8x384xf32> to vector<8x128xf32>
    %174 = vector.extract_strided_slice %172 {offsets = [0, 128], sizes = [8, 128], strides = [1, 1]} : vector<8x384xf32> to vector<8x128xf32>
    %175 = vector.extract_strided_slice %172 {offsets = [0, 256], sizes = [8, 128], strides = [1, 1]} : vector<8x384xf32> to vector<8x128xf32>
    %176 = vector.extract_strided_slice %166 {offsets = [0, 384], sizes = [8, 128], strides = [1, 1]} : vector<8x512xf32> to vector<8x128xf32>
    %177 = math.tanh %176 : vector<8x128xf32>
    %178 = arith.mulf %174, %155 : vector<8x128xf32>
    %179 = arith.mulf %173, %177 : vector<8x128xf32>
    %180 = arith.addf %178, %179 : vector<8x128xf32>
    %181 = math.tanh %180 : vector<8x128xf32>
    %182 = arith.mulf %175, %181 : vector<8x128xf32>
    %183 = arith.index_cast %c6_i32 : i32 to index
    %c0_53 = arith.constant 0 : index
    %c0_54 = arith.constant 0 : index
    %184 = vector.load %arg13[%183, %c0_53, %c0_54] : memref<8x8x128xf32, #tpu.memory_space<vmem>>, vector<1x8x128xf32>
    %185 = vector.shape_cast %184 : vector<1x8x128xf32> to vector<8x128xf32>
    %186 = vector.shape_cast %182 : vector<8x128xf32> to vector<1x8x128xf32>
    tpu.vector_store %arg13[%183, %c0_53, %c0_54], %186 {strides = array<i32>} : memref<8x8x128xf32, #tpu.memory_space<vmem>>, vector<1x8x128xf32>,
    %c7_i32 = arith.constant 7 : i32
    %187 = arith.index_cast %c7_i32 : i32 to index
    %c0_55 = arith.constant 0 : index
    %c0_56 = arith.constant 0 : index
    %188 = vector.load %arg14[%187, %c0_55, %c0_56] : memref<8x8x512xf32, #tpu.memory_space<vmem>>, vector<1x8x512xf32>
    %189 = vector.shape_cast %188 : vector<1x8x512xf32> to vector<8x512xf32>
    %cst_57 = arith.constant dense<0.000000e+00> : vector<8x512xf32>
    %190 = tpu.matmul %182, %9, %cst_57 {dimension_numbers = #tpu.dot_dimension_numbers<[1], [0], [0], [1], [0, 0, 1, 1], [], []>} : vector<8x128xf32>, vector<128x512xf32>, vector<8x512xf32> -> vector<8x512xf32>
    %191 = arith.addf %189, %190 : vector<8x512xf32>
    %192 = vector.extract_strided_slice %191 {offsets = [0, 0], sizes = [8, 384], strides = [1, 1]} : vector<8x512xf32> to vector<8x384xf32>
    %193 = arith.negf %192 : vector<8x384xf32>
    %194 = math.exp %193 : vector<8x384xf32>
    %cst_58 = arith.constant 1.000000e+00 : f32
    %195 = vector.broadcast %cst_58 : f32 to vector<8x384xf32>
    %196 = arith.addf %195, %194 : vector<8x384xf32>
    %197 = arith.divf %195, %196 : vector<8x384xf32>
    %198 = vector.extract_strided_slice %197 {offsets = [0, 0], sizes = [8, 128], strides = [1, 1]} : vector<8x384xf32> to vector<8x128xf32>
    %199 = vector.extract_strided_slice %197 {offsets = [0, 128], sizes = [8, 128], strides = [1, 1]} : vector<8x384xf32> to vector<8x128xf32>
    %200 = vector.extract_strided_slice %197 {offsets = [0, 256], sizes = [8, 128], strides = [1, 1]} : vector<8x384xf32> to vector<8x128xf32>
    %201 = vector.extract_strided_slice %191 {offsets = [0, 384], sizes = [8, 128], strides = [1, 1]} : vector<8x512xf32> to vector<8x128xf32>
    %202 = math.tanh %201 : vector<8x128xf32>
    %203 = arith.mulf %199, %180 : vector<8x128xf32>
    %204 = arith.mulf %198, %202 : vector<8x128xf32>
    %205 = arith.addf %203, %204 : vector<8x128xf32>
    %206 = math.tanh %205 : vector<8x128xf32>
    %207 = arith.mulf %200, %206 : vector<8x128xf32>
    %208 = arith.index_cast %c7_i32 : i32 to index
    %c0_59 = arith.constant 0 : index
    %c0_60 = arith.constant 0 : index
    %209 = vector.load %arg13[%208, %c0_59, %c0_60] : memref<8x8x128xf32, #tpu.memory_space<vmem>>, vector<1x8x128xf32>
    %210 = vector.shape_cast %209 : vector<1x8x128xf32> to vector<8x128xf32>
    %211 = vector.shape_cast %207 : vector<8x128xf32> to vector<1x8x128xf32>
    tpu.vector_store %arg13[%208, %c0_59, %c0_60], %211 {strides = array<i32>} : memref<8x8x128xf32, #tpu.memory_space<vmem>>, vector<1x8x128xf32>,
    %c8_i32 = arith.constant 8 : i32
    %c0_61 = arith.constant 0 : index
    %c0_62 = arith.constant 0 : index
    %c0_63 = arith.constant 0 : index
    %212 = vector.load %arg13[%c0_61, %c0_62, %c0_63] : memref<8x8x128xf32, #tpu.memory_space<vmem>>, vector<8x8x128xf32>
    %213 = vector.shape_cast %212 : vector<8x8x128xf32> to vector<64x128xf32>
    %c0_64 = arith.constant 0 : index
    %c0_65 = arith.constant 0 : index
    %214 = vector.load %arg4[%c0_64, %c0_65] : memref<128x512xf32, #tpu.memory_space<vmem>>, vector<128x512xf32>
    %c0_66 = arith.constant 0 : index
    %c0_67 = arith.constant 0 : index
    %215 = vector.load %arg6[%c0_66, %c0_67] : memref<1x512xf32, #tpu.memory_space<vmem>>, vector<1x512xf32>
    %cst_68 = arith.constant dense<0.000000e+00> : vector<64x512xf32>
    %216 = tpu.matmul %213, %214, %cst_68 {dimension_numbers = #tpu.dot_dimension_numbers<[1], [0], [0], [1], [0, 0, 1, 1], [], []>} : vector<64x128xf32>, vector<128x512xf32>, vector<64x512xf32> -> vector<64x512xf32>
    %217 = vector.broadcast %215 : vector<1x512xf32> to vector<64x512xf32>
    %218 = arith.addf %216, %217 : vector<64x512xf32>
    %219 = vector.shape_cast %218 : vector<64x512xf32> to vector<8x8x512xf32>
    %c0_69 = arith.constant 0 : index
    %c0_70 = arith.constant 0 : index
    %c0_71 = arith.constant 0 : index
    %220 = vector.load %arg14[%c0_69, %c0_70, %c0_71] : memref<8x8x512xf32, #tpu.memory_space<vmem>>, vector<8x8x512xf32>
    tpu.vector_store %arg14[%c0_69, %c0_70, %c0_71], %219 {strides = array<i32>} : memref<8x8x512xf32, #tpu.memory_space<vmem>>, vector<8x8x512xf32>,
    %c0_72 = arith.constant 0 : index
    %c0_73 = arith.constant 0 : index
    %221 = vector.load %arg5[%c0_72, %c0_73] : memref<128x512xf32, #tpu.memory_space<vmem>>, vector<128x512xf32>
    %cst_74 = arith.constant 0.000000e+00 : f32
    %222 = vector.broadcast %cst_74 : f32 to vector<8x128xf32>
    %cst_75 = arith.constant 0.000000e+00 : f32
    %223 = vector.broadcast %cst_75 : f32 to vector<8x128xf32>
    %c0_i32_76 = arith.constant 0 : i32
    %224 = arith.index_cast %c0_i32_76 : i32 to index
    %c0_77 = arith.constant 0 : index
    %c0_78 = arith.constant 0 : index
    %225 = vector.load %arg14[%224, %c0_77, %c0_78] : memref<8x8x512xf32, #tpu.memory_space<vmem>>, vector<1x8x512xf32>
    %226 = vector.shape_cast %225 : vector<1x8x512xf32> to vector<8x512xf32>
    %cst_79 = arith.constant dense<0.000000e+00> : vector<8x512xf32>
    %227 = tpu.matmul %222, %221, %cst_79 {dimension_numbers = #tpu.dot_dimension_numbers<[1], [0], [0], [1], [0, 0, 1, 1], [], []>} : vector<8x128xf32>, vector<128x512xf32>, vector<8x512xf32> -> vector<8x512xf32>
    %228 = arith.addf %226, %227 : vector<8x512xf32>
    %229 = vector.extract_strided_slice %228 {offsets = [0, 0], sizes = [8, 384], strides = [1, 1]} : vector<8x512xf32> to vector<8x384xf32>
    %230 = arith.negf %229 : vector<8x384xf32>
    %231 = math.exp %230 : vector<8x384xf32>
    %cst_80 = arith.constant 1.000000e+00 : f32
    %232 = vector.broadcast %cst_80 : f32 to vector<8x384xf32>
    %233 = arith.addf %232, %231 : vector<8x384xf32>
    %234 = arith.divf %232, %233 : vector<8x384xf32>
    %235 = vector.extract_strided_slice %234 {offsets = [0, 0], sizes = [8, 128], strides = [1, 1]} : vector<8x384xf32> to vector<8x128xf32>
    %236 = vector.extract_strided_slice %234 {offsets = [0, 128], sizes = [8, 128], strides = [1, 1]} : vector<8x384xf32> to vector<8x128xf32>
    %237 = vector.extract_strided_slice %234 {offsets = [0, 256], sizes = [8, 128], strides = [1, 1]} : vector<8x384xf32> to vector<8x128xf32>
    %238 = vector.extract_strided_slice %228 {offsets = [0, 384], sizes = [8, 128], strides = [1, 1]} : vector<8x512xf32> to vector<8x128xf32>
    %239 = math.tanh %238 : vector<8x128xf32>
    %240 = arith.mulf %236, %223 : vector<8x128xf32>
    %241 = arith.mulf %235, %239 : vector<8x128xf32>
    %242 = arith.addf %240, %241 : vector<8x128xf32>
    %243 = math.tanh %242 : vector<8x128xf32>
    %244 = arith.mulf %237, %243 : vector<8x128xf32>
    %245 = arith.index_cast %c0_i32_76 : i32 to index
    %c0_81 = arith.constant 0 : index
    %c0_82 = arith.constant 0 : index
    %246 = vector.load %arg13[%245, %c0_81, %c0_82] : memref<8x8x128xf32, #tpu.memory_space<vmem>>, vector<1x8x128xf32>
    %247 = vector.shape_cast %246 : vector<1x8x128xf32> to vector<8x128xf32>
    %248 = vector.shape_cast %244 : vector<8x128xf32> to vector<1x8x128xf32>
    tpu.vector_store %arg13[%245, %c0_81, %c0_82], %248 {strides = array<i32>} : memref<8x8x128xf32, #tpu.memory_space<vmem>>, vector<1x8x128xf32>,
    %c1_i32_83 = arith.constant 1 : i32
    %249 = arith.index_cast %c1_i32_83 : i32 to index
    %c0_84 = arith.constant 0 : index
    %c0_85 = arith.constant 0 : index
    %250 = vector.load %arg14[%249, %c0_84, %c0_85] : memref<8x8x512xf32, #tpu.memory_space<vmem>>, vector<1x8x512xf32>
    %251 = vector.shape_cast %250 : vector<1x8x512xf32> to vector<8x512xf32>
    %cst_86 = arith.constant dense<0.000000e+00> : vector<8x512xf32>
    %252 = tpu.matmul %244, %221, %cst_86 {dimension_numbers = #tpu.dot_dimension_numbers<[1], [0], [0], [1], [0, 0, 1, 1], [], []>} : vector<8x128xf32>, vector<128x512xf32>, vector<8x512xf32> -> vector<8x512xf32>
    %253 = arith.addf %251, %252 : vector<8x512xf32>
    %254 = vector.extract_strided_slice %253 {offsets = [0, 0], sizes = [8, 384], strides = [1, 1]} : vector<8x512xf32> to vector<8x384xf32>
    %255 = arith.negf %254 : vector<8x384xf32>
    %256 = math.exp %255 : vector<8x384xf32>
    %cst_87 = arith.constant 1.000000e+00 : f32
    %257 = vector.broadcast %cst_87 : f32 to vector<8x384xf32>
    %258 = arith.addf %257, %256 : vector<8x384xf32>
    %259 = arith.divf %257, %258 : vector<8x384xf32>
    %260 = vector.extract_strided_slice %259 {offsets = [0, 0], sizes = [8, 128], strides = [1, 1]} : vector<8x384xf32> to vector<8x128xf32>
    %261 = vector.extract_strided_slice %259 {offsets = [0, 128], sizes = [8, 128], strides = [1, 1]} : vector<8x384xf32> to vector<8x128xf32>
    %262 = vector.extract_strided_slice %259 {offsets = [0, 256], sizes = [8, 128], strides = [1, 1]} : vector<8x384xf32> to vector<8x128xf32>
    %263 = vector.extract_strided_slice %253 {offsets = [0, 384], sizes = [8, 128], strides = [1, 1]} : vector<8x512xf32> to vector<8x128xf32>
    %264 = math.tanh %263 : vector<8x128xf32>
    %265 = arith.mulf %261, %242 : vector<8x128xf32>
    %266 = arith.mulf %260, %264 : vector<8x128xf32>
    %267 = arith.addf %265, %266 : vector<8x128xf32>
    %268 = math.tanh %267 : vector<8x128xf32>
    %269 = arith.mulf %262, %268 : vector<8x128xf32>
    %270 = arith.index_cast %c1_i32_83 : i32 to index
    %c0_88 = arith.constant 0 : index
    %c0_89 = arith.constant 0 : index
    %271 = vector.load %arg13[%270, %c0_88, %c0_89] : memref<8x8x128xf32, #tpu.memory_space<vmem>>, vector<1x8x128xf32>
    %272 = vector.shape_cast %271 : vector<1x8x128xf32> to vector<8x128xf32>
    %273 = vector.shape_cast %269 : vector<8x128xf32> to vector<1x8x128xf32>
    tpu.vector_store %arg13[%270, %c0_88, %c0_89], %273 {strides = array<i32>} : memref<8x8x128xf32, #tpu.memory_space<vmem>>, vector<1x8x128xf32>,
    %c2_i32_90 = arith.constant 2 : i32
    %274 = arith.index_cast %c2_i32_90 : i32 to index
    %c0_91 = arith.constant 0 : index
    %c0_92 = arith.constant 0 : index
    %275 = vector.load %arg14[%274, %c0_91, %c0_92] : memref<8x8x512xf32, #tpu.memory_space<vmem>>, vector<1x8x512xf32>
    %276 = vector.shape_cast %275 : vector<1x8x512xf32> to vector<8x512xf32>
    %cst_93 = arith.constant dense<0.000000e+00> : vector<8x512xf32>
    %277 = tpu.matmul %269, %221, %cst_93 {dimension_numbers = #tpu.dot_dimension_numbers<[1], [0], [0], [1], [0, 0, 1, 1], [], []>} : vector<8x128xf32>, vector<128x512xf32>, vector<8x512xf32> -> vector<8x512xf32>
    %278 = arith.addf %276, %277 : vector<8x512xf32>
    %279 = vector.extract_strided_slice %278 {offsets = [0, 0], sizes = [8, 384], strides = [1, 1]} : vector<8x512xf32> to vector<8x384xf32>
    %280 = arith.negf %279 : vector<8x384xf32>
    %281 = math.exp %280 : vector<8x384xf32>
    %cst_94 = arith.constant 1.000000e+00 : f32
    %282 = vector.broadcast %cst_94 : f32 to vector<8x384xf32>
    %283 = arith.addf %282, %281 : vector<8x384xf32>
    %284 = arith.divf %282, %283 : vector<8x384xf32>
    %285 = vector.extract_strided_slice %284 {offsets = [0, 0], sizes = [8, 128], strides = [1, 1]} : vector<8x384xf32> to vector<8x128xf32>
    %286 = vector.extract_strided_slice %284 {offsets = [0, 128], sizes = [8, 128], strides = [1, 1]} : vector<8x384xf32> to vector<8x128xf32>
    %287 = vector.extract_strided_slice %284 {offsets = [0, 256], sizes = [8, 128], strides = [1, 1]} : vector<8x384xf32> to vector<8x128xf32>
    %288 = vector.extract_strided_slice %278 {offsets = [0, 384], sizes = [8, 128], strides = [1, 1]} : vector<8x512xf32> to vector<8x128xf32>
    %289 = math.tanh %288 : vector<8x128xf32>
    %290 = arith.mulf %286, %267 : vector<8x128xf32>
    %291 = arith.mulf %285, %289 : vector<8x128xf32>
    %292 = arith.addf %290, %291 : vector<8x128xf32>
    %293 = math.tanh %292 : vector<8x128xf32>
    %294 = arith.mulf %287, %293 : vector<8x128xf32>
    %295 = arith.index_cast %c2_i32_90 : i32 to index
    %c0_95 = arith.constant 0 : index
    %c0_96 = arith.constant 0 : index
    %296 = vector.load %arg13[%295, %c0_95, %c0_96] : memref<8x8x128xf32, #tpu.memory_space<vmem>>, vector<1x8x128xf32>
    %297 = vector.shape_cast %296 : vector<1x8x128xf32> to vector<8x128xf32>
    %298 = vector.shape_cast %294 : vector<8x128xf32> to vector<1x8x128xf32>
    tpu.vector_store %arg13[%295, %c0_95, %c0_96], %298 {strides = array<i32>} : memref<8x8x128xf32, #tpu.memory_space<vmem>>, vector<1x8x128xf32>,
    %c3_i32_97 = arith.constant 3 : i32
    %299 = arith.index_cast %c3_i32_97 : i32 to index
    %c0_98 = arith.constant 0 : index
    %c0_99 = arith.constant 0 : index
    %300 = vector.load %arg14[%299, %c0_98, %c0_99] : memref<8x8x512xf32, #tpu.memory_space<vmem>>, vector<1x8x512xf32>
    %301 = vector.shape_cast %300 : vector<1x8x512xf32> to vector<8x512xf32>
    %cst_100 = arith.constant dense<0.000000e+00> : vector<8x512xf32>
    %302 = tpu.matmul %294, %221, %cst_100 {dimension_numbers = #tpu.dot_dimension_numbers<[1], [0], [0], [1], [0, 0, 1, 1], [], []>} : vector<8x128xf32>, vector<128x512xf32>, vector<8x512xf32> -> vector<8x512xf32>
    %303 = arith.addf %301, %302 : vector<8x512xf32>
    %304 = vector.extract_strided_slice %303 {offsets = [0, 0], sizes = [8, 384], strides = [1, 1]} : vector<8x512xf32> to vector<8x384xf32>
    %305 = arith.negf %304 : vector<8x384xf32>
    %306 = math.exp %305 : vector<8x384xf32>
    %cst_101 = arith.constant 1.000000e+00 : f32
    %307 = vector.broadcast %cst_101 : f32 to vector<8x384xf32>
    %308 = arith.addf %307, %306 : vector<8x384xf32>
    %309 = arith.divf %307, %308 : vector<8x384xf32>
    %310 = vector.extract_strided_slice %309 {offsets = [0, 0], sizes = [8, 128], strides = [1, 1]} : vector<8x384xf32> to vector<8x128xf32>
    %311 = vector.extract_strided_slice %309 {offsets = [0, 128], sizes = [8, 128], strides = [1, 1]} : vector<8x384xf32> to vector<8x128xf32>
    %312 = vector.extract_strided_slice %309 {offsets = [0, 256], sizes = [8, 128], strides = [1, 1]} : vector<8x384xf32> to vector<8x128xf32>
    %313 = vector.extract_strided_slice %303 {offsets = [0, 384], sizes = [8, 128], strides = [1, 1]} : vector<8x512xf32> to vector<8x128xf32>
    %314 = math.tanh %313 : vector<8x128xf32>
    %315 = arith.mulf %311, %292 : vector<8x128xf32>
    %316 = arith.mulf %310, %314 : vector<8x128xf32>
    %317 = arith.addf %315, %316 : vector<8x128xf32>
    %318 = math.tanh %317 : vector<8x128xf32>
    %319 = arith.mulf %312, %318 : vector<8x128xf32>
    %320 = arith.index_cast %c3_i32_97 : i32 to index
    %c0_102 = arith.constant 0 : index
    %c0_103 = arith.constant 0 : index
    %321 = vector.load %arg13[%320, %c0_102, %c0_103] : memref<8x8x128xf32, #tpu.memory_space<vmem>>, vector<1x8x128xf32>
    %322 = vector.shape_cast %321 : vector<1x8x128xf32> to vector<8x128xf32>
    %323 = vector.shape_cast %319 : vector<8x128xf32> to vector<1x8x128xf32>
    tpu.vector_store %arg13[%320, %c0_102, %c0_103], %323 {strides = array<i32>} : memref<8x8x128xf32, #tpu.memory_space<vmem>>, vector<1x8x128xf32>,
    %c4_i32_104 = arith.constant 4 : i32
    %324 = arith.index_cast %c4_i32_104 : i32 to index
    %c0_105 = arith.constant 0 : index
    %c0_106 = arith.constant 0 : index
    %325 = vector.load %arg14[%324, %c0_105, %c0_106] : memref<8x8x512xf32, #tpu.memory_space<vmem>>, vector<1x8x512xf32>
    %326 = vector.shape_cast %325 : vector<1x8x512xf32> to vector<8x512xf32>
    %cst_107 = arith.constant dense<0.000000e+00> : vector<8x512xf32>
    %327 = tpu.matmul %319, %221, %cst_107 {dimension_numbers = #tpu.dot_dimension_numbers<[1], [0], [0], [1], [0, 0, 1, 1], [], []>} : vector<8x128xf32>, vector<128x512xf32>, vector<8x512xf32> -> vector<8x512xf32>
    %328 = arith.addf %326, %327 : vector<8x512xf32>
    %329 = vector.extract_strided_slice %328 {offsets = [0, 0], sizes = [8, 384], strides = [1, 1]} : vector<8x512xf32> to vector<8x384xf32>
    %330 = arith.negf %329 : vector<8x384xf32>
    %331 = math.exp %330 : vector<8x384xf32>
    %cst_108 = arith.constant 1.000000e+00 : f32
    %332 = vector.broadcast %cst_108 : f32 to vector<8x384xf32>
    %333 = arith.addf %332, %331 : vector<8x384xf32>
    %334 = arith.divf %332, %333 : vector<8x384xf32>
    %335 = vector.extract_strided_slice %334 {offsets = [0, 0], sizes = [8, 128], strides = [1, 1]} : vector<8x384xf32> to vector<8x128xf32>
    %336 = vector.extract_strided_slice %334 {offsets = [0, 128], sizes = [8, 128], strides = [1, 1]} : vector<8x384xf32> to vector<8x128xf32>
    %337 = vector.extract_strided_slice %334 {offsets = [0, 256], sizes = [8, 128], strides = [1, 1]} : vector<8x384xf32> to vector<8x128xf32>
    %338 = vector.extract_strided_slice %328 {offsets = [0, 384], sizes = [8, 128], strides = [1, 1]} : vector<8x512xf32> to vector<8x128xf32>
    %339 = math.tanh %338 : vector<8x128xf32>
    %340 = arith.mulf %336, %317 : vector<8x128xf32>
    %341 = arith.mulf %335, %339 : vector<8x128xf32>
    %342 = arith.addf %340, %341 : vector<8x128xf32>
    %343 = math.tanh %342 : vector<8x128xf32>
    %344 = arith.mulf %337, %343 : vector<8x128xf32>
    %345 = arith.index_cast %c4_i32_104 : i32 to index
    %c0_109 = arith.constant 0 : index
    %c0_110 = arith.constant 0 : index
    %346 = vector.load %arg13[%345, %c0_109, %c0_110] : memref<8x8x128xf32, #tpu.memory_space<vmem>>, vector<1x8x128xf32>
    %347 = vector.shape_cast %346 : vector<1x8x128xf32> to vector<8x128xf32>
    %348 = vector.shape_cast %344 : vector<8x128xf32> to vector<1x8x128xf32>
    tpu.vector_store %arg13[%345, %c0_109, %c0_110], %348 {strides = array<i32>} : memref<8x8x128xf32, #tpu.memory_space<vmem>>, vector<1x8x128xf32>,
    %c5_i32_111 = arith.constant 5 : i32
    %349 = arith.index_cast %c5_i32_111 : i32 to index
    %c0_112 = arith.constant 0 : index
    %c0_113 = arith.constant 0 : index
    %350 = vector.load %arg14[%349, %c0_112, %c0_113] : memref<8x8x512xf32, #tpu.memory_space<vmem>>, vector<1x8x512xf32>
    %351 = vector.shape_cast %350 : vector<1x8x512xf32> to vector<8x512xf32>
    %cst_114 = arith.constant dense<0.000000e+00> : vector<8x512xf32>
    %352 = tpu.matmul %344, %221, %cst_114 {dimension_numbers = #tpu.dot_dimension_numbers<[1], [0], [0], [1], [0, 0, 1, 1], [], []>} : vector<8x128xf32>, vector<128x512xf32>, vector<8x512xf32> -> vector<8x512xf32>
    %353 = arith.addf %351, %352 : vector<8x512xf32>
    %354 = vector.extract_strided_slice %353 {offsets = [0, 0], sizes = [8, 384], strides = [1, 1]} : vector<8x512xf32> to vector<8x384xf32>
    %355 = arith.negf %354 : vector<8x384xf32>
    %356 = math.exp %355 : vector<8x384xf32>
    %cst_115 = arith.constant 1.000000e+00 : f32
    %357 = vector.broadcast %cst_115 : f32 to vector<8x384xf32>
    %358 = arith.addf %357, %356 : vector<8x384xf32>
    %359 = arith.divf %357, %358 : vector<8x384xf32>
    %360 = vector.extract_strided_slice %359 {offsets = [0, 0], sizes = [8, 128], strides = [1, 1]} : vector<8x384xf32> to vector<8x128xf32>
    %361 = vector.extract_strided_slice %359 {offsets = [0, 128], sizes = [8, 128], strides = [1, 1]} : vector<8x384xf32> to vector<8x128xf32>
    %362 = vector.extract_strided_slice %359 {offsets = [0, 256], sizes = [8, 128], strides = [1, 1]} : vector<8x384xf32> to vector<8x128xf32>
    %363 = vector.extract_strided_slice %353 {offsets = [0, 384], sizes = [8, 128], strides = [1, 1]} : vector<8x512xf32> to vector<8x128xf32>
    %364 = math.tanh %363 : vector<8x128xf32>
    %365 = arith.mulf %361, %342 : vector<8x128xf32>
    %366 = arith.mulf %360, %364 : vector<8x128xf32>
    %367 = arith.addf %365, %366 : vector<8x128xf32>
    %368 = math.tanh %367 : vector<8x128xf32>
    %369 = arith.mulf %362, %368 : vector<8x128xf32>
    %370 = arith.index_cast %c5_i32_111 : i32 to index
    %c0_116 = arith.constant 0 : index
    %c0_117 = arith.constant 0 : index
    %371 = vector.load %arg13[%370, %c0_116, %c0_117] : memref<8x8x128xf32, #tpu.memory_space<vmem>>, vector<1x8x128xf32>
    %372 = vector.shape_cast %371 : vector<1x8x128xf32> to vector<8x128xf32>
    %373 = vector.shape_cast %369 : vector<8x128xf32> to vector<1x8x128xf32>
    tpu.vector_store %arg13[%370, %c0_116, %c0_117], %373 {strides = array<i32>} : memref<8x8x128xf32, #tpu.memory_space<vmem>>, vector<1x8x128xf32>,
    %c6_i32_118 = arith.constant 6 : i32
    %374 = arith.index_cast %c6_i32_118 : i32 to index
    %c0_119 = arith.constant 0 : index
    %c0_120 = arith.constant 0 : index
    %375 = vector.load %arg14[%374, %c0_119, %c0_120] : memref<8x8x512xf32, #tpu.memory_space<vmem>>, vector<1x8x512xf32>
    %376 = vector.shape_cast %375 : vector<1x8x512xf32> to vector<8x512xf32>
    %cst_121 = arith.constant dense<0.000000e+00> : vector<8x512xf32>
    %377 = tpu.matmul %369, %221, %cst_121 {dimension_numbers = #tpu.dot_dimension_numbers<[1], [0], [0], [1], [0, 0, 1, 1], [], []>} : vector<8x128xf32>, vector<128x512xf32>, vector<8x512xf32> -> vector<8x512xf32>
    %378 = arith.addf %376, %377 : vector<8x512xf32>
    %379 = vector.extract_strided_slice %378 {offsets = [0, 0], sizes = [8, 384], strides = [1, 1]} : vector<8x512xf32> to vector<8x384xf32>
    %380 = arith.negf %379 : vector<8x384xf32>
    %381 = math.exp %380 : vector<8x384xf32>
    %cst_122 = arith.constant 1.000000e+00 : f32
    %382 = vector.broadcast %cst_122 : f32 to vector<8x384xf32>
    %383 = arith.addf %382, %381 : vector<8x384xf32>
    %384 = arith.divf %382, %383 : vector<8x384xf32>
    %385 = vector.extract_strided_slice %384 {offsets = [0, 0], sizes = [8, 128], strides = [1, 1]} : vector<8x384xf32> to vector<8x128xf32>
    %386 = vector.extract_strided_slice %384 {offsets = [0, 128], sizes = [8, 128], strides = [1, 1]} : vector<8x384xf32> to vector<8x128xf32>
    %387 = vector.extract_strided_slice %384 {offsets = [0, 256], sizes = [8, 128], strides = [1, 1]} : vector<8x384xf32> to vector<8x128xf32>
    %388 = vector.extract_strided_slice %378 {offsets = [0, 384], sizes = [8, 128], strides = [1, 1]} : vector<8x512xf32> to vector<8x128xf32>
    %389 = math.tanh %388 : vector<8x128xf32>
    %390 = arith.mulf %386, %367 : vector<8x128xf32>
    %391 = arith.mulf %385, %389 : vector<8x128xf32>
    %392 = arith.addf %390, %391 : vector<8x128xf32>
    %393 = math.tanh %392 : vector<8x128xf32>
    %394 = arith.mulf %387, %393 : vector<8x128xf32>
    %395 = arith.index_cast %c6_i32_118 : i32 to index
    %c0_123 = arith.constant 0 : index
    %c0_124 = arith.constant 0 : index
    %396 = vector.load %arg13[%395, %c0_123, %c0_124] : memref<8x8x128xf32, #tpu.memory_space<vmem>>, vector<1x8x128xf32>
    %397 = vector.shape_cast %396 : vector<1x8x128xf32> to vector<8x128xf32>
    %398 = vector.shape_cast %394 : vector<8x128xf32> to vector<1x8x128xf32>
    tpu.vector_store %arg13[%395, %c0_123, %c0_124], %398 {strides = array<i32>} : memref<8x8x128xf32, #tpu.memory_space<vmem>>, vector<1x8x128xf32>,
    %c7_i32_125 = arith.constant 7 : i32
    %399 = arith.index_cast %c7_i32_125 : i32 to index
    %c0_126 = arith.constant 0 : index
    %c0_127 = arith.constant 0 : index
    %400 = vector.load %arg14[%399, %c0_126, %c0_127] : memref<8x8x512xf32, #tpu.memory_space<vmem>>, vector<1x8x512xf32>
    %401 = vector.shape_cast %400 : vector<1x8x512xf32> to vector<8x512xf32>
    %cst_128 = arith.constant dense<0.000000e+00> : vector<8x512xf32>
    %402 = tpu.matmul %394, %221, %cst_128 {dimension_numbers = #tpu.dot_dimension_numbers<[1], [0], [0], [1], [0, 0, 1, 1], [], []>} : vector<8x128xf32>, vector<128x512xf32>, vector<8x512xf32> -> vector<8x512xf32>
    %403 = arith.addf %401, %402 : vector<8x512xf32>
    %404 = vector.extract_strided_slice %403 {offsets = [0, 0], sizes = [8, 384], strides = [1, 1]} : vector<8x512xf32> to vector<8x384xf32>
    %405 = arith.negf %404 : vector<8x384xf32>
    %406 = math.exp %405 : vector<8x384xf32>
    %cst_129 = arith.constant 1.000000e+00 : f32
    %407 = vector.broadcast %cst_129 : f32 to vector<8x384xf32>
    %408 = arith.addf %407, %406 : vector<8x384xf32>
    %409 = arith.divf %407, %408 : vector<8x384xf32>
    %410 = vector.extract_strided_slice %409 {offsets = [0, 0], sizes = [8, 128], strides = [1, 1]} : vector<8x384xf32> to vector<8x128xf32>
    %411 = vector.extract_strided_slice %409 {offsets = [0, 128], sizes = [8, 128], strides = [1, 1]} : vector<8x384xf32> to vector<8x128xf32>
    %412 = vector.extract_strided_slice %409 {offsets = [0, 256], sizes = [8, 128], strides = [1, 1]} : vector<8x384xf32> to vector<8x128xf32>
    %413 = vector.extract_strided_slice %403 {offsets = [0, 384], sizes = [8, 128], strides = [1, 1]} : vector<8x512xf32> to vector<8x128xf32>
    %414 = math.tanh %413 : vector<8x128xf32>
    %415 = arith.mulf %411, %392 : vector<8x128xf32>
    %416 = arith.mulf %410, %414 : vector<8x128xf32>
    %417 = arith.addf %415, %416 : vector<8x128xf32>
    %418 = math.tanh %417 : vector<8x128xf32>
    %419 = arith.mulf %412, %418 : vector<8x128xf32>
    %420 = arith.index_cast %c7_i32_125 : i32 to index
    %c0_130 = arith.constant 0 : index
    %c0_131 = arith.constant 0 : index
    %421 = vector.load %arg13[%420, %c0_130, %c0_131] : memref<8x8x128xf32, #tpu.memory_space<vmem>>, vector<1x8x128xf32>
    %422 = vector.shape_cast %421 : vector<1x8x128xf32> to vector<8x128xf32>
    %423 = vector.shape_cast %419 : vector<8x128xf32> to vector<1x8x128xf32>
    tpu.vector_store %arg13[%420, %c0_130, %c0_131], %423 {strides = array<i32>} : memref<8x8x128xf32, #tpu.memory_space<vmem>>, vector<1x8x128xf32>,
    %c8_i32_132 = arith.constant 8 : i32
    %c0_133 = arith.constant 0 : index
    %c0_134 = arith.constant 0 : index
    %c0_135 = arith.constant 0 : index
    %424 = vector.load %arg13[%c0_133, %c0_134, %c0_135] : memref<8x8x128xf32, #tpu.memory_space<vmem>>, vector<8x8x128xf32>
    %425 = vector.shape_cast %424 : vector<8x8x128xf32> to vector<64x128xf32>
    %c0_136 = arith.constant 0 : index
    %c0_137 = arith.constant 0 : index
    %426 = vector.load %arg7[%c0_136, %c0_137] : memref<128x512xf32, #tpu.memory_space<vmem>>, vector<128x512xf32>
    %c0_138 = arith.constant 0 : index
    %c0_139 = arith.constant 0 : index
    %427 = vector.load %arg9[%c0_138, %c0_139] : memref<1x512xf32, #tpu.memory_space<vmem>>, vector<1x512xf32>
    %cst_140 = arith.constant dense<0.000000e+00> : vector<64x512xf32>
    %428 = tpu.matmul %425, %426, %cst_140 {dimension_numbers = #tpu.dot_dimension_numbers<[1], [0], [0], [1], [0, 0, 1, 1], [], []>} : vector<64x128xf32>, vector<128x512xf32>, vector<64x512xf32> -> vector<64x512xf32>
    %429 = vector.broadcast %427 : vector<1x512xf32> to vector<64x512xf32>
    %430 = arith.addf %428, %429 : vector<64x512xf32>
    %431 = vector.shape_cast %430 : vector<64x512xf32> to vector<8x8x512xf32>
    %c0_141 = arith.constant 0 : index
    %c0_142 = arith.constant 0 : index
    %c0_143 = arith.constant 0 : index
    %432 = vector.load %arg14[%c0_141, %c0_142, %c0_143] : memref<8x8x512xf32, #tpu.memory_space<vmem>>, vector<8x8x512xf32>
    tpu.vector_store %arg14[%c0_141, %c0_142, %c0_143], %431 {strides = array<i32>} : memref<8x8x512xf32, #tpu.memory_space<vmem>>, vector<8x8x512xf32>,
    %c0_144 = arith.constant 0 : index
    %c0_145 = arith.constant 0 : index
    %433 = vector.load %arg8[%c0_144, %c0_145] : memref<128x512xf32, #tpu.memory_space<vmem>>, vector<128x512xf32>
    %cst_146 = arith.constant 0.000000e+00 : f32
    %434 = vector.broadcast %cst_146 : f32 to vector<8x128xf32>
    %cst_147 = arith.constant 0.000000e+00 : f32
    %435 = vector.broadcast %cst_147 : f32 to vector<8x128xf32>
    %c0_i32_148 = arith.constant 0 : i32
    %436 = arith.index_cast %c0_i32_148 : i32 to index
    %c0_149 = arith.constant 0 : index
    %c0_150 = arith.constant 0 : index
    %437 = vector.load %arg14[%436, %c0_149, %c0_150] : memref<8x8x512xf32, #tpu.memory_space<vmem>>, vector<1x8x512xf32>
    %438 = vector.shape_cast %437 : vector<1x8x512xf32> to vector<8x512xf32>
    %cst_151 = arith.constant dense<0.000000e+00> : vector<8x512xf32>
    %439 = tpu.matmul %434, %433, %cst_151 {dimension_numbers = #tpu.dot_dimension_numbers<[1], [0], [0], [1], [0, 0, 1, 1], [], []>} : vector<8x128xf32>, vector<128x512xf32>, vector<8x512xf32> -> vector<8x512xf32>
    %440 = arith.addf %438, %439 : vector<8x512xf32>
    %441 = vector.extract_strided_slice %440 {offsets = [0, 0], sizes = [8, 384], strides = [1, 1]} : vector<8x512xf32> to vector<8x384xf32>
    %442 = arith.negf %441 : vector<8x384xf32>
    %443 = math.exp %442 : vector<8x384xf32>
    %cst_152 = arith.constant 1.000000e+00 : f32
    %444 = vector.broadcast %cst_152 : f32 to vector<8x384xf32>
    %445 = arith.addf %444, %443 : vector<8x384xf32>
    %446 = arith.divf %444, %445 : vector<8x384xf32>
    %447 = vector.extract_strided_slice %446 {offsets = [0, 0], sizes = [8, 128], strides = [1, 1]} : vector<8x384xf32> to vector<8x128xf32>
    %448 = vector.extract_strided_slice %446 {offsets = [0, 128], sizes = [8, 128], strides = [1, 1]} : vector<8x384xf32> to vector<8x128xf32>
    %449 = vector.extract_strided_slice %446 {offsets = [0, 256], sizes = [8, 128], strides = [1, 1]} : vector<8x384xf32> to vector<8x128xf32>
    %450 = vector.extract_strided_slice %440 {offsets = [0, 384], sizes = [8, 128], strides = [1, 1]} : vector<8x512xf32> to vector<8x128xf32>
    %451 = math.tanh %450 : vector<8x128xf32>
    %452 = arith.mulf %448, %435 : vector<8x128xf32>
    %453 = arith.mulf %447, %451 : vector<8x128xf32>
    %454 = arith.addf %452, %453 : vector<8x128xf32>
    %455 = math.tanh %454 : vector<8x128xf32>
    %456 = arith.mulf %449, %455 : vector<8x128xf32>
    %c1_i32_153 = arith.constant 1 : i32
    %457 = arith.index_cast %c1_i32_153 : i32 to index
    %c0_154 = arith.constant 0 : index
    %c0_155 = arith.constant 0 : index
    %458 = vector.load %arg14[%457, %c0_154, %c0_155] : memref<8x8x512xf32, #tpu.memory_space<vmem>>, vector<1x8x512xf32>
    %459 = vector.shape_cast %458 : vector<1x8x512xf32> to vector<8x512xf32>
    %cst_156 = arith.constant dense<0.000000e+00> : vector<8x512xf32>
    %460 = tpu.matmul %456, %433, %cst_156 {dimension_numbers = #tpu.dot_dimension_numbers<[1], [0], [0], [1], [0, 0, 1, 1], [], []>} : vector<8x128xf32>, vector<128x512xf32>, vector<8x512xf32> -> vector<8x512xf32>
    %461 = arith.addf %459, %460 : vector<8x512xf32>
    %462 = vector.extract_strided_slice %461 {offsets = [0, 0], sizes = [8, 384], strides = [1, 1]} : vector<8x512xf32> to vector<8x384xf32>
    %463 = arith.negf %462 : vector<8x384xf32>
    %464 = math.exp %463 : vector<8x384xf32>
    %cst_157 = arith.constant 1.000000e+00 : f32
    %465 = vector.broadcast %cst_157 : f32 to vector<8x384xf32>
    %466 = arith.addf %465, %464 : vector<8x384xf32>
    %467 = arith.divf %465, %466 : vector<8x384xf32>
    %468 = vector.extract_strided_slice %467 {offsets = [0, 0], sizes = [8, 128], strides = [1, 1]} : vector<8x384xf32> to vector<8x128xf32>
    %469 = vector.extract_strided_slice %467 {offsets = [0, 128], sizes = [8, 128], strides = [1, 1]} : vector<8x384xf32> to vector<8x128xf32>
    %470 = vector.extract_strided_slice %467 {offsets = [0, 256], sizes = [8, 128], strides = [1, 1]} : vector<8x384xf32> to vector<8x128xf32>
    %471 = vector.extract_strided_slice %461 {offsets = [0, 384], sizes = [8, 128], strides = [1, 1]} : vector<8x512xf32> to vector<8x128xf32>
    %472 = math.tanh %471 : vector<8x128xf32>
    %473 = arith.mulf %469, %454 : vector<8x128xf32>
    %474 = arith.mulf %468, %472 : vector<8x128xf32>
    %475 = arith.addf %473, %474 : vector<8x128xf32>
    %476 = math.tanh %475 : vector<8x128xf32>
    %477 = arith.mulf %470, %476 : vector<8x128xf32>
    %c2_i32_158 = arith.constant 2 : i32
    %478 = arith.index_cast %c2_i32_158 : i32 to index
    %c0_159 = arith.constant 0 : index
    %c0_160 = arith.constant 0 : index
    %479 = vector.load %arg14[%478, %c0_159, %c0_160] : memref<8x8x512xf32, #tpu.memory_space<vmem>>, vector<1x8x512xf32>
    %480 = vector.shape_cast %479 : vector<1x8x512xf32> to vector<8x512xf32>
    %cst_161 = arith.constant dense<0.000000e+00> : vector<8x512xf32>
    %481 = tpu.matmul %477, %433, %cst_161 {dimension_numbers = #tpu.dot_dimension_numbers<[1], [0], [0], [1], [0, 0, 1, 1], [], []>} : vector<8x128xf32>, vector<128x512xf32>, vector<8x512xf32> -> vector<8x512xf32>
    %482 = arith.addf %480, %481 : vector<8x512xf32>
    %483 = vector.extract_strided_slice %482 {offsets = [0, 0], sizes = [8, 384], strides = [1, 1]} : vector<8x512xf32> to vector<8x384xf32>
    %484 = arith.negf %483 : vector<8x384xf32>
    %485 = math.exp %484 : vector<8x384xf32>
    %cst_162 = arith.constant 1.000000e+00 : f32
    %486 = vector.broadcast %cst_162 : f32 to vector<8x384xf32>
    %487 = arith.addf %486, %485 : vector<8x384xf32>
    %488 = arith.divf %486, %487 : vector<8x384xf32>
    %489 = vector.extract_strided_slice %488 {offsets = [0, 0], sizes = [8, 128], strides = [1, 1]} : vector<8x384xf32> to vector<8x128xf32>
    %490 = vector.extract_strided_slice %488 {offsets = [0, 128], sizes = [8, 128], strides = [1, 1]} : vector<8x384xf32> to vector<8x128xf32>
    %491 = vector.extract_strided_slice %488 {offsets = [0, 256], sizes = [8, 128], strides = [1, 1]} : vector<8x384xf32> to vector<8x128xf32>
    %492 = vector.extract_strided_slice %482 {offsets = [0, 384], sizes = [8, 128], strides = [1, 1]} : vector<8x512xf32> to vector<8x128xf32>
    %493 = math.tanh %492 : vector<8x128xf32>
    %494 = arith.mulf %490, %475 : vector<8x128xf32>
    %495 = arith.mulf %489, %493 : vector<8x128xf32>
    %496 = arith.addf %494, %495 : vector<8x128xf32>
    %497 = math.tanh %496 : vector<8x128xf32>
    %498 = arith.mulf %491, %497 : vector<8x128xf32>
    %c3_i32_163 = arith.constant 3 : i32
    %499 = arith.index_cast %c3_i32_163 : i32 to index
    %c0_164 = arith.constant 0 : index
    %c0_165 = arith.constant 0 : index
    %500 = vector.load %arg14[%499, %c0_164, %c0_165] : memref<8x8x512xf32, #tpu.memory_space<vmem>>, vector<1x8x512xf32>
    %501 = vector.shape_cast %500 : vector<1x8x512xf32> to vector<8x512xf32>
    %cst_166 = arith.constant dense<0.000000e+00> : vector<8x512xf32>
    %502 = tpu.matmul %498, %433, %cst_166 {dimension_numbers = #tpu.dot_dimension_numbers<[1], [0], [0], [1], [0, 0, 1, 1], [], []>} : vector<8x128xf32>, vector<128x512xf32>, vector<8x512xf32> -> vector<8x512xf32>
    %503 = arith.addf %501, %502 : vector<8x512xf32>
    %504 = vector.extract_strided_slice %503 {offsets = [0, 0], sizes = [8, 384], strides = [1, 1]} : vector<8x512xf32> to vector<8x384xf32>
    %505 = arith.negf %504 : vector<8x384xf32>
    %506 = math.exp %505 : vector<8x384xf32>
    %cst_167 = arith.constant 1.000000e+00 : f32
    %507 = vector.broadcast %cst_167 : f32 to vector<8x384xf32>
    %508 = arith.addf %507, %506 : vector<8x384xf32>
    %509 = arith.divf %507, %508 : vector<8x384xf32>
    %510 = vector.extract_strided_slice %509 {offsets = [0, 0], sizes = [8, 128], strides = [1, 1]} : vector<8x384xf32> to vector<8x128xf32>
    %511 = vector.extract_strided_slice %509 {offsets = [0, 128], sizes = [8, 128], strides = [1, 1]} : vector<8x384xf32> to vector<8x128xf32>
    %512 = vector.extract_strided_slice %509 {offsets = [0, 256], sizes = [8, 128], strides = [1, 1]} : vector<8x384xf32> to vector<8x128xf32>
    %513 = vector.extract_strided_slice %503 {offsets = [0, 384], sizes = [8, 128], strides = [1, 1]} : vector<8x512xf32> to vector<8x128xf32>
    %514 = math.tanh %513 : vector<8x128xf32>
    %515 = arith.mulf %511, %496 : vector<8x128xf32>
    %516 = arith.mulf %510, %514 : vector<8x128xf32>
    %517 = arith.addf %515, %516 : vector<8x128xf32>
    %518 = math.tanh %517 : vector<8x128xf32>
    %519 = arith.mulf %512, %518 : vector<8x128xf32>
    %c4_i32_168 = arith.constant 4 : i32
    %520 = arith.index_cast %c4_i32_168 : i32 to index
    %c0_169 = arith.constant 0 : index
    %c0_170 = arith.constant 0 : index
    %521 = vector.load %arg14[%520, %c0_169, %c0_170] : memref<8x8x512xf32, #tpu.memory_space<vmem>>, vector<1x8x512xf32>
    %522 = vector.shape_cast %521 : vector<1x8x512xf32> to vector<8x512xf32>
    %cst_171 = arith.constant dense<0.000000e+00> : vector<8x512xf32>
    %523 = tpu.matmul %519, %433, %cst_171 {dimension_numbers = #tpu.dot_dimension_numbers<[1], [0], [0], [1], [0, 0, 1, 1], [], []>} : vector<8x128xf32>, vector<128x512xf32>, vector<8x512xf32> -> vector<8x512xf32>
    %524 = arith.addf %522, %523 : vector<8x512xf32>
    %525 = vector.extract_strided_slice %524 {offsets = [0, 0], sizes = [8, 384], strides = [1, 1]} : vector<8x512xf32> to vector<8x384xf32>
    %526 = arith.negf %525 : vector<8x384xf32>
    %527 = math.exp %526 : vector<8x384xf32>
    %cst_172 = arith.constant 1.000000e+00 : f32
    %528 = vector.broadcast %cst_172 : f32 to vector<8x384xf32>
    %529 = arith.addf %528, %527 : vector<8x384xf32>
    %530 = arith.divf %528, %529 : vector<8x384xf32>
    %531 = vector.extract_strided_slice %530 {offsets = [0, 0], sizes = [8, 128], strides = [1, 1]} : vector<8x384xf32> to vector<8x128xf32>
    %532 = vector.extract_strided_slice %530 {offsets = [0, 128], sizes = [8, 128], strides = [1, 1]} : vector<8x384xf32> to vector<8x128xf32>
    %533 = vector.extract_strided_slice %530 {offsets = [0, 256], sizes = [8, 128], strides = [1, 1]} : vector<8x384xf32> to vector<8x128xf32>
    %534 = vector.extract_strided_slice %524 {offsets = [0, 384], sizes = [8, 128], strides = [1, 1]} : vector<8x512xf32> to vector<8x128xf32>
    %535 = math.tanh %534 : vector<8x128xf32>
    %536 = arith.mulf %532, %517 : vector<8x128xf32>
    %537 = arith.mulf %531, %535 : vector<8x128xf32>
    %538 = arith.addf %536, %537 : vector<8x128xf32>
    %539 = math.tanh %538 : vector<8x128xf32>
    %540 = arith.mulf %533, %539 : vector<8x128xf32>
    %c5_i32_173 = arith.constant 5 : i32
    %541 = arith.index_cast %c5_i32_173 : i32 to index
    %c0_174 = arith.constant 0 : index
    %c0_175 = arith.constant 0 : index
    %542 = vector.load %arg14[%541, %c0_174, %c0_175] : memref<8x8x512xf32, #tpu.memory_space<vmem>>, vector<1x8x512xf32>
    %543 = vector.shape_cast %542 : vector<1x8x512xf32> to vector<8x512xf32>
    %cst_176 = arith.constant dense<0.000000e+00> : vector<8x512xf32>
    %544 = tpu.matmul %540, %433, %cst_176 {dimension_numbers = #tpu.dot_dimension_numbers<[1], [0], [0], [1], [0, 0, 1, 1], [], []>} : vector<8x128xf32>, vector<128x512xf32>, vector<8x512xf32> -> vector<8x512xf32>
    %545 = arith.addf %543, %544 : vector<8x512xf32>
    %546 = vector.extract_strided_slice %545 {offsets = [0, 0], sizes = [8, 384], strides = [1, 1]} : vector<8x512xf32> to vector<8x384xf32>
    %547 = arith.negf %546 : vector<8x384xf32>
    %548 = math.exp %547 : vector<8x384xf32>
    %cst_177 = arith.constant 1.000000e+00 : f32
    %549 = vector.broadcast %cst_177 : f32 to vector<8x384xf32>
    %550 = arith.addf %549, %548 : vector<8x384xf32>
    %551 = arith.divf %549, %550 : vector<8x384xf32>
    %552 = vector.extract_strided_slice %551 {offsets = [0, 0], sizes = [8, 128], strides = [1, 1]} : vector<8x384xf32> to vector<8x128xf32>
    %553 = vector.extract_strided_slice %551 {offsets = [0, 128], sizes = [8, 128], strides = [1, 1]} : vector<8x384xf32> to vector<8x128xf32>
    %554 = vector.extract_strided_slice %551 {offsets = [0, 256], sizes = [8, 128], strides = [1, 1]} : vector<8x384xf32> to vector<8x128xf32>
    %555 = vector.extract_strided_slice %545 {offsets = [0, 384], sizes = [8, 128], strides = [1, 1]} : vector<8x512xf32> to vector<8x128xf32>
    %556 = math.tanh %555 : vector<8x128xf32>
    %557 = arith.mulf %553, %538 : vector<8x128xf32>
    %558 = arith.mulf %552, %556 : vector<8x128xf32>
    %559 = arith.addf %557, %558 : vector<8x128xf32>
    %560 = math.tanh %559 : vector<8x128xf32>
    %561 = arith.mulf %554, %560 : vector<8x128xf32>
    %c6_i32_178 = arith.constant 6 : i32
    %562 = arith.index_cast %c6_i32_178 : i32 to index
    %c0_179 = arith.constant 0 : index
    %c0_180 = arith.constant 0 : index
    %563 = vector.load %arg14[%562, %c0_179, %c0_180] : memref<8x8x512xf32, #tpu.memory_space<vmem>>, vector<1x8x512xf32>
    %564 = vector.shape_cast %563 : vector<1x8x512xf32> to vector<8x512xf32>
    %cst_181 = arith.constant dense<0.000000e+00> : vector<8x512xf32>
    %565 = tpu.matmul %561, %433, %cst_181 {dimension_numbers = #tpu.dot_dimension_numbers<[1], [0], [0], [1], [0, 0, 1, 1], [], []>} : vector<8x128xf32>, vector<128x512xf32>, vector<8x512xf32> -> vector<8x512xf32>
    %566 = arith.addf %564, %565 : vector<8x512xf32>
    %567 = vector.extract_strided_slice %566 {offsets = [0, 0], sizes = [8, 384], strides = [1, 1]} : vector<8x512xf32> to vector<8x384xf32>
    %568 = arith.negf %567 : vector<8x384xf32>
    %569 = math.exp %568 : vector<8x384xf32>
    %cst_182 = arith.constant 1.000000e+00 : f32
    %570 = vector.broadcast %cst_182 : f32 to vector<8x384xf32>
    %571 = arith.addf %570, %569 : vector<8x384xf32>
    %572 = arith.divf %570, %571 : vector<8x384xf32>
    %573 = vector.extract_strided_slice %572 {offsets = [0, 0], sizes = [8, 128], strides = [1, 1]} : vector<8x384xf32> to vector<8x128xf32>
    %574 = vector.extract_strided_slice %572 {offsets = [0, 128], sizes = [8, 128], strides = [1, 1]} : vector<8x384xf32> to vector<8x128xf32>
    %575 = vector.extract_strided_slice %572 {offsets = [0, 256], sizes = [8, 128], strides = [1, 1]} : vector<8x384xf32> to vector<8x128xf32>
    %576 = vector.extract_strided_slice %566 {offsets = [0, 384], sizes = [8, 128], strides = [1, 1]} : vector<8x512xf32> to vector<8x128xf32>
    %577 = math.tanh %576 : vector<8x128xf32>
    %578 = arith.mulf %574, %559 : vector<8x128xf32>
    %579 = arith.mulf %573, %577 : vector<8x128xf32>
    %580 = arith.addf %578, %579 : vector<8x128xf32>
    %581 = math.tanh %580 : vector<8x128xf32>
    %582 = arith.mulf %575, %581 : vector<8x128xf32>
    %c7_i32_183 = arith.constant 7 : i32
    %583 = arith.index_cast %c7_i32_183 : i32 to index
    %c0_184 = arith.constant 0 : index
    %c0_185 = arith.constant 0 : index
    %584 = vector.load %arg14[%583, %c0_184, %c0_185] : memref<8x8x512xf32, #tpu.memory_space<vmem>>, vector<1x8x512xf32>
    %585 = vector.shape_cast %584 : vector<1x8x512xf32> to vector<8x512xf32>
    %cst_186 = arith.constant dense<0.000000e+00> : vector<8x512xf32>
    %586 = tpu.matmul %582, %433, %cst_186 {dimension_numbers = #tpu.dot_dimension_numbers<[1], [0], [0], [1], [0, 0, 1, 1], [], []>} : vector<8x128xf32>, vector<128x512xf32>, vector<8x512xf32> -> vector<8x512xf32>
    %587 = arith.addf %585, %586 : vector<8x512xf32>
    %588 = vector.extract_strided_slice %587 {offsets = [0, 0], sizes = [8, 384], strides = [1, 1]} : vector<8x512xf32> to vector<8x384xf32>
    %589 = arith.negf %588 : vector<8x384xf32>
    %590 = math.exp %589 : vector<8x384xf32>
    %cst_187 = arith.constant 1.000000e+00 : f32
    %591 = vector.broadcast %cst_187 : f32 to vector<8x384xf32>
    %592 = arith.addf %591, %590 : vector<8x384xf32>
    %593 = arith.divf %591, %592 : vector<8x384xf32>
    %594 = vector.extract_strided_slice %593 {offsets = [0, 0], sizes = [8, 128], strides = [1, 1]} : vector<8x384xf32> to vector<8x128xf32>
    %595 = vector.extract_strided_slice %593 {offsets = [0, 128], sizes = [8, 128], strides = [1, 1]} : vector<8x384xf32> to vector<8x128xf32>
    %596 = vector.extract_strided_slice %593 {offsets = [0, 256], sizes = [8, 128], strides = [1, 1]} : vector<8x384xf32> to vector<8x128xf32>
    %597 = vector.extract_strided_slice %587 {offsets = [0, 384], sizes = [8, 128], strides = [1, 1]} : vector<8x512xf32> to vector<8x128xf32>
    %598 = math.tanh %597 : vector<8x128xf32>
    %599 = arith.mulf %595, %580 : vector<8x128xf32>
    %600 = arith.mulf %594, %598 : vector<8x128xf32>
    %601 = arith.addf %599, %600 : vector<8x128xf32>
    %602 = math.tanh %601 : vector<8x128xf32>
    %603 = arith.mulf %596, %602 : vector<8x128xf32>
    %c8_i32_188 = arith.constant 8 : i32
    %c0_189 = arith.constant 0 : index
    %c0_190 = arith.constant 0 : index
    %604 = vector.load %arg10[%c0_189, %c0_190] : memref<128x2xf32, #tpu.memory_space<vmem>>, vector<128x2xf32>
    %cst_191 = arith.constant dense<0.000000e+00> : vector<8x2xf32>
    %605 = tpu.matmul %603, %604, %cst_191 {dimension_numbers = #tpu.dot_dimension_numbers<[1], [0], [0], [1], [0, 0, 1, 1], [], []>} : vector<8x128xf32>, vector<128x2xf32>, vector<8x2xf32> -> vector<8x2xf32>
    %c0_192 = arith.constant 0 : index
    %c0_193 = arith.constant 0 : index
    %606 = vector.load %arg11[%c0_192, %c0_193] : memref<1x2xf32, #tpu.memory_space<vmem>>, vector<1x2xf32>
    %607 = vector.broadcast %606 : vector<1x2xf32> to vector<8x2xf32>
    %608 = arith.addf %605, %607 : vector<8x2xf32>
    %c0_194 = arith.constant 0 : index
    %c0_195 = arith.constant 0 : index
    %609 = vector.load %arg12[%c0_194, %c0_195] : memref<8x2xf32, #tpu.memory_space<vmem>>, vector<8x2xf32>
    tpu.vector_store %arg12[%c0_194, %c0_195], %608 {strides = array<i32>} : memref<8x2xf32, #tpu.memory_space<vmem>>, vector<8x2xf32>,
    return
  }
}

</mosaic_0001>

<llo_original>
// kernel: tpu_custom_call.1
$region0: #{tpu_custom_call.1}
  #allocation0 [shape = 'u32[]', space=smem, size = 0x4, offset = 0x4, fixed_abs, tag = 'smem constant byte address 0x4 - core index']
  #allocation1 [shape = 'u32[72,128]{1,0:T(1,128)}', space=vmem, size = 0x9000, scoped, tag = 'internal scratch']
  #allocation2 [shape = 'f32[8,8,128]{2,1,0:T(8,128)}', space=vmem, size = 0x8000, scoped, tag = 'scratch operand']
  #allocation3 [shape = 'f32[8,8,512]{2,1,0:T(8,128)}', space=vmem, size = 0x20000, scoped, tag = 'scratch operand']
  %s0 = inlined_call_operand.vmem [shape: f32[8,8,128], index: 0, kind: input, shape index: {}]
  %s1 = inlined_call_operand.hbm [shape: f32[128,512], index: 1, kind: input, shape index: {}]
  %s2 = inlined_call_operand.hbm [shape: f32[128,512], index: 2, kind: input, shape index: {}]
  %s3 = inlined_call_operand.vmem [shape: f32[1,512], index: 3, kind: input, shape index: {}]
  %s4 = inlined_call_operand.hbm [shape: f32[128,512], index: 4, kind: input, shape index: {}]
  %s5 = inlined_call_operand.hbm [shape: f32[128,512], index: 5, kind: input, shape index: {}]
  %s6 = inlined_call_operand.vmem [shape: f32[1,512], index: 6, kind: input, shape index: {}]
  %s7 = inlined_call_operand.hbm [shape: f32[128,512], index: 7, kind: input, shape index: {}]
  %s8 = inlined_call_operand.hbm [shape: f32[128,512], index: 8, kind: input, shape index: {}]
  %s9 = inlined_call_operand.vmem [shape: f32[1,512], index: 9, kind: input, shape index: {}]
  %s10 = inlined_call_operand.vmem [shape: f32[128,2], index: 10, kind: input, shape index: {}]
  %s11 = inlined_call_operand.vmem [shape: f32[1,2], index: 11, kind: input, shape index: {}]
  %s12 = inlined_call_operand.vmem [shape: f32[8,2], index: 12, kind: output, shape index: {}]
  %s13 = sld [smem:[#allocation0]]
  $region82: #{tpu_custom_call.1} parent=0
    _
  %s15 = ssub.s32 1, %s13
  %s16 = scalar_select 0, %s15, %s13
  $region1: #{tpu_custom_call.1} parent=0
    #allocation4 [shape = 'u8[262144]{0}', space=vmem, size = 0x40000, scoped, tag = 'input window, operand 1, single buffered']
    #allocation5 [shape = 's32[1]{0}', space=sflag, size = 0x4, scoped, tag = 'scoped memory for tpu_custom_call.1']
    #allocation6 [shape = 'u8[262144]{0}', space=vmem, size = 0x40000, scoped, tag = 'input window, operand 2, single buffered']
    #allocation7 [shape = 's32[1]{0}', space=sflag, size = 0x4, scoped, tag = 'scoped memory for tpu_custom_call.1']
    #allocation8 [shape = 'u8[262144]{0}', space=vmem, size = 0x40000, scoped, tag = 'input window, operand 4, single buffered']
    #allocation9 [shape = 'u8[262144]{0}', space=vmem, size = 0x40000, scoped, tag = 'input window, operand 5, single buffered']
    #allocation10 [shape = 's32[1]{0}', space=sflag, size = 0x4, scoped, tag = 'scoped memory for tpu_custom_call.1']
    #allocation11 [shape = 'u8[262144]{0}', space=vmem, size = 0x40000, scoped, tag = 'input window, operand 7, single buffered']
    #allocation12 [shape = 'u8[262144]{0}', space=vmem, size = 0x40000, scoped, tag = 'input window, operand 8, single buffered']
    #allocation13 [shape = 's32[1]{0}', space=sflag, size = 0x4, scoped, tag = 'scoped memory for tpu_custom_call.1']
    %17 = vsyncpa [#allocation5], 0
    %18 = vsyncpa [#allocation7], 0
    %19 = vsyncpa [#allocation10], 0
    %20 = vsyncpa [#allocation13], 0
    // Predicated region
    $region2: #{tpu_custom_call.1} parent=1 // pred_check
      _
    $region3: #{tpu_custom_call.1} parent=1 // pred_check_branch
      %22 = sbr.rel (0) target = $region5
    $region4: #{tpu_custom_call.1} parent=1 // pred_region
      _
    $region5: #{tpu_custom_call.1} parent=1 // pred_fallthru
      _
    // Predicated region
    $region6: #{tpu_custom_call.1} parent=1 // pred_check
      _
    $region7: #{tpu_custom_call.1} parent=1 // pred_check_branch
      %24 = sbr.rel (0) target = $region9
    $region8: #{tpu_custom_call.1} parent=1 // pred_region
      %26 = vsyncadd [#allocation5], 0
      %s27 = sshll.u32 %s1, 4
      %s28 = int_to_ptr.hbm [resolvable:$true] %s27
      %s29 = sshll.u32 [#allocation4], 4
      %s30 = int_to_ptr.vmem [resolvable:$true] %s29
      %35 = dma.hbm_to_vmem [thread:$0]  %s28, 8192, %s30, [#allocation5], 512, 512, 32
    $region9: #{tpu_custom_call.1} parent=1 // pred_fallthru
      _
    // Predicated region
    $region10: #{tpu_custom_call.1} parent=1 // pred_check
      _
    $region11: #{tpu_custom_call.1} parent=1 // pred_check_branch
      %37 = sbr.rel (0) target = $region13
    $region12: #{tpu_custom_call.1} parent=1 // pred_region
      %39 = vsyncadd [#allocation7], 0
      %s40 = sshll.u32 %s2, 4
      %s41 = int_to_ptr.hbm [resolvable:$true] %s40
      %s42 = sshll.u32 [#allocation6], 4
      %s43 = int_to_ptr.vmem [resolvable:$true] %s42
      %48 = dma.hbm_to_vmem [thread:$0]  %s41, 8192, %s43, [#allocation7], 512, 512, 32
    $region13: #{tpu_custom_call.1} parent=1 // pred_fallthru
      _
    // Predicated region
    $region14: #{tpu_custom_call.1} parent=1 // pred_check
      _
    $region15: #{tpu_custom_call.1} parent=1 // pred_check_branch
      %50 = sbr.rel (0) target = $region17
    $region16: #{tpu_custom_call.1} parent=1 // pred_region
      _
    $region17: #{tpu_custom_call.1} parent=1 // pred_fallthru
      _
    // Predicated region
    $region18: #{tpu_custom_call.1} parent=1 // pred_check
      _
    $region19: #{tpu_custom_call.1} parent=1 // pred_check_branch
      %52 = sbr.rel (0) target = $region21
    $region20: #{tpu_custom_call.1} parent=1 // pred_region
      %54 = vsyncadd [#allocation7], 0
      %s55 = sshll.u32 %s4, 4
      %s56 = int_to_ptr.hbm [resolvable:$true] %s55
      %s57 = sshll.u32 [#allocation8], 4
      %s58 = int_to_ptr.vmem [resolvable:$true] %s57
      %63 = dma.hbm_to_vmem [thread:$0]  %s56, 8192, %s58, [#allocation7], 512, 512, 32
    $region21: #{tpu_custom_call.1} parent=1 // pred_fallthru
      _
    // Predicated region
    $region22: #{tpu_custom_call.1} parent=1 // pred_check
      _
    $region23: #{tpu_custom_call.1} parent=1 // pred_check_branch
      %65 = sbr.rel (0) target = $region25
    $region24: #{tpu_custom_call.1} parent=1 // pred_region
      %67 = vsyncadd [#allocation10], 0
      %s68 = sshll.u32 %s5, 4
      %s69 = int_to_ptr.hbm [resolvable:$true] %s68
      %s70 = sshll.u32 [#allocation9], 4
      %s71 = int_to_ptr.vmem [resolvable:$true] %s70
      %76 = dma.hbm_to_vmem [thread:$0]  %s69, 8192, %s71, [#allocation10], 512, 512, 32
    $region25: #{tpu_custom_call.1} parent=1 // pred_fallthru
      _
    // Predicated region
    $region26: #{tpu_custom_call.1} parent=1 // pred_check
      _
    $region27: #{tpu_custom_call.1} parent=1 // pred_check_branch
      %78 = sbr.rel (0) target = $region29
    $region28: #{tpu_custom_call.1} parent=1 // pred_region
      _
    $region29: #{tpu_custom_call.1} parent=1 // pred_fallthru
      _
    // Predicated region
    $region30: #{tpu_custom_call.1} parent=1 // pred_check
      _
    $region31: #{tpu_custom_call.1} parent=1 // pred_check_branch
      %80 = sbr.rel (0) target = $region33
    $region32: #{tpu_custom_call.1} parent=1 // pred_region
      %82 = vsyncadd [#allocation10], 0
      %s83 = sshll.u32 %s7, 4
      %s84 = int_to_ptr.hbm [resolvable:$true] %s83
      %s85 = sshll.u32 [#allocation11], 4
      %s86 = int_to_ptr.vmem [resolvable:$true] %s85
      %91 = dma.hbm_to_vmem [thread:$0]  %s84, 8192, %s86, [#allocation10], 512, 512, 32
    $region33: #{tpu_custom_call.1} parent=1 // pred_fallthru
      _
    // Predicated region
    $region34: #{tpu_custom_call.1} parent=1 // pred_check
      _
    $region35: #{tpu_custom_call.1} parent=1 // pred_check_branch
      %93 = sbr.rel (0) target = $region37
    $region36: #{tpu_custom_call.1} parent=1 // pred_region
      %95 = vsyncadd [#allocation13], 0
      %s96 = sshll.u32 %s8, 4
      %s97 = int_to_ptr.hbm [resolvable:$true] %s96
      %s98 = sshll.u32 [#allocation12], 4
      %s99 = int_to_ptr.vmem [resolvable:$true] %s98
      %104 = dma.hbm_to_vmem [thread:$0]  %s97, 8192, %s99, [#allocation13], 512, 512, 32
    $region37: #{tpu_custom_call.1} parent=1 // pred_fallthru
      _
    // Predicated region
    $region38: #{tpu_custom_call.1} parent=1 // pred_check
      _
    $region39: #{tpu_custom_call.1} parent=1 // pred_check_branch
      %106 = sbr.rel (0) target = $region41
    $region40: #{tpu_custom_call.1} parent=1 // pred_region
      _
    $region41: #{tpu_custom_call.1} parent=1 // pred_fallthru
      _
    // Predicated region
    $region42: #{tpu_custom_call.1} parent=1 // pred_check
      _
    $region43: #{tpu_custom_call.1} parent=1 // pred_check_branch
      %108 = sbr.rel (0) target = $region45
    $region44: #{tpu_custom_call.1} parent=1 // pred_region
      _
    $region45: #{tpu_custom_call.1} parent=1 // pred_fallthru
      _
    // Predicated region
    $region46: #{tpu_custom_call.1} parent=1 // pred_check
      _
    $region47: #{tpu_custom_call.1} parent=1 // pred_check_branch
      %110 = sbr.rel (0) target = $region49
    $region48: #{tpu_custom_call.1} parent=1 // pred_region
      _
    $region49: #{tpu_custom_call.1} parent=1 // pred_fallthru
      _
    // Predicated region
    $region50: #{tpu_custom_call.1} parent=1 // pred_check
      _
    $region51: #{tpu_custom_call.1} parent=1 // pred_check_branch
      %112 = sbr.rel (0) target = $region53
    $region52: #{tpu_custom_call.1} parent=1 // pred_region
      %114 = dma.done [#allocation5], 8192
    $region53: #{tpu_custom_call.1} parent=1 // pred_fallthru
      _
    // Predicated region
    $region54: #{tpu_custom_call.1} parent=1 // pred_check
      _
    $region55: #{tpu_custom_call.1} parent=1 // pred_check_branch
      %116 = sbr.rel (0) target = $region57
    $region56: #{tpu_custom_call.1} parent=1 // pred_region
      %118 = dma.done [#allocation7], 8192
    $region57: #{tpu_custom_call.1} parent=1 // pred_fallthru
      _
    // Predicated region
    $region58: #{tpu_custom_call.1} parent=1 // pred_check
      _
    $region59: #{tpu_custom_call.1} parent=1 // pred_check_branch
      %120 = sbr.rel (0) target = $region61
    $region60: #{tpu_custom_call.1} parent=1 // pred_region
      %122 = dma.done [#allocation7], 8192
    $region61: #{tpu_custom_call.1} parent=1 // pred_fallthru
      _
    // Predicated region
    $region62: #{tpu_custom_call.1} parent=1 // pred_check
      _
    $region63: #{tpu_custom_call.1} parent=1 // pred_check_branch
      %124 = sbr.rel (0) target = $region65
    $region64: #{tpu_custom_call.1} parent=1 // pred_region
      %126 = dma.done [#allocation10], 8192
    $region65: #{tpu_custom_call.1} parent=1 // pred_fallthru
      _
    // Predicated region
    $region66: #{tpu_custom_call.1} parent=1 // pred_check
      _
    $region67: #{tpu_custom_call.1} parent=1 // pred_check_branch
      %128 = sbr.rel (0) target = $region69
    $region68: #{tpu_custom_call.1} parent=1 // pred_region
      %130 = dma.done [#allocation10], 8192
    $region69: #{tpu_custom_call.1} parent=1 // pred_fallthru
      _
    // Predicated region
    $region70: #{tpu_custom_call.1} parent=1 // pred_check
      _
    $region71: #{tpu_custom_call.1} parent=1 // pred_check_branch
      %132 = sbr.rel (0) target = $region73
    $region72: #{tpu_custom_call.1} parent=1 // pred_region
      %134 = dma.done [#allocation13], 8192
    $region73: #{tpu_custom_call.1} parent=1 // pred_fallthru
      _
    %v135 = vld [vmem:[%s0] sm:$0xff]
    %v136 = vld [vmem:[%s0 + $0x8] sm:$0xff]
    %v137 = vld [vmem:[%s0 + $0x10] sm:$0xff]
    %v138 = vld [vmem:[%s0 + $0x18] sm:$0xff]
    %v139 = vld [vmem:[%s0 + $0x20] sm:$0xff]
    %v140 = vld [vmem:[%s0 + $0x28] sm:$0xff]
    %v141 = vld [vmem:[%s0 + $0x30] sm:$0xff]
    %v142 = vld [vmem:[%s0 + $0x38] sm:$0xff]
    %v143 = vld [vmem:[#allocation4] sm:$0xff]
    %v144 = vld [vmem:[#allocation4 + $0x8] sm:$0xff]
    %v145 = vld [vmem:[#allocation4 + $0x10] sm:$0xff]
    %v146 = vld [vmem:[#allocation4 + $0x18] sm:$0xff]
    %v147 = vld [vmem:[#allocation4 + $0x20] sm:$0xff]
    %v148 = vld [vmem:[#allocation4 + $0x28] sm:$0xff]
    %v149 = vld [vmem:[#allocation4 + $0x30] sm:$0xff]
    %v150 = vld [vmem:[#allocation4 + $0x38] sm:$0xff]
    %v151 = vld [vmem:[#allocation4 + $0x40] sm:$0xff]
    %v152 = vld [vmem:[#allocation4 + $0x48] sm:$0xff]
    %v153 = vld [vmem:[#allocation4 + $0x50] sm:$0xff]
    %v154 = vld [vmem:[#allocation4 + $0x58] sm:$0xff]
    %v155 = vld [vmem:[#allocation4 + $0x60] sm:$0xff]
    %v156 = vld [vmem:[#allocation4 + $0x68] sm:$0xff]
    %v157 = vld [vmem:[#allocation4 + $0x70] sm:$0xff]
    %v158 = vld [vmem:[#allocation4 + $0x78] sm:$0xff]
    %v159 = vld [vmem:[#allocation4 + $0x80] sm:$0xff]
    %v160 = vld [vmem:[#allocation4 + $0x88] sm:$0xff]
    %v161 = vld [vmem:[#allocation4 + $0x90] sm:$0xff]
    %v162 = vld [vmem:[#allocation4 + $0x98] sm:$0xff]
    %v163 = vld [vmem:[#allocation4 + $0xa0] sm:$0xff]
    %v164 = vld [vmem:[#allocation4 + $0xa8] sm:$0xff]
    %v165 = vld [vmem:[#allocation4 + $0xb0] sm:$0xff]
    %v166 = vld [vmem:[#allocation4 + $0xb8] sm:$0xff]
    %v167 = vld [vmem:[#allocation4 + $0xc0] sm:$0xff]
    %v168 = vld [vmem:[#allocation4 + $0xc8] sm:$0xff]
    %v169 = vld [vmem:[#allocation4 + $0xd0] sm:$0xff]
    %v170 = vld [vmem:[#allocation4 + $0xd8] sm:$0xff]
    %v171 = vld [vmem:[#allocation4 + $0xe0] sm:$0xff]
    %v172 = vld [vmem:[#allocation4 + $0xe8] sm:$0xff]
    %v173 = vld [vmem:[#allocation4 + $0xf0] sm:$0xff]
    %v174 = vld [vmem:[#allocation4 + $0xf8] sm:$0xff]
    %v175 = vld [vmem:[#allocation4 + $0x100] sm:$0xff]
    %v176 = vld [vmem:[#allocation4 + $0x108] sm:$0xff]
    %v177 = vld [vmem:[#allocation4 + $0x110] sm:$0xff]
    %v178 = vld [vmem:[#allocation4 + $0x118] sm:$0xff]
    %v179 = vld [vmem:[#allocation4 + $0x120] sm:$0xff]
    %v180 = vld [vmem:[#allocation4 + $0x128] sm:$0xff]
    %v181 = vld [vmem:[#allocation4 + $0x130] sm:$0xff]
    %v182 = vld [vmem:[#allocation4 + $0x138] sm:$0xff]
    %v183 = vld [vmem:[#allocation4 + $0x140] sm:$0xff]
    %v184 = vld [vmem:[#allocation4 + $0x148] sm:$0xff]
    %v185 = vld [vmem:[#allocation4 + $0x150] sm:$0xff]
    %v186 = vld [vmem:[#allocation4 + $0x158] sm:$0xff]
    %v187 = vld [vmem:[#allocation4 + $0x160] sm:$0xff]
    %v188 = vld [vmem:[#allocation4 + $0x168] sm:$0xff]
    %v189 = vld [vmem:[#allocation4 + $0x170] sm:$0xff]
    %v190 = vld [vmem:[#allocation4 + $0x178] sm:$0xff]
    %v191 = vld [vmem:[#allocation4 + $0x180] sm:$0xff]
    %v192 = vld [vmem:[#allocation4 + $0x188] sm:$0xff]
    %v193 = vld [vmem:[#allocation4 + $0x190] sm:$0xff]
    %v194 = vld [vmem:[#allocation4 + $0x198] sm:$0xff]
    %v195 = vld [vmem:[#allocation4 + $0x1a0] sm:$0xff]
    %v196 = vld [vmem:[#allocation4 + $0x1a8] sm:$0xff]
    %v197 = vld [vmem:[#allocation4 + $0x1b0] sm:$0xff]
    %v198 = vld [vmem:[#allocation4 + $0x1b8] sm:$0xff]
    %v199 = vld [vmem:[#allocation4 + $0x1c0] sm:$0xff]
    %v200 = vld [vmem:[#allocation4 + $0x1c8] sm:$0xff]
    %v201 = vld [vmem:[#allocation4 + $0x1d0] sm:$0xff]
    %v202 = vld [vmem:[#allocation4 + $0x1d8] sm:$0xff]
    %v203 = vld [vmem:[#allocation4 + $0x1e0] sm:$0xff]
    %v204 = vld [vmem:[#allocation4 + $0x1e8] sm:$0xff]
    %v205 = vld [vmem:[#allocation4 + $0x1f0] sm:$0xff]
    %v206 = vld [vmem:[#allocation4 + $0x1f8] sm:$0xff]
    %v207 = vld [vmem:[%s3] sm:$0xf]
    %v209 = vperm.slane %v207, 0
    %v210 = vperm.slane %v207, 1
    %v211 = vperm.slane %v207, 2
    %v212 = vperm.slane %v207, 3
    %217 = vmatpush.msra.mxu0 %v203
    %218 = vmatpush.msra.mxu0 %v199
    %219 = vmatpush.msra.mxu0 %v195
    %220 = vmatpush.msra.mxu0 %v191
    %221 = vmatpush.msra.mxu0 %v187
    %222 = vmatpush.msra.mxu0 %v183
    %223 = vmatpush.msra.mxu0 %v179
    %224 = vmatpush.msra.mxu0 %v175
    %225 = vmatpush.msra.mxu0 %v171
    %226 = vmatpush.msra.mxu0 %v167
    %227 = vmatpush.msra.mxu0 %v163
    %228 = vmatpush.msra.mxu0 %v159
    %229 = vmatpush.msra.mxu0 %v155
    %230 = vmatpush.msra.mxu0 %v151
    %231 = vmatpush.msra.mxu0 %v147
    %232 = vmatpush.msra.mxu0 %v143
    %233 = vmatmul.f32.gmra.mxu0 %v135
    %v234 = vpop.f32.mrf.mxu0
    %v235 = vadd.f32 %v209, %v234
    %236 = vmatmul.f32.gmra.mxu0 %v136
    %v237 = vpop.f32.mrf.mxu0
    %v238 = vadd.f32 %v209, %v237
    %239 = vmatmul.f32.gmra.mxu0 %v137
    %v240 = vpop.f32.mrf.mxu0
    %v241 = vadd.f32 %v209, %v240
    %242 = vmatmul.f32.gmra.mxu0 %v138
    %v243 = vpop.f32.mrf.mxu0
    %v244 = vadd.f32 %v209, %v243
    %245 = vmatmul.f32.gmra.mxu0 %v139
    %v246 = vpop.f32.mrf.mxu0
    %v247 = vadd.f32 %v209, %v246
    %248 = vmatmul.f32.gmra.mxu0 %v140
    %v249 = vpop.f32.mrf.mxu0
    %v250 = vadd.f32 %v209, %v249
    %251 = vmatmul.f32.gmra.mxu0 %v141
    %v252 = vpop.f32.mrf.mxu0
    %v253 = vadd.f32 %v209, %v252
    %254 = vmatmul.f32.gmra.mxu0 %v142
    %v255 = vpop.f32.mrf.mxu0
    %v256 = vadd.f32 %v209, %v255
    %257 = vdwg.mxu0
    %258 = vmatpush.msra.mxu0 %v204
    %259 = vmatpush.msra.mxu0 %v200
    %260 = vmatpush.msra.mxu0 %v196
    %261 = vmatpush.msra.mxu0 %v192
    %262 = vmatpush.msra.mxu0 %v188
    %263 = vmatpush.msra.mxu0 %v184
    %264 = vmatpush.msra.mxu0 %v180
    %265 = vmatpush.msra.mxu0 %v176
    %266 = vmatpush.msra.mxu0 %v172
    %267 = vmatpush.msra.mxu0 %v168
    %268 = vmatpush.msra.mxu0 %v164
    %269 = vmatpush.msra.mxu0 %v160
    %270 = vmatpush.msra.mxu0 %v156
    %271 = vmatpush.msra.mxu0 %v152
    %272 = vmatpush.msra.mxu0 %v148
    %273 = vmatpush.msra.mxu0 %v144
    %274 = vmatmul.f32.gmra.mxu0 %v135
    %v275 = vpop.f32.mrf.mxu0
    %v276 = vadd.f32 %v210, %v275
    %277 = vmatmul.f32.gmra.mxu0 %v136
    %v278 = vpop.f32.mrf.mxu0
    %v279 = vadd.f32 %v210, %v278
    %280 = vmatmul.f32.gmra.mxu0 %v137
    %v281 = vpop.f32.mrf.mxu0
    %v282 = vadd.f32 %v210, %v281
    %283 = vmatmul.f32.gmra.mxu0 %v138
    %v284 = vpop.f32.mrf.mxu0
    %v285 = vadd.f32 %v210, %v284
    %286 = vmatmul.f32.gmra.mxu0 %v139
    %v287 = vpop.f32.mrf.mxu0
    %v288 = vadd.f32 %v210, %v287
    %289 = vmatmul.f32.gmra.mxu0 %v140
    %v290 = vpop.f32.mrf.mxu0
    %v291 = vadd.f32 %v210, %v290
    %292 = vmatmul.f32.gmra.mxu0 %v141
    %v293 = vpop.f32.mrf.mxu0
    %v294 = vadd.f32 %v210, %v293
    %295 = vmatmul.f32.gmra.mxu0 %v142
    %v296 = vpop.f32.mrf.mxu0
    %v297 = vadd.f32 %v210, %v296
    %298 = vdwg.mxu0
    %299 = vmatpush.msra.mxu0 %v205
    %300 = vmatpush.msra.mxu0 %v201
    %301 = vmatpush.msra.mxu0 %v197
    %302 = vmatpush.msra.mxu0 %v193
    %303 = vmatpush.msra.mxu0 %v189
    %304 = vmatpush.msra.mxu0 %v185
    %305 = vmatpush.msra.mxu0 %v181
    %306 = vmatpush.msra.mxu0 %v177
    %307 = vmatpush.msra.mxu0 %v173
    %308 = vmatpush.msra.mxu0 %v169
    %309 = vmatpush.msra.mxu0 %v165
    %310 = vmatpush.msra.mxu0 %v161
    %311 = vmatpush.msra.mxu0 %v157
    %312 = vmatpush.msra.mxu0 %v153
    %313 = vmatpush.msra.mxu0 %v149
    %314 = vmatpush.msra.mxu0 %v145
    %315 = vmatmul.f32.gmra.mxu0 %v135
    %v316 = vpop.f32.mrf.mxu0
    %v317 = vadd.f32 %v211, %v316
    %318 = vmatmul.f32.gmra.mxu0 %v136
    %v319 = vpop.f32.mrf.mxu0
    %v320 = vadd.f32 %v211, %v319
    %321 = vmatmul.f32.gmra.mxu0 %v137
    %v322 = vpop.f32.mrf.mxu0
    %v323 = vadd.f32 %v211, %v322
    %324 = vmatmul.f32.gmra.mxu0 %v138
    %v325 = vpop.f32.mrf.mxu0
    %v326 = vadd.f32 %v211, %v325
    %327 = vmatmul.f32.gmra.mxu0 %v139
    %v328 = vpop.f32.mrf.mxu0
    %v329 = vadd.f32 %v211, %v328
    %330 = vmatmul.f32.gmra.mxu0 %v140
    %v331 = vpop.f32.mrf.mxu0
    %v332 = vadd.f32 %v211, %v331
    %333 = vmatmul.f32.gmra.mxu0 %v141
    %v334 = vpop.f32.mrf.mxu0
    %v335 = vadd.f32 %v211, %v334
    %336 = vmatmul.f32.gmra.mxu0 %v142
    %v337 = vpop.f32.mrf.mxu0
    %v338 = vadd.f32 %v211, %v337
    %339 = vdwg.mxu0
    %340 = vmatpush.msra.mxu0 %v206
    %341 = vmatpush.msra.mxu0 %v202
    %342 = vmatpush.msra.mxu0 %v198
    %343 = vmatpush.msra.mxu0 %v194
    %344 = vmatpush.msra.mxu0 %v190
    %345 = vmatpush.msra.mxu0 %v186
    %346 = vmatpush.msra.mxu0 %v182
    %347 = vmatpush.msra.mxu0 %v178
    %348 = vmatpush.msra.mxu0 %v174
    %349 = vmatpush.msra.mxu0 %v170
    %350 = vmatpush.msra.mxu0 %v166
    %351 = vmatpush.msra.mxu0 %v162
    %352 = vmatpush.msra.mxu0 %v158
    %353 = vmatpush.msra.mxu0 %v154
    %354 = vmatpush.msra.mxu0 %v150
    %355 = vmatpush.msra.mxu0 %v146
    %356 = vmatmul.f32.gmra.mxu0 %v135
    %v357 = vpop.f32.mrf.mxu0
    %v358 = vadd.f32 %v212, %v357
    %359 = vmatmul.f32.gmra.mxu0 %v136
    %v360 = vpop.f32.mrf.mxu0
    %v361 = vadd.f32 %v212, %v360
    %362 = vmatmul.f32.gmra.mxu0 %v137
    %v363 = vpop.f32.mrf.mxu0
    %v364 = vadd.f32 %v212, %v363
    %365 = vmatmul.f32.gmra.mxu0 %v138
    %v366 = vpop.f32.mrf.mxu0
    %v367 = vadd.f32 %v212, %v366
    %368 = vmatmul.f32.gmra.mxu0 %v139
    %v369 = vpop.f32.mrf.mxu0
    %v370 = vadd.f32 %v212, %v369
    %371 = vmatmul.f32.gmra.mxu0 %v140
    %v372 = vpop.f32.mrf.mxu0
    %v373 = vadd.f32 %v212, %v372
    %374 = vmatmul.f32.gmra.mxu0 %v141
    %v375 = vpop.f32.mrf.mxu0
    %v376 = vadd.f32 %v212, %v375
    %377 = vmatmul.f32.gmra.mxu0 %v142
    %v378 = vpop.f32.mrf.mxu0
    %v379 = vadd.f32 %v212, %v378
    %380 = vdwg.mxu0
    %381 = vst [vmem:[#allocation3] sm:$0xff] %v235
    %382 = vst [vmem:[#allocation3 + $0x8] sm:$0xff] %v276
    %383 = vst [vmem:[#allocation3 + $0x10] sm:$0xff] %v317
    %384 = vst [vmem:[#allocation3 + $0x18] sm:$0xff] %v358
    %385 = vst [vmem:[#allocation3 + $0x20] sm:$0xff] %v238
    %386 = vst [vmem:[#allocation3 + $0x28] sm:$0xff] %v279
    %387 = vst [vmem:[#allocation3 + $0x30] sm:$0xff] %v320
    %388 = vst [vmem:[#allocation3 + $0x38] sm:$0xff] %v361
    %389 = vst [vmem:[#allocation3 + $0x40] sm:$0xff] %v241
    %390 = vst [vmem:[#allocation3 + $0x48] sm:$0xff] %v282
    %391 = vst [vmem:[#allocation3 + $0x50] sm:$0xff] %v323
    %392 = vst [vmem:[#allocation3 + $0x58] sm:$0xff] %v364
    %393 = vst [vmem:[#allocation3 + $0x60] sm:$0xff] %v244
    %394 = vst [vmem:[#allocation3 + $0x68] sm:$0xff] %v285
    %395 = vst [vmem:[#allocation3 + $0x70] sm:$0xff] %v326
    %396 = vst [vmem:[#allocation3 + $0x78] sm:$0xff] %v367
    %397 = vst [vmem:[#allocation3 + $0x80] sm:$0xff] %v247
    %398 = vst [vmem:[#allocation3 + $0x88] sm:$0xff] %v288
    %399 = vst [vmem:[#allocation3 + $0x90] sm:$0xff] %v329
    %400 = vst [vmem:[#allocation3 + $0x98] sm:$0xff] %v370
    %401 = vst [vmem:[#allocation3 + $0xa0] sm:$0xff] %v250
    %402 = vst [vmem:[#allocation3 + $0xa8] sm:$0xff] %v291
    %403 = vst [vmem:[#allocation3 + $0xb0] sm:$0xff] %v332
    %404 = vst [vmem:[#allocation3 + $0xb8] sm:$0xff] %v373
    %405 = vst [vmem:[#allocation3 + $0xc0] sm:$0xff] %v253
    %406 = vst [vmem:[#allocation3 + $0xc8] sm:$0xff] %v294
    %407 = vst [vmem:[#allocation3 + $0xd0] sm:$0xff] %v335
    %408 = vst [vmem:[#allocation3 + $0xd8] sm:$0xff] %v376
    %409 = vst [vmem:[#allocation3 + $0xe0] sm:$0xff] %v256
    %410 = vst [vmem:[#allocation3 + $0xe8] sm:$0xff] %v297
    %411 = vst [vmem:[#allocation3 + $0xf0] sm:$0xff] %v338
    %412 = vst [vmem:[#allocation3 + $0xf8] sm:$0xff] %v379
    %v413 = vld [vmem:[#allocation6] sm:$0xff]
    %v414 = vld [vmem:[#allocation6 + $0x8] sm:$0xff]
    %v415 = vld [vmem:[#allocation6 + $0x10] sm:$0xff]
    %v416 = vld [vmem:[#allocation6 + $0x18] sm:$0xff]
    %v417 = vld [vmem:[#allocation6 + $0x20] sm:$0xff]
    %v418 = vld [vmem:[#allocation6 + $0x28] sm:$0xff]
    %v419 = vld [vmem:[#allocation6 + $0x30] sm:$0xff]
    %v420 = vld [vmem:[#allocation6 + $0x38] sm:$0xff]
    %v421 = vld [vmem:[#allocation6 + $0x40] sm:$0xff]
    %v422 = vld [vmem:[#allocation6 + $0x48] sm:$0xff]
    %v423 = vld [vmem:[#allocation6 + $0x50] sm:$0xff]
    %v424 = vld [vmem:[#allocation6 + $0x58] sm:$0xff]
    %v425 = vld [vmem:[#allocation6 + $0x60] sm:$0xff]
    %v426 = vld [vmem:[#allocation6 + $0x68] sm:$0xff]
    %v427 = vld [vmem:[#allocation6 + $0x70] sm:$0xff]
    %v428 = vld [vmem:[#allocation6 + $0x78] sm:$0xff]
    %v429 = vld [vmem:[#allocation6 + $0x80] sm:$0xff]
    %v430 = vld [vmem:[#allocation6 + $0x88] sm:$0xff]
    %v431 = vld [vmem:[#allocation6 + $0x90] sm:$0xff]
    %v432 = vld [vmem:[#allocation6 + $0x98] sm:$0xff]
    %v433 = vld [vmem:[#allocation6 + $0xa0] sm:$0xff]
    %v434 = vld [vmem:[#allocation6 + $0xa8] sm:$0xff]
    %v435 = vld [vmem:[#allocation6 + $0xb0] sm:$0xff]
    %v436 = vld [vmem:[#allocation6 + $0xb8] sm:$0xff]
    %v437 = vld [vmem:[#allocation6 + $0xc0] sm:$0xff]
    %v438 = vld [vmem:[#allocation6 + $0xc8] sm:$0xff]
    %v439 = vld [vmem:[#allocation6 + $0xd0] sm:$0xff]
    %v440 = vld [vmem:[#allocation6 + $0xd8] sm:$0xff]
    %v441 = vld [vmem:[#allocation6 + $0xe0] sm:$0xff]
    %v442 = vld [vmem:[#allocation6 + $0xe8] sm:$0xff]
    %v443 = vld [vmem:[#allocation6 + $0xf0] sm:$0xff]
    %v444 = vld [vmem:[#allocation6 + $0xf8] sm:$0xff]
    %v445 = vld [vmem:[#allocation6 + $0x100] sm:$0xff]
    %v446 = vld [vmem:[#allocation6 + $0x108] sm:$0xff]
    %v447 = vld [vmem:[#allocation6 + $0x110] sm:$0xff]
    %v448 = vld [vmem:[#allocation6 + $0x118] sm:$0xff]
    %v449 = vld [vmem:[#allocation6 + $0x120] sm:$0xff]
    %v450 = vld [vmem:[#allocation6 + $0x128] sm:$0xff]
    %v451 = vld [vmem:[#allocation6 + $0x130] sm:$0xff]
    %v452 = vld [vmem:[#allocation6 + $0x138] sm:$0xff]
    %v453 = vld [vmem:[#allocation6 + $0x140] sm:$0xff]
    %v454 = vld [vmem:[#allocation6 + $0x148] sm:$0xff]
    %v455 = vld [vmem:[#allocation6 + $0x150] sm:$0xff]
    %v456 = vld [vmem:[#allocation6 + $0x158] sm:$0xff]
    %v457 = vld [vmem:[#allocation6 + $0x160] sm:$0xff]
    %v458 = vld [vmem:[#allocation6 + $0x168] sm:$0xff]
    %v459 = vld [vmem:[#allocation6 + $0x170] sm:$0xff]
    %v460 = vld [vmem:[#allocation6 + $0x178] sm:$0xff]
    %v461 = vld [vmem:[#allocation6 + $0x180] sm:$0xff]
    %v462 = vld [vmem:[#allocation6 + $0x188] sm:$0xff]
    %v463 = vld [vmem:[#allocation6 + $0x190] sm:$0xff]
    %v464 = vld [vmem:[#allocation6 + $0x198] sm:$0xff]
    %v465 = vld [vmem:[#allocation6 + $0x1a0] sm:$0xff]
    %v466 = vld [vmem:[#allocation6 + $0x1a8] sm:$0xff]
    %v467 = vld [vmem:[#allocation6 + $0x1b0] sm:$0xff]
    %v468 = vld [vmem:[#allocation6 + $0x1b8] sm:$0xff]
    %v469 = vld [vmem:[#allocation6 + $0x1c0] sm:$0xff]
    %v470 = vld [vmem:[#allocation6 + $0x1c8] sm:$0xff]
    %v471 = vld [vmem:[#allocation6 + $0x1d0] sm:$0xff]
    %v472 = vld [vmem:[#allocation6 + $0x1d8] sm:$0xff]
    %v473 = vld [vmem:[#allocation6 + $0x1e0] sm:$0xff]
    %v474 = vld [vmem:[#allocation6 + $0x1e8] sm:$0xff]
    %v475 = vld [vmem:[#allocation6 + $0x1f0] sm:$0xff]
    %v476 = vld [vmem:[#allocation6 + $0x1f8] sm:$0xff]
    %v477 = vld [vmem:[#allocation3] sm:$0xff]
    %v478 = vld [vmem:[#allocation3 + $0x8] sm:$0xff]
    %v479 = vld [vmem:[#allocation3 + $0x10] sm:$0xff]
    %v480 = vld [vmem:[#allocation3 + $0x18] sm:$0xff]
    %481 = vmatpush.msra.mxu0 %v473
    %482 = vmatpush.msra.mxu0 %v469
    %483 = vmatpush.msra.mxu0 %v465
    %484 = vmatpush.msra.mxu0 %v461
    %485 = vmatpush.msra.mxu0 %v457
    %486 = vmatpush.msra.mxu0 %v453
    %487 = vmatpush.msra.mxu0 %v449
    %488 = vmatpush.msra.mxu0 %v445
    %489 = vmatpush.msra.mxu0 %v441
    %490 = vmatpush.msra.mxu0 %v437
    %491 = vmatpush.msra.mxu0 %v433
    %492 = vmatpush.msra.mxu0 %v429
    %493 = vmatpush.msra.mxu0 %v425
    %494 = vmatpush.msra.mxu0 %v421
    %495 = vmatpush.msra.mxu0 %v417
    %496 = vmatpush.msra.mxu0 %v413
    %497 = vmatmul.f32.gmra.mxu0 0.0
    %v498 = vpop.f32.mrf.mxu0
    %v499 = vadd.f32 0.0, %v498
    %500 = vdwg.mxu0
    %501 = vmatpush.msra.mxu0 %v474
    %502 = vmatpush.msra.mxu0 %v470
    %503 = vmatpush.msra.mxu0 %v466
    %504 = vmatpush.msra.mxu0 %v462
    %505 = vmatpush.msra.mxu0 %v458
    %506 = vmatpush.msra.mxu0 %v454
    %507 = vmatpush.msra.mxu0 %v450
    %508 = vmatpush.msra.mxu0 %v446
    %509 = vmatpush.msra.mxu0 %v442
    %510 = vmatpush.msra.mxu0 %v438
    %511 = vmatpush.msra.mxu0 %v434
    %512 = vmatpush.msra.mxu0 %v430
    %513 = vmatpush.msra.mxu0 %v426
    %514 = vmatpush.msra.mxu0 %v422
    %515 = vmatpush.msra.mxu0 %v418
    %516 = vmatpush.msra.mxu0 %v414
    %517 = vmatmul.f32.gmra.mxu0 0.0
    %v518 = vpop.f32.mrf.mxu0
    %v519 = vadd.f32 0.0, %v518
    %520 = vdwg.mxu0
    %521 = vmatpush.msra.mxu0 %v475
    %522 = vmatpush.msra.mxu0 %v471
    %523 = vmatpush.msra.mxu0 %v467
    %524 = vmatpush.msra.mxu0 %v463
    %525 = vmatpush.msra.mxu0 %v459
    %526 = vmatpush.msra.mxu0 %v455
    %527 = vmatpush.msra.mxu0 %v451
    %528 = vmatpush.msra.mxu0 %v447
    %529 = vmatpush.msra.mxu0 %v443
    %530 = vmatpush.msra.mxu0 %v439
    %531 = vmatpush.msra.mxu0 %v435
    %532 = vmatpush.msra.mxu0 %v431
    %533 = vmatpush.msra.mxu0 %v427
    %534 = vmatpush.msra.mxu0 %v423
    %535 = vmatpush.msra.mxu0 %v419
    %536 = vmatpush.msra.mxu0 %v415
    %537 = vmatmul.f32.gmra.mxu0 0.0
    %v538 = vpop.f32.mrf.mxu0
    %v539 = vadd.f32 0.0, %v538
    %540 = vdwg.mxu0
    %541 = vmatpush.msra.mxu0 %v476
    %542 = vmatpush.msra.mxu0 %v472
    %543 = vmatpush.msra.mxu0 %v468
    %544 = vmatpush.msra.mxu0 %v464
    %545 = vmatpush.msra.mxu0 %v460
    %546 = vmatpush.msra.mxu0 %v456
    %547 = vmatpush.msra.mxu0 %v452
    %548 = vmatpush.msra.mxu0 %v448
    %549 = vmatpush.msra.mxu0 %v444
    %550 = vmatpush.msra.mxu0 %v440
    %551 = vmatpush.msra.mxu0 %v436
    %552 = vmatpush.msra.mxu0 %v432
    %553 = vmatpush.msra.mxu0 %v428
    %554 = vmatpush.msra.mxu0 %v424
    %555 = vmatpush.msra.mxu0 %v420
    %556 = vmatpush.msra.mxu0 %v416
    %557 = vmatmul.f32.gmra.mxu0 0.0
    %v558 = vpop.f32.mrf.mxu0
    %v559 = vadd.f32 0.0, %v558
    %560 = vdwg.mxu0
    %v561 = vadd.f32 %v477, %v499
    %v562 = vadd.f32 %v478, %v519
    %v563 = vadd.f32 %v479, %v539
    %v564 = vadd.f32 %v480, %v559
    %v565 = vxor.u32 %v561, 2147483648
    %v566 = vxor.u32 %v562, 2147483648
    %v567 = vxor.u32 %v563, 2147483648
    %v568 = vmul.f32 %v565, 1.442695
    %v569 = vpow.pop %v568
    %v570 = vmul.f32 %v566, 1.442695
    %v571 = vpow.pop %v570
    %v572 = vmul.f32 %v567, 1.442695
    %v573 = vpow.pop %v572
    %v574 = vadd.f32 %v569, 1.0
    %v575 = vadd.f32 %v571, 1.0
    %v576 = vadd.f32 %v573, 1.0
    %v577 = vrcp.pop %v574
    %v578 = vmul.f32 %v574, %v577
    %v579 = vsub.f32 1.0, %v578
    %v580 = vmul.f32 %v577, %v579
    %v581 = vadd.f32 %v577, %v580
    %vm582 = vweird.f32 %v574
    %vm583 = vweird.f32 %v577
    %vm584 = vmor %vm582, %vm583
    %v585 = vsel %vm584, %v577, %v581
    %v586 = vand.u32 2147483647, %v574
    %vm587 = vcmp.eq.f32.partialorder %v586, 8.507059e+37
    %v588 = vand.u32 %v574, 2147483648
    %v589 = vor.u32 1.1754944e-38, %v588
    %v590 = vsel %vm587, %v589, %v585
    %v591 = vmul.f32 1.0, %v590
    %v592 = vrcp.pop %v575
    %v593 = vmul.f32 %v575, %v592
    %v594 = vsub.f32 1.0, %v593
    %v595 = vmul.f32 %v592, %v594
    %v596 = vadd.f32 %v592, %v595
    %vm597 = vweird.f32 %v575
    %vm598 = vweird.f32 %v592
    %vm599 = vmor %vm597, %vm598
    %v600 = vsel %vm599, %v592, %v596
    %v601 = vand.u32 2147483647, %v575
    %vm602 = vcmp.eq.f32.partialorder %v601, 8.507059e+37
    %v603 = vand.u32 %v575, 2147483648
    %v604 = vor.u32 1.1754944e-38, %v603
    %v605 = vsel %vm602, %v604, %v600
    %v606 = vmul.f32 1.0, %v605
    %v607 = vrcp.pop %v576
    %v608 = vmul.f32 %v576, %v607
    %v609 = vsub.f32 1.0, %v608
    %v610 = vmul.f32 %v607, %v609
    %v611 = vadd.f32 %v607, %v610
    %vm612 = vweird.f32 %v576
    %vm613 = vweird.f32 %v607
    %vm614 = vmor %vm612, %vm613
    %v615 = vsel %vm614, %v607, %v611
    %v616 = vand.u32 2147483647, %v576
    %vm617 = vcmp.eq.f32.partialorder %v616, 8.507059e+37
    %v618 = vand.u32 %v576, 2147483648
    %v619 = vor.u32 1.1754944e-38, %v618
    %v620 = vsel %vm617, %v619, %v615
    %v621 = vmul.f32 1.0, %v620
    %v622 = vtanh.pop %v564
    %v623 = vmul.f32 %v606, 0.0
    %v624 = vmul.f32 %v591, %v622
    %v625 = vadd.f32 %v623, %v624
    %v626 = vtanh.pop %v625
    %v627 = vmul.f32 %v621, %v626
    %628 = vst [vmem:[#allocation2] sm:$0xff] %v627
    %s629 = scalar_lea.vmem [#allocation3], 32
    %v630 = vld [vmem:[%s629] sm:$0xff]
    %v631 = vld [vmem:[%s629 + $0x8] sm:$0xff]
    %v632 = vld [vmem:[%s629 + $0x10] sm:$0xff]
    %v633 = vld [vmem:[%s629 + $0x18] sm:$0xff]
    %634 = vmatpush.msra.mxu0 %v473
    %635 = vmatpush.msra.mxu0 %v469
    %636 = vmatpush.msra.mxu0 %v465
    %637 = vmatpush.msra.mxu0 %v461
    %638 = vmatpush.msra.mxu0 %v457
    %639 = vmatpush.msra.mxu0 %v453
    %640 = vmatpush.msra.mxu0 %v449
    %641 = vmatpush.msra.mxu0 %v445
    %642 = vmatpush.msra.mxu0 %v441
    %643 = vmatpush.msra.mxu0 %v437
    %644 = vmatpush.msra.mxu0 %v433
    %645 = vmatpush.msra.mxu0 %v429
    %646 = vmatpush.msra.mxu0 %v425
    %647 = vmatpush.msra.mxu0 %v421
    %648 = vmatpush.msra.mxu0 %v417
    %649 = vmatpush.msra.mxu0 %v413
    %650 = vmatmul.f32.gmra.mxu0 %v627
    %v651 = vpop.f32.mrf.mxu0
    %v652 = vadd.f32 0.0, %v651
    %653 = vdwg.mxu0
    %654 = vmatpush.msra.mxu0 %v474
    %655 = vmatpush.msra.mxu0 %v470
    %656 = vmatpush.msra.mxu0 %v466
    %657 = vmatpush.msra.mxu0 %v462
    %658 = vmatpush.msra.mxu0 %v458
    %659 = vmatpush.msra.mxu0 %v454
    %660 = vmatpush.msra.mxu0 %v450
    %661 = vmatpush.msra.mxu0 %v446
    %662 = vmatpush.msra.mxu0 %v442
    %663 = vmatpush.msra.mxu0 %v438
    %664 = vmatpush.msra.mxu0 %v434
    %665 = vmatpush.msra.mxu0 %v430
    %666 = vmatpush.msra.mxu0 %v426
    %667 = vmatpush.msra.mxu0 %v422
    %668 = vmatpush.msra.mxu0 %v418
    %669 = vmatpush.msra.mxu0 %v414
    %670 = vmatmul.f32.gmra.mxu0 %v627
    %v671 = vpop.f32.mrf.mxu0
    %v672 = vadd.f32 0.0, %v671
    %673 = vdwg.mxu0
    %674 = vmatpush.msra.mxu0 %v475
    %675 = vmatpush.msra.mxu0 %v471
    %676 = vmatpush.msra.mxu0 %v467
    %677 = vmatpush.msra.mxu0 %v463
    %678 = vmatpush.msra.mxu0 %v459
    %679 = vmatpush.msra.mxu0 %v455
    %680 = vmatpush.msra.mxu0 %v451
    %681 = vmatpush.msra.mxu0 %v447
    %682 = vmatpush.msra.mxu0 %v443
    %683 = vmatpush.msra.mxu0 %v439
    %684 = vmatpush.msra.mxu0 %v435
    %685 = vmatpush.msra.mxu0 %v431
    %686 = vmatpush.msra.mxu0 %v427
    %687 = vmatpush.msra.mxu0 %v423
    %688 = vmatpush.msra.mxu0 %v419
    %689 = vmatpush.msra.mxu0 %v415
    %690 = vmatmul.f32.gmra.mxu0 %v627
    %v691 = vpop.f32.mrf.mxu0
    %v692 = vadd.f32 0.0, %v691
    %693 = vdwg.mxu0
    %694 = vmatpush.msra.mxu0 %v476
    %695 = vmatpush.msra.mxu0 %v472
    %696 = vmatpush.msra.mxu0 %v468
    %697 = vmatpush.msra.mxu0 %v464
    %698 = vmatpush.msra.mxu0 %v460
    %699 = vmatpush.msra.mxu0 %v456
    %700 = vmatpush.msra.mxu0 %v452
    %701 = vmatpush.msra.mxu0 %v448
    %702 = vmatpush.msra.mxu0 %v444
    %703 = vmatpush.msra.mxu0 %v440
    %704 = vmatpush.msra.mxu0 %v436
    %705 = vmatpush.msra.mxu0 %v432
    %706 = vmatpush.msra.mxu0 %v428
    %707 = vmatpush.msra.mxu0 %v424
    %708 = vmatpush.msra.mxu0 %v420
    %709 = vmatpush.msra.mxu0 %v416
    %710 = vmatmul.f32.gmra.mxu0 %v627
    %v711 = vpop.f32.mrf.mxu0
    %v712 = vadd.f32 0.0, %v711
    %713 = vdwg.mxu0
    %v714 = vadd.f32 %v630, %v652
    %v715 = vadd.f32 %v631, %v672
    %v716 = vadd.f32 %v632, %v692
    %v717 = vadd.f32 %v633, %v712
    %v718 = vxor.u32 %v714, 2147483648
    %v719 = vxor.u32 %v715, 2147483648
    %v720 = vxor.u32 %v716, 2147483648
    %v721 = vmul.f32 %v718, 1.442695
    %v722 = vpow.pop %v721
    %v723 = vmul.f32 %v719, 1.442695
    %v724 = vpow.pop %v723
    %v725 = vmul.f32 %v720, 1.442695
    %v726 = vpow.pop %v725
    %v727 = vadd.f32 %v722, 1.0
    %v728 = vadd.f32 %v724, 1.0
    %v729 = vadd.f32 %v726, 1.0
    %v730 = vrcp.pop %v727
    %v731 = vmul.f32 %v727, %v730
    %v732 = vsub.f32 1.0, %v731
    %v733 = vmul.f32 %v730, %v732
    %v734 = vadd.f32 %v730, %v733
    %vm735 = vweird.f32 %v727
    %vm736 = vweird.f32 %v730
    %vm737 = vmor %vm735, %vm736
    %v738 = vsel %vm737, %v730, %v734
    %v739 = vand.u32 2147483647, %v727
    %vm740 = vcmp.eq.f32.partialorder %v739, 8.507059e+37
    %v741 = vand.u32 %v727, 2147483648
    %v742 = vor.u32 1.1754944e-38, %v741
    %v743 = vsel %vm740, %v742, %v738
    %v744 = vmul.f32 1.0, %v743
    %v745 = vrcp.pop %v728
    %v746 = vmul.f32 %v728, %v745
    %v747 = vsub.f32 1.0, %v746
    %v748 = vmul.f32 %v745, %v747
    %v749 = vadd.f32 %v745, %v748
    %vm750 = vweird.f32 %v728
    %vm751 = vweird.f32 %v745
    %vm752 = vmor %vm750, %vm751
    %v753 = vsel %vm752, %v745, %v749
    %v754 = vand.u32 2147483647, %v728
    %vm755 = vcmp.eq.f32.partialorder %v754, 8.507059e+37
    %v756 = vand.u32 %v728, 2147483648
    %v757 = vor.u32 1.1754944e-38, %v756
    %v758 = vsel %vm755, %v757, %v753
    %v759 = vmul.f32 1.0, %v758
    %v760 = vrcp.pop %v729
    %v761 = vmul.f32 %v729, %v760
    %v762 = vsub.f32 1.0, %v761
    %v763 = vmul.f32 %v760, %v762
    %v764 = vadd.f32 %v760, %v763
    %vm765 = vweird.f32 %v729
    %vm766 = vweird.f32 %v760
    %vm767 = vmor %vm765, %vm766
    %v768 = vsel %vm767, %v760, %v764
    %v769 = vand.u32 2147483647, %v729
    %vm770 = vcmp.eq.f32.partialorder %v769, 8.507059e+37
    %v771 = vand.u32 %v729, 2147483648
    %v772 = vor.u32 1.1754944e-38, %v771
    %v773 = vsel %vm770, %v772, %v768
    %v774 = vmul.f32 1.0, %v773
    %v775 = vtanh.pop %v717
    %v776 = vmul.f32 %v759, %v625
    %v777 = vmul.f32 %v744, %v775
    %v778 = vadd.f32 %v776, %v777
    %v779 = vtanh.pop %v778
    %v780 = vmul.f32 %v774, %v779
    %s781 = scalar_lea.vmem [#allocation2], 8
    %782 = vst [vmem:[%s781] sm:$0xff] %v780
    %s783 = scalar_lea.vmem [#allocation3], 64
    %v784 = vld [vmem:[%s783] sm:$0xff]
    %v785 = vld [vmem:[%s783 + $0x8] sm:$0xff]
    %v786 = vld [vmem:[%s783 + $0x10] sm:$0xff]
    %v787 = vld [vmem:[%s783 + $0x18] sm:$0xff]
    %788 = vmatpush.msra.mxu0 %v473
    %789 = vmatpush.msra.mxu0 %v469
    %790 = vmatpush.msra.mxu0 %v465
    %791 = vmatpush.msra.mxu0 %v461
    %792 = vmatpush.msra.mxu0 %v457
    %793 = vmatpush.msra.mxu0 %v453
    %794 = vmatpush.msra.mxu0 %v449
    %795 = vmatpush.msra.mxu0 %v445
    %796 = vmatpush.msra.mxu0 %v441
    %797 = vmatpush.msra.mxu0 %v437
    %798 = vmatpush.msra.mxu0 %v433
    %799 = vmatpush.msra.mxu0 %v429
    %800 = vmatpush.msra.mxu0 %v425
    %801 = vmatpush.msra.mxu0 %v421
    %802 = vmatpush.msra.mxu0 %v417
    %803 = vmatpush.msra.mxu0 %v413
    %804 = vmatmul.f32.gmra.mxu0 %v780
    %v805 = vpop.f32.mrf.mxu0
    %v806 = vadd.f32 0.0, %v805
    %807 = vdwg.mxu0
    %808 = vmatpush.msra.mxu0 %v474
    %809 = vmatpush.msra.mxu0 %v470
    %810 = vmatpush.msra.mxu0 %v466
    %811 = vmatpush.msra.mxu0 %v462
    %812 = vmatpush.msra.mxu0 %v458
    %813 = vmatpush.msra.mxu0 %v454
    %814 = vmatpush.msra.mxu0 %v450
    %815 = vmatpush.msra.mxu0 %v446
    %816 = vmatpush.msra.mxu0 %v442
    %817 = vmatpush.msra.mxu0 %v438
    %818 = vmatpush.msra.mxu0 %v434
    %819 = vmatpush.msra.mxu0 %v430
    %820 = vmatpush.msra.mxu0 %v426
    %821 = vmatpush.msra.mxu0 %v422
    %822 = vmatpush.msra.mxu0 %v418
    %823 = vmatpush.msra.mxu0 %v414
    %824 = vmatmul.f32.gmra.mxu0 %v780
    %v825 = vpop.f32.mrf.mxu0
    %v826 = vadd.f32 0.0, %v825
    %827 = vdwg.mxu0
    %828 = vmatpush.msra.mxu0 %v475
    %829 = vmatpush.msra.mxu0 %v471
    %830 = vmatpush.msra.mxu0 %v467
    %831 = vmatpush.msra.mxu0 %v463
    %832 = vmatpush.msra.mxu0 %v459
    %833 = vmatpush.msra.mxu0 %v455
    %834 = vmatpush.msra.mxu0 %v451
    %835 = vmatpush.msra.mxu0 %v447
    %836 = vmatpush.msra.mxu0 %v443
    %837 = vmatpush.msra.mxu0 %v439
    %838 = vmatpush.msra.mxu0 %v435
    %839 = vmatpush.msra.mxu0 %v431
    %840 = vmatpush.msra.mxu0 %v427
    %841 = vmatpush.msra.mxu0 %v423
    %842 = vmatpush.msra.mxu0 %v419
    %843 = vmatpush.msra.mxu0 %v415
    %844 = vmatmul.f32.gmra.mxu0 %v780
    %v845 = vpop.f32.mrf.mxu0
    %v846 = vadd.f32 0.0, %v845
    %847 = vdwg.mxu0
    %848 = vmatpush.msra.mxu0 %v476
    %849 = vmatpush.msra.mxu0 %v472
    %850 = vmatpush.msra.mxu0 %v468
    %851 = vmatpush.msra.mxu0 %v464
    %852 = vmatpush.msra.mxu0 %v460
    %853 = vmatpush.msra.mxu0 %v456
    %854 = vmatpush.msra.mxu0 %v452
    %855 = vmatpush.msra.mxu0 %v448
    %856 = vmatpush.msra.mxu0 %v444
    %857 = vmatpush.msra.mxu0 %v440
    %858 = vmatpush.msra.mxu0 %v436
    %859 = vmatpush.msra.mxu0 %v432
    %860 = vmatpush.msra.mxu0 %v428
    %861 = vmatpush.msra.mxu0 %v424
    %862 = vmatpush.msra.mxu0 %v420
    %863 = vmatpush.msra.mxu0 %v416
    %864 = vmatmul.f32.gmra.mxu0 %v780
    %v865 = vpop.f32.mrf.mxu0
    %v866 = vadd.f32 0.0, %v865
    %867 = vdwg.mxu0
    %v868 = vadd.f32 %v784, %v806
    %v869 = vadd.f32 %v785, %v826
    %v870 = vadd.f32 %v786, %v846
    %v871 = vadd.f32 %v787, %v866
    %v872 = vxor.u32 %v868, 2147483648
    %v873 = vxor.u32 %v869, 2147483648
    %v874 = vxor.u32 %v870, 2147483648
    %v875 = vmul.f32 %v872, 1.442695
    %v876 = vpow.pop %v875
    %v877 = vmul.f32 %v873, 1.442695
    %v878 = vpow.pop %v877
    %v879 = vmul.f32 %v874, 1.442695
    %v880 = vpow.pop %v879
    %v881 = vadd.f32 %v876, 1.0
    %v882 = vadd.f32 %v878, 1.0
    %v883 = vadd.f32 %v880, 1.0
    %v884 = vrcp.pop %v881
    %v885 = vmul.f32 %v881, %v884
    %v886 = vsub.f32 1.0, %v885
    %v887 = vmul.f32 %v884, %v886
    %v888 = vadd.f32 %v884, %v887
    %vm889 = vweird.f32 %v881
    %vm890 = vweird.f32 %v884
    %vm891 = vmor %vm889, %vm890
    %v892 = vsel %vm891, %v884, %v888
    %v893 = vand.u32 2147483647, %v881
    %vm894 = vcmp.eq.f32.partialorder %v893, 8.507059e+37
    %v895 = vand.u32 %v881, 2147483648
    %v896 = vor.u32 1.1754944e-38, %v895
    %v897 = vsel %vm894, %v896, %v892
    %v898 = vmul.f32 1.0, %v897
    %v899 = vrcp.pop %v882
    %v900 = vmul.f32 %v882, %v899
    %v901 = vsub.f32 1.0, %v900
    %v902 = vmul.f32 %v899, %v901
    %v903 = vadd.f32 %v899, %v902
    %vm904 = vweird.f32 %v882
    %vm905 = vweird.f32 %v899
    %vm906 = vmor %vm904, %vm905
    %v907 = vsel %vm906, %v899, %v903
    %v908 = vand.u32 2147483647, %v882
    %vm909 = vcmp.eq.f32.partialorder %v908, 8.507059e+37
    %v910 = vand.u32 %v882, 2147483648
    %v911 = vor.u32 1.1754944e-38, %v910
    %v912 = vsel %vm909, %v911, %v907
    %v913 = vmul.f32 1.0, %v912
    %v914 = vrcp.pop %v883
    %v915 = vmul.f32 %v883, %v914
    %v916 = vsub.f32 1.0, %v915
    %v917 = vmul.f32 %v914, %v916
    %v918 = vadd.f32 %v914, %v917
    %vm919 = vweird.f32 %v883
    %vm920 = vweird.f32 %v914
    %vm921 = vmor %vm919, %vm920
    %v922 = vsel %vm921, %v914, %v918
    %v923 = vand.u32 2147483647, %v883
    %vm924 = vcmp.eq.f32.partialorder %v923, 8.507059e+37
    %v925 = vand.u32 %v883, 2147483648
    %v926 = vor.u32 1.1754944e-38, %v925
    %v927 = vsel %vm924, %v926, %v922
    %v928 = vmul.f32 1.0, %v927
    %v929 = vtanh.pop %v871
    %v930 = vmul.f32 %v913, %v778
    %v931 = vmul.f32 %v898, %v929
    %v932 = vadd.f32 %v930, %v931
    %v933 = vtanh.pop %v932
    %v934 = vmul.f32 %v928, %v933
    %s935 = scalar_lea.vmem [#allocation2], 16
    %936 = vst [vmem:[%s935] sm:$0xff] %v934
    %s937 = scalar_lea.vmem [#allocation3], 96
    %v938 = vld [vmem:[%s937] sm:$0xff]
    %v939 = vld [vmem:[%s937 + $0x8] sm:$0xff]
    %v940 = vld [vmem:[%s937 + $0x10] sm:$0xff]
    %v941 = vld [vmem:[%s937 + $0x18] sm:$0xff]
    %942 = vmatpush.msra.mxu0 %v473
    %943 = vmatpush.msra.mxu0 %v469
    %944 = vmatpush.msra.mxu0 %v465
    %945 = vmatpush.msra.mxu0 %v461
    %946 = vmatpush.msra.mxu0 %v457
    %947 = vmatpush.msra.mxu0 %v453
    %948 = vmatpush.msra.mxu0 %v449
    %949 = vmatpush.msra.mxu0 %v445
    %950 = vmatpush.msra.mxu0 %v441
    %951 = vmatpush.msra.mxu0 %v437
    %952 = vmatpush.msra.mxu0 %v433
    %953 = vmatpush.msra.mxu0 %v429
    %954 = vmatpush.msra.mxu0 %v425
    %955 = vmatpush.msra.mxu0 %v421
    %956 = vmatpush.msra.mxu0 %v417
    %957 = vmatpush.msra.mxu0 %v413
    %958 = vmatmul.f32.gmra.mxu0 %v934
    %v959 = vpop.f32.mrf.mxu0
    %v960 = vadd.f32 0.0, %v959
    %961 = vdwg.mxu0
    %962 = vmatpush.msra.mxu0 %v474
    %963 = vmatpush.msra.mxu0 %v470
    %964 = vmatpush.msra.mxu0 %v466
    %965 = vmatpush.msra.mxu0 %v462
    %966 = vmatpush.msra.mxu0 %v458
    %967 = vmatpush.msra.mxu0 %v454
    %968 = vmatpush.msra.mxu0 %v450
    %969 = vmatpush.msra.mxu0 %v446
    %970 = vmatpush.msra.mxu0 %v442
    %971 = vmatpush.msra.mxu0 %v438
    %972 = vmatpush.msra.mxu0 %v434
    %973 = vmatpush.msra.mxu0 %v430
    %974 = vmatpush.msra.mxu0 %v426
    %975 = vmatpush.msra.mxu0 %v422
    %976 = vmatpush.msra.mxu0 %v418
    %977 = vmatpush.msra.mxu0 %v414
    %978 = vmatmul.f32.gmra.mxu0 %v934
    %v979 = vpop.f32.mrf.mxu0
    %v980 = vadd.f32 0.0, %v979
    %981 = vdwg.mxu0
    %982 = vmatpush.msra.mxu0 %v475
    %983 = vmatpush.msra.mxu0 %v471
    %984 = vmatpush.msra.mxu0 %v467
    %985 = vmatpush.msra.mxu0 %v463
    %986 = vmatpush.msra.mxu0 %v459
    %987 = vmatpush.msra.mxu0 %v455
    %988 = vmatpush.msra.mxu0 %v451
    %989 = vmatpush.msra.mxu0 %v447
    %990 = vmatpush.msra.mxu0 %v443
    %991 = vmatpush.msra.mxu0 %v439
    %992 = vmatpush.msra.mxu0 %v435
    %993 = vmatpush.msra.mxu0 %v431
    %994 = vmatpush.msra.mxu0 %v427
    %995 = vmatpush.msra.mxu0 %v423
    %996 = vmatpush.msra.mxu0 %v419
    %997 = vmatpush.msra.mxu0 %v415
    %998 = vmatmul.f32.gmra.mxu0 %v934
    %v999 = vpop.f32.mrf.mxu0
    %v1000 = vadd.f32 0.0, %v999
    %1001 = vdwg.mxu0
    %1002 = vmatpush.msra.mxu0 %v476
    %1003 = vmatpush.msra.mxu0 %v472
    %1004 = vmatpush.msra.mxu0 %v468
    %1005 = vmatpush.msra.mxu0 %v464
    %1006 = vmatpush.msra.mxu0 %v460
    %1007 = vmatpush.msra.mxu0 %v456
    %1008 = vmatpush.msra.mxu0 %v452
    %1009 = vmatpush.msra.mxu0 %v448
    %1010 = vmatpush.msra.mxu0 %v444
    %1011 = vmatpush.msra.mxu0 %v440
    %1012 = vmatpush.msra.mxu0 %v436
    %1013 = vmatpush.msra.mxu0 %v432
    %1014 = vmatpush.msra.mxu0 %v428
    %1015 = vmatpush.msra.mxu0 %v424
    %1016 = vmatpush.msra.mxu0 %v420
    %1017 = vmatpush.msra.mxu0 %v416
    %1018 = vmatmul.f32.gmra.mxu0 %v934
    %v1019 = vpop.f32.mrf.mxu0
    %v1020 = vadd.f32 0.0, %v1019
    %1021 = vdwg.mxu0
    %v1022 = vadd.f32 %v938, %v960
    %v1023 = vadd.f32 %v939, %v980
    %v1024 = vadd.f32 %v940, %v1000
    %v1025 = vadd.f32 %v941, %v1020
    %v1026 = vxor.u32 %v1022, 2147483648
    %v1027 = vxor.u32 %v1023, 2147483648
    %v1028 = vxor.u32 %v1024, 2147483648
    %v1029 = vmul.f32 %v1026, 1.442695
    %v1030 = vpow.pop %v1029
    %v1031 = vmul.f32 %v1027, 1.442695
    %v1032 = vpow.pop %v1031
    %v1033 = vmul.f32 %v1028, 1.442695
    %v1034 = vpow.pop %v1033
    %v1035 = vadd.f32 %v1030, 1.0
    %v1036 = vadd.f32 %v1032, 1.0
    %v1037 = vadd.f32 %v1034, 1.0
    %v1038 = vrcp.pop %v1035
    %v1039 = vmul.f32 %v1035, %v1038
    %v1040 = vsub.f32 1.0, %v1039
    %v1041 = vmul.f32 %v1038, %v1040
    %v1042 = vadd.f32 %v1038, %v1041
    %vm1043 = vweird.f32 %v1035
    %vm1044 = vweird.f32 %v1038
    %vm1045 = vmor %vm1043, %vm1044
    %v1046 = vsel %vm1045, %v1038, %v1042
    %v1047 = vand.u32 2147483647, %v1035
    %vm1048 = vcmp.eq.f32.partialorder %v1047, 8.507059e+37
    %v1049 = vand.u32 %v1035, 2147483648
    %v1050 = vor.u32 1.1754944e-38, %v1049
    %v1051 = vsel %vm1048, %v1050, %v1046
    %v1052 = vmul.f32 1.0, %v1051
    %v1053 = vrcp.pop %v1036
    %v1054 = vmul.f32 %v1036, %v1053
    %v1055 = vsub.f32 1.0, %v1054
    %v1056 = vmul.f32 %v1053, %v1055
    %v1057 = vadd.f32 %v1053, %v1056
    %vm1058 = vweird.f32 %v1036
    %vm1059 = vweird.f32 %v1053
    %vm1060 = vmor %vm1058, %vm1059
    %v1061 = vsel %vm1060, %v1053, %v1057
    %v1062 = vand.u32 2147483647, %v1036
    %vm1063 = vcmp.eq.f32.partialorder %v1062, 8.507059e+37
    %v1064 = vand.u32 %v1036, 2147483648
    %v1065 = vor.u32 1.1754944e-38, %v1064
    %v1066 = vsel %vm1063, %v1065, %v1061
    %v1067 = vmul.f32 1.0, %v1066
    %v1068 = vrcp.pop %v1037
    %v1069 = vmul.f32 %v1037, %v1068
    %v1070 = vsub.f32 1.0, %v1069
    %v1071 = vmul.f32 %v1068, %v1070
    %v1072 = vadd.f32 %v1068, %v1071
    %vm1073 = vweird.f32 %v1037
    %vm1074 = vweird.f32 %v1068
    %vm1075 = vmor %vm1073, %vm1074
    %v1076 = vsel %vm1075, %v1068, %v1072
    %v1077 = vand.u32 2147483647, %v1037
    %vm1078 = vcmp.eq.f32.partialorder %v1077, 8.507059e+37
    %v1079 = vand.u32 %v1037, 2147483648
    %v1080 = vor.u32 1.1754944e-38, %v1079
    %v1081 = vsel %vm1078, %v1080, %v1076
    %v1082 = vmul.f32 1.0, %v1081
    %v1083 = vtanh.pop %v1025
    %v1084 = vmul.f32 %v1067, %v932
    %v1085 = vmul.f32 %v1052, %v1083
    %v1086 = vadd.f32 %v1084, %v1085
    %v1087 = vtanh.pop %v1086
    %v1088 = vmul.f32 %v1082, %v1087
    %s1089 = scalar_lea.vmem [#allocation2], 24
    %1090 = vst [vmem:[%s1089] sm:$0xff] %v1088
    %s1091 = scalar_lea.vmem [#allocation3], 128
    %v1092 = vld [vmem:[%s1091] sm:$0xff]
    %v1093 = vld [vmem:[%s1091 + $0x8] sm:$0xff]
    %v1094 = vld [vmem:[%s1091 + $0x10] sm:$0xff]
    %v1095 = vld [vmem:[%s1091 + $0x18] sm:$0xff]
    %1096 = vmatpush.msra.mxu0 %v473
    %1097 = vmatpush.msra.mxu0 %v469
    %1098 = vmatpush.msra.mxu0 %v465
    %1099 = vmatpush.msra.mxu0 %v461
    %1100 = vmatpush.msra.mxu0 %v457
    %1101 = vmatpush.msra.mxu0 %v453
    %1102 = vmatpush.msra.mxu0 %v449
    %1103 = vmatpush.msra.mxu0 %v445
    %1104 = vmatpush.msra.mxu0 %v441
    %1105 = vmatpush.msra.mxu0 %v437
    %1106 = vmatpush.msra.mxu0 %v433
    %1107 = vmatpush.msra.mxu0 %v429
    %1108 = vmatpush.msra.mxu0 %v425
    %1109 = vmatpush.msra.mxu0 %v421
    %1110 = vmatpush.msra.mxu0 %v417
    %1111 = vmatpush.msra.mxu0 %v413
    %1112 = vmatmul.f32.gmra.mxu0 %v1088
    %v1113 = vpop.f32.mrf.mxu0
    %v1114 = vadd.f32 0.0, %v1113
    %1115 = vdwg.mxu0
    %1116 = vmatpush.msra.mxu0 %v474
    %1117 = vmatpush.msra.mxu0 %v470
    %1118 = vmatpush.msra.mxu0 %v466
    %1119 = vmatpush.msra.mxu0 %v462
    %1120 = vmatpush.msra.mxu0 %v458
    %1121 = vmatpush.msra.mxu0 %v454
    %1122 = vmatpush.msra.mxu0 %v450
    %1123 = vmatpush.msra.mxu0 %v446
    %1124 = vmatpush.msra.mxu0 %v442
    %1125 = vmatpush.msra.mxu0 %v438
    %1126 = vmatpush.msra.mxu0 %v434
    %1127 = vmatpush.msra.mxu0 %v430
    %1128 = vmatpush.msra.mxu0 %v426
    %1129 = vmatpush.msra.mxu0 %v422
    %1130 = vmatpush.msra.mxu0 %v418
    %1131 = vmatpush.msra.mxu0 %v414
    %1132 = vmatmul.f32.gmra.mxu0 %v1088
    %v1133 = vpop.f32.mrf.mxu0
    %v1134 = vadd.f32 0.0, %v1133
    %1135 = vdwg.mxu0
    %1136 = vmatpush.msra.mxu0 %v475
    %1137 = vmatpush.msra.mxu0 %v471
    %1138 = vmatpush.msra.mxu0 %v467
    %1139 = vmatpush.msra.mxu0 %v463
    %1140 = vmatpush.msra.mxu0 %v459
    %1141 = vmatpush.msra.mxu0 %v455
    %1142 = vmatpush.msra.mxu0 %v451
    %1143 = vmatpush.msra.mxu0 %v447
    %1144 = vmatpush.msra.mxu0 %v443
    %1145 = vmatpush.msra.mxu0 %v439
    %1146 = vmatpush.msra.mxu0 %v435
    %1147 = vmatpush.msra.mxu0 %v431
    %1148 = vmatpush.msra.mxu0 %v427
    %1149 = vmatpush.msra.mxu0 %v423
    %1150 = vmatpush.msra.mxu0 %v419
    %1151 = vmatpush.msra.mxu0 %v415
    %1152 = vmatmul.f32.gmra.mxu0 %v1088
    %v1153 = vpop.f32.mrf.mxu0
    %v1154 = vadd.f32 0.0, %v1153
    %1155 = vdwg.mxu0
    %1156 = vmatpush.msra.mxu0 %v476
    %1157 = vmatpush.msra.mxu0 %v472
    %1158 = vmatpush.msra.mxu0 %v468
    %1159 = vmatpush.msra.mxu0 %v464
    %1160 = vmatpush.msra.mxu0 %v460
    %1161 = vmatpush.msra.mxu0 %v456
    %1162 = vmatpush.msra.mxu0 %v452
    %1163 = vmatpush.msra.mxu0 %v448
    %1164 = vmatpush.msra.mxu0 %v444
    %1165 = vmatpush.msra.mxu0 %v440
    %1166 = vmatpush.msra.mxu0 %v436
    %1167 = vmatpush.msra.mxu0 %v432
    %1168 = vmatpush.msra.mxu0 %v428
    %1169 = vmatpush.msra.mxu0 %v424
    %1170 = vmatpush.msra.mxu0 %v420
    %1171 = vmatpush.msra.mxu0 %v416
    %1172 = vmatmul.f32.gmra.mxu0 %v1088
    %v1173 = vpop.f32.mrf.mxu0
    %v1174 = vadd.f32 0.0, %v1173
    %1175 = vdwg.mxu0
    %v1176 = vadd.f32 %v1092, %v1114
    %v1177 = vadd.f32 %v1093, %v1134
    %v1178 = vadd.f32 %v1094, %v1154
    %v1179 = vadd.f32 %v1095, %v1174
    %v1180 = vxor.u32 %v1176, 2147483648
    %v1181 = vxor.u32 %v1177, 2147483648
    %v1182 = vxor.u32 %v1178, 2147483648
    %v1183 = vmul.f32 %v1180, 1.442695
    %v1184 = vpow.pop %v1183
    %v1185 = vmul.f32 %v1181, 1.442695
    %v1186 = vpow.pop %v1185
    %v1187 = vmul.f32 %v1182, 1.442695
    %v1188 = vpow.pop %v1187
    %v1189 = vadd.f32 %v1184, 1.0
    %v1190 = vadd.f32 %v1186, 1.0
    %v1191 = vadd.f32 %v1188, 1.0
    %v1192 = vrcp.pop %v1189
    %v1193 = vmul.f32 %v1189, %v1192
    %v1194 = vsub.f32 1.0, %v1193
    %v1195 = vmul.f32 %v1192, %v1194
    %v1196 = vadd.f32 %v1192, %v1195
    %vm1197 = vweird.f32 %v1189
    %vm1198 = vweird.f32 %v1192
    %vm1199 = vmor %vm1197, %vm1198
    %v1200 = vsel %vm1199, %v1192, %v1196
    %v1201 = vand.u32 2147483647, %v1189
    %vm1202 = vcmp.eq.f32.partialorder %v1201, 8.507059e+37
    %v1203 = vand.u32 %v1189, 2147483648
    %v1204 = vor.u32 1.1754944e-38, %v1203
    %v1205 = vsel %vm1202, %v1204, %v1200
    %v1206 = vmul.f32 1.0, %v1205
    %v1207 = vrcp.pop %v1190
    %v1208 = vmul.f32 %v1190, %v1207
    %v1209 = vsub.f32 1.0, %v1208
    %v1210 = vmul.f32 %v1207, %v1209
    %v1211 = vadd.f32 %v1207, %v1210
    %vm1212 = vweird.f32 %v1190
    %vm1213 = vweird.f32 %v1207
    %vm1214 = vmor %vm1212, %vm1213
    %v1215 = vsel %vm1214, %v1207, %v1211
    %v1216 = vand.u32 2147483647, %v1190
    %vm1217 = vcmp.eq.f32.partialorder %v1216, 8.507059e+37
    %v1218 = vand.u32 %v1190, 2147483648
    %v1219 = vor.u32 1.1754944e-38, %v1218
    %v1220 = vsel %vm1217, %v1219, %v1215
    %v1221 = vmul.f32 1.0, %v1220
    %v1222 = vrcp.pop %v1191
    %v1223 = vmul.f32 %v1191, %v1222
    %v1224 = vsub.f32 1.0, %v1223
    %v1225 = vmul.f32 %v1222, %v1224
    %v1226 = vadd.f32 %v1222, %v1225
    %vm1227 = vweird.f32 %v1191
    %vm1228 = vweird.f32 %v1222
    %vm1229 = vmor %vm1227, %vm1228
    %v1230 = vsel %vm1229, %v1222, %v1226
    %v1231 = vand.u32 2147483647, %v1191
    %vm1232 = vcmp.eq.f32.partialorder %v1231, 8.507059e+37
    %v1233 = vand.u32 %v1191, 2147483648
    %v1234 = vor.u32 1.1754944e-38, %v1233
    %v1235 = vsel %vm1232, %v1234, %v1230
    %v1236 = vmul.f32 1.0, %v1235
    %v1237 = vtanh.pop %v1179
    %v1238 = vmul.f32 %v1221, %v1086
    %v1239 = vmul.f32 %v1206, %v1237
    %v1240 = vadd.f32 %v1238, %v1239
    %v1241 = vtanh.pop %v1240
    %v1242 = vmul.f32 %v1236, %v1241
    %s1243 = scalar_lea.vmem [#allocation2], 32
    %1244 = vst [vmem:[%s1243] sm:$0xff] %v1242
    %s1245 = scalar_lea.vmem [#allocation3], 160
    %v1246 = vld [vmem:[%s1245] sm:$0xff]
    %v1247 = vld [vmem:[%s1245 + $0x8] sm:$0xff]
    %v1248 = vld [vmem:[%s1245 + $0x10] sm:$0xff]
    %v1249 = vld [vmem:[%s1245 + $0x18] sm:$0xff]
    %1250 = vmatpush.msra.mxu0 %v473
    %1251 = vmatpush.msra.mxu0 %v469
    %1252 = vmatpush.msra.mxu0 %v465
    %1253 = vmatpush.msra.mxu0 %v461
    %1254 = vmatpush.msra.mxu0 %v457
    %1255 = vmatpush.msra.mxu0 %v453
    %1256 = vmatpush.msra.mxu0 %v449
    %1257 = vmatpush.msra.mxu0 %v445
    %1258 = vmatpush.msra.mxu0 %v441
    %1259 = vmatpush.msra.mxu0 %v437
    %1260 = vmatpush.msra.mxu0 %v433
    %1261 = vmatpush.msra.mxu0 %v429
    %1262 = vmatpush.msra.mxu0 %v425
    %1263 = vmatpush.msra.mxu0 %v421
    %1264 = vmatpush.msra.mxu0 %v417
    %1265 = vmatpush.msra.mxu0 %v413
    %1266 = vmatmul.f32.gmra.mxu0 %v1242
    %v1267 = vpop.f32.mrf.mxu0
    %v1268 = vadd.f32 0.0, %v1267
    %1269 = vdwg.mxu0
    %1270 = vmatpush.msra.mxu0 %v474
    %1271 = vmatpush.msra.mxu0 %v470
    %1272 = vmatpush.msra.mxu0 %v466
    %1273 = vmatpush.msra.mxu0 %v462
    %1274 = vmatpush.msra.mxu0 %v458
    %1275 = vmatpush.msra.mxu0 %v454
    %1276 = vmatpush.msra.mxu0 %v450
    %1277 = vmatpush.msra.mxu0 %v446
    %1278 = vmatpush.msra.mxu0 %v442
    %1279 = vmatpush.msra.mxu0 %v438
    %1280 = vmatpush.msra.mxu0 %v434
    %1281 = vmatpush.msra.mxu0 %v430
    %1282 = vmatpush.msra.mxu0 %v426
    %1283 = vmatpush.msra.mxu0 %v422
    %1284 = vmatpush.msra.mxu0 %v418
    %1285 = vmatpush.msra.mxu0 %v414
    %1286 = vmatmul.f32.gmra.mxu0 %v1242
    %v1287 = vpop.f32.mrf.mxu0
    %v1288 = vadd.f32 0.0, %v1287
    %1289 = vdwg.mxu0
    %1290 = vmatpush.msra.mxu0 %v475
    %1291 = vmatpush.msra.mxu0 %v471
    %1292 = vmatpush.msra.mxu0 %v467
    %1293 = vmatpush.msra.mxu0 %v463
    %1294 = vmatpush.msra.mxu0 %v459
    %1295 = vmatpush.msra.mxu0 %v455
    %1296 = vmatpush.msra.mxu0 %v451
    %1297 = vmatpush.msra.mxu0 %v447
    %1298 = vmatpush.msra.mxu0 %v443
    %1299 = vmatpush.msra.mxu0 %v439
    %1300 = vmatpush.msra.mxu0 %v435
    %1301 = vmatpush.msra.mxu0 %v431
    %1302 = vmatpush.msra.mxu0 %v427
    %1303 = vmatpush.msra.mxu0 %v423
    %1304 = vmatpush.msra.mxu0 %v419
    %1305 = vmatpush.msra.mxu0 %v415
    %1306 = vmatmul.f32.gmra.mxu0 %v1242
    %v1307 = vpop.f32.mrf.mxu0
    %v1308 = vadd.f32 0.0, %v1307
    %1309 = vdwg.mxu0
    %1310 = vmatpush.msra.mxu0 %v476
    %1311 = vmatpush.msra.mxu0 %v472
    %1312 = vmatpush.msra.mxu0 %v468
    %1313 = vmatpush.msra.mxu0 %v464
    %1314 = vmatpush.msra.mxu0 %v460
    %1315 = vmatpush.msra.mxu0 %v456
    %1316 = vmatpush.msra.mxu0 %v452
    %1317 = vmatpush.msra.mxu0 %v448
    %1318 = vmatpush.msra.mxu0 %v444
    %1319 = vmatpush.msra.mxu0 %v440
    %1320 = vmatpush.msra.mxu0 %v436
    %1321 = vmatpush.msra.mxu0 %v432
    %1322 = vmatpush.msra.mxu0 %v428
    %1323 = vmatpush.msra.mxu0 %v424
    %1324 = vmatpush.msra.mxu0 %v420
    %1325 = vmatpush.msra.mxu0 %v416
    %1326 = vmatmul.f32.gmra.mxu0 %v1242
    %v1327 = vpop.f32.mrf.mxu0
    %v1328 = vadd.f32 0.0, %v1327
    %1329 = vdwg.mxu0
    %v1330 = vadd.f32 %v1246, %v1268
    %v1331 = vadd.f32 %v1247, %v1288
    %v1332 = vadd.f32 %v1248, %v1308
    %v1333 = vadd.f32 %v1249, %v1328
    %v1334 = vxor.u32 %v1330, 2147483648
    %v1335 = vxor.u32 %v1331, 2147483648
    %v1336 = vxor.u32 %v1332, 2147483648
    %v1337 = vmul.f32 %v1334, 1.442695
    %v1338 = vpow.pop %v1337
    %v1339 = vmul.f32 %v1335, 1.442695
    %v1340 = vpow.pop %v1339
    %v1341 = vmul.f32 %v1336, 1.442695
    %v1342 = vpow.pop %v1341
    %v1343 = vadd.f32 %v1338, 1.0
    %v1344 = vadd.f32 %v1340, 1.0
    %v1345 = vadd.f32 %v1342, 1.0
    %v1346 = vrcp.pop %v1343
    %v1347 = vmul.f32 %v1343, %v1346
    %v1348 = vsub.f32 1.0, %v1347
    %v1349 = vmul.f32 %v1346, %v1348
    %v1350 = vadd.f32 %v1346, %v1349
    %vm1351 = vweird.f32 %v1343
    %vm1352 = vweird.f32 %v1346
    %vm1353 = vmor %vm1351, %vm1352
    %v1354 = vsel %vm1353, %v1346, %v1350
    %v1355 = vand.u32 2147483647, %v1343
    %vm1356 = vcmp.eq.f32.partialorder %v1355, 8.507059e+37
    %v1357 = vand.u32 %v1343, 2147483648
    %v1358 = vor.u32 1.1754944e-38, %v1357
    %v1359 = vsel %vm1356, %v1358, %v1354
    %v1360 = vmul.f32 1.0, %v1359
    %v1361 = vrcp.pop %v1344
    %v1362 = vmul.f32 %v1344, %v1361
    %v1363 = vsub.f32 1.0, %v1362
    %v1364 = vmul.f32 %v1361, %v1363
    %v1365 = vadd.f32 %v1361, %v1364
    %vm1366 = vweird.f32 %v1344
    %vm1367 = vweird.f32 %v1361
    %vm1368 = vmor %vm1366, %vm1367
    %v1369 = vsel %vm1368, %v1361, %v1365
    %v1370 = vand.u32 2147483647, %v1344
    %vm1371 = vcmp.eq.f32.partialorder %v1370, 8.507059e+37
    %v1372 = vand.u32 %v1344, 2147483648
    %v1373 = vor.u32 1.1754944e-38, %v1372
    %v1374 = vsel %vm1371, %v1373, %v1369
    %v1375 = vmul.f32 1.0, %v1374
    %v1376 = vrcp.pop %v1345
    %v1377 = vmul.f32 %v1345, %v1376
    %v1378 = vsub.f32 1.0, %v1377
    %v1379 = vmul.f32 %v1376, %v1378
    %v1380 = vadd.f32 %v1376, %v1379
    %vm1381 = vweird.f32 %v1345
    %vm1382 = vweird.f32 %v1376
    %vm1383 = vmor %vm1381, %vm1382
    %v1384 = vsel %vm1383, %v1376, %v1380
    %v1385 = vand.u32 2147483647, %v1345
    %vm1386 = vcmp.eq.f32.partialorder %v1385, 8.507059e+37
    %v1387 = vand.u32 %v1345, 2147483648
    %v1388 = vor.u32 1.1754944e-38, %v1387
    %v1389 = vsel %vm1386, %v1388, %v1384
    %v1390 = vmul.f32 1.0, %v1389
    %v1391 = vtanh.pop %v1333
    %v1392 = vmul.f32 %v1375, %v1240
    %v1393 = vmul.f32 %v1360, %v1391
    %v1394 = vadd.f32 %v1392, %v1393
    %v1395 = vtanh.pop %v1394
    %v1396 = vmul.f32 %v1390, %v1395
    %s1397 = scalar_lea.vmem [#allocation2], 40
    %1398 = vst [vmem:[%s1397] sm:$0xff] %v1396
    %s1399 = scalar_lea.vmem [#allocation3], 192
    %v1400 = vld [vmem:[%s1399] sm:$0xff]
    %v1401 = vld [vmem:[%s1399 + $0x8] sm:$0xff]
    %v1402 = vld [vmem:[%s1399 + $0x10] sm:$0xff]
    %v1403 = vld [vmem:[%s1399 + $0x18] sm:$0xff]
    %1404 = vmatpush.msra.mxu0 %v473
    %1405 = vmatpush.msra.mxu0 %v469
    %1406 = vmatpush.msra.mxu0 %v465
    %1407 = vmatpush.msra.mxu0 %v461
    %1408 = vmatpush.msra.mxu0 %v457
    %1409 = vmatpush.msra.mxu0 %v453
    %1410 = vmatpush.msra.mxu0 %v449
    %1411 = vmatpush.msra.mxu0 %v445
    %1412 = vmatpush.msra.mxu0 %v441
    %1413 = vmatpush.msra.mxu0 %v437
    %1414 = vmatpush.msra.mxu0 %v433
    %1415 = vmatpush.msra.mxu0 %v429
    %1416 = vmatpush.msra.mxu0 %v425
    %1417 = vmatpush.msra.mxu0 %v421
    %1418 = vmatpush.msra.mxu0 %v417
    %1419 = vmatpush.msra.mxu0 %v413
    %1420 = vmatmul.f32.gmra.mxu0 %v1396
    %v1421 = vpop.f32.mrf.mxu0
    %v1422 = vadd.f32 0.0, %v1421
    %1423 = vdwg.mxu0
    %1424 = vmatpush.msra.mxu0 %v474
    %1425 = vmatpush.msra.mxu0 %v470
    %1426 = vmatpush.msra.mxu0 %v466
    %1427 = vmatpush.msra.mxu0 %v462
    %1428 = vmatpush.msra.mxu0 %v458
    %1429 = vmatpush.msra.mxu0 %v454
    %1430 = vmatpush.msra.mxu0 %v450
    %1431 = vmatpush.msra.mxu0 %v446
    %1432 = vmatpush.msra.mxu0 %v442
    %1433 = vmatpush.msra.mxu0 %v438
    %1434 = vmatpush.msra.mxu0 %v434
    %1435 = vmatpush.msra.mxu0 %v430
    %1436 = vmatpush.msra.mxu0 %v426
    %1437 = vmatpush.msra.mxu0 %v422
    %1438 = vmatpush.msra.mxu0 %v418
    %1439 = vmatpush.msra.mxu0 %v414
    %1440 = vmatmul.f32.gmra.mxu0 %v1396
    %v1441 = vpop.f32.mrf.mxu0
    %v1442 = vadd.f32 0.0, %v1441
    %1443 = vdwg.mxu0
    %1444 = vmatpush.msra.mxu0 %v475
    %1445 = vmatpush.msra.mxu0 %v471
    %1446 = vmatpush.msra.mxu0 %v467
    %1447 = vmatpush.msra.mxu0 %v463
    %1448 = vmatpush.msra.mxu0 %v459
    %1449 = vmatpush.msra.mxu0 %v455
    %1450 = vmatpush.msra.mxu0 %v451
    %1451 = vmatpush.msra.mxu0 %v447
    %1452 = vmatpush.msra.mxu0 %v443
    %1453 = vmatpush.msra.mxu0 %v439
    %1454 = vmatpush.msra.mxu0 %v435
    %1455 = vmatpush.msra.mxu0 %v431
    %1456 = vmatpush.msra.mxu0 %v427
    %1457 = vmatpush.msra.mxu0 %v423
    %1458 = vmatpush.msra.mxu0 %v419
    %1459 = vmatpush.msra.mxu0 %v415
    %1460 = vmatmul.f32.gmra.mxu0 %v1396
    %v1461 = vpop.f32.mrf.mxu0
    %v1462 = vadd.f32 0.0, %v1461
    %1463 = vdwg.mxu0
    %1464 = vmatpush.msra.mxu0 %v476
    %1465 = vmatpush.msra.mxu0 %v472
    %1466 = vmatpush.msra.mxu0 %v468
    %1467 = vmatpush.msra.mxu0 %v464
    %1468 = vmatpush.msra.mxu0 %v460
    %1469 = vmatpush.msra.mxu0 %v456
    %1470 = vmatpush.msra.mxu0 %v452
    %1471 = vmatpush.msra.mxu0 %v448
    %1472 = vmatpush.msra.mxu0 %v444
    %1473 = vmatpush.msra.mxu0 %v440
    %1474 = vmatpush.msra.mxu0 %v436
    %1475 = vmatpush.msra.mxu0 %v432
    %1476 = vmatpush.msra.mxu0 %v428
    %1477 = vmatpush.msra.mxu0 %v424
    %1478 = vmatpush.msra.mxu0 %v420
    %1479 = vmatpush.msra.mxu0 %v416
    %1480 = vmatmul.f32.gmra.mxu0 %v1396
    %v1481 = vpop.f32.mrf.mxu0
    %v1482 = vadd.f32 0.0, %v1481
    %1483 = vdwg.mxu0
    %v1484 = vadd.f32 %v1400, %v1422
    %v1485 = vadd.f32 %v1401, %v1442
    %v1486 = vadd.f32 %v1402, %v1462
    %v1487 = vadd.f32 %v1403, %v1482
    %v1488 = vxor.u32 %v1484, 2147483648
    %v1489 = vxor.u32 %v1485, 2147483648
    %v1490 = vxor.u32 %v1486, 2147483648
    %v1491 = vmul.f32 %v1488, 1.442695
    %v1492 = vpow.pop %v1491
    %v1493 = vmul.f32 %v1489, 1.442695
    %v1494 = vpow.pop %v1493
    %v1495 = vmul.f32 %v1490, 1.442695
    %v1496 = vpow.pop %v1495
    %v1497 = vadd.f32 %v1492, 1.0
    %v1498 = vadd.f32 %v1494, 1.0
    %v1499 = vadd.f32 %v1496, 1.0
    %v1500 = vrcp.pop %v1497
    %v1501 = vmul.f32 %v1497, %v1500
    %v1502 = vsub.f32 1.0, %v1501
    %v1503 = vmul.f32 %v1500, %v1502
    %v1504 = vadd.f32 %v1500, %v1503
    %vm1505 = vweird.f32 %v1497
    %vm1506 = vweird.f32 %v1500
    %vm1507 = vmor %vm1505, %vm1506
    %v1508 = vsel %vm1507, %v1500, %v1504
    %v1509 = vand.u32 2147483647, %v1497
    %vm1510 = vcmp.eq.f32.partialorder %v1509, 8.507059e+37
    %v1511 = vand.u32 %v1497, 2147483648
    %v1512 = vor.u32 1.1754944e-38, %v1511
    %v1513 = vsel %vm1510, %v1512, %v1508
    %v1514 = vmul.f32 1.0, %v1513
    %v1515 = vrcp.pop %v1498
    %v1516 = vmul.f32 %v1498, %v1515
    %v1517 = vsub.f32 1.0, %v1516
    %v1518 = vmul.f32 %v1515, %v1517
    %v1519 = vadd.f32 %v1515, %v1518
    %vm1520 = vweird.f32 %v1498
    %vm1521 = vweird.f32 %v1515
    %vm1522 = vmor %vm1520, %vm1521
    %v1523 = vsel %vm1522, %v1515, %v1519
    %v1524 = vand.u32 2147483647, %v1498
    %vm1525 = vcmp.eq.f32.partialorder %v1524, 8.507059e+37
    %v1526 = vand.u32 %v1498, 2147483648
    %v1527 = vor.u32 1.1754944e-38, %v1526
    %v1528 = vsel %vm1525, %v1527, %v1523
    %v1529 = vmul.f32 1.0, %v1528
    %v1530 = vrcp.pop %v1499
    %v1531 = vmul.f32 %v1499, %v1530
    %v1532 = vsub.f32 1.0, %v1531
    %v1533 = vmul.f32 %v1530, %v1532
    %v1534 = vadd.f32 %v1530, %v1533
    %vm1535 = vweird.f32 %v1499
    %vm1536 = vweird.f32 %v1530
    %vm1537 = vmor %vm1535, %vm1536
    %v1538 = vsel %vm1537, %v1530, %v1534
    %v1539 = vand.u32 2147483647, %v1499
    %vm1540 = vcmp.eq.f32.partialorder %v1539, 8.507059e+37
    %v1541 = vand.u32 %v1499, 2147483648
    %v1542 = vor.u32 1.1754944e-38, %v1541
    %v1543 = vsel %vm1540, %v1542, %v1538
    %v1544 = vmul.f32 1.0, %v1543
    %v1545 = vtanh.pop %v1487
    %v1546 = vmul.f32 %v1529, %v1394
    %v1547 = vmul.f32 %v1514, %v1545
    %v1548 = vadd.f32 %v1546, %v1547
    %v1549 = vtanh.pop %v1548
    %v1550 = vmul.f32 %v1544, %v1549
    %s1551 = scalar_lea.vmem [#allocation2], 48
    %1552 = vst [vmem:[%s1551] sm:$0xff] %v1550
    %s1553 = scalar_lea.vmem [#allocation3], 224
    %v1554 = vld [vmem:[%s1553] sm:$0xff]
    %v1555 = vld [vmem:[%s1553 + $0x8] sm:$0xff]
    %v1556 = vld [vmem:[%s1553 + $0x10] sm:$0xff]
    %v1557 = vld [vmem:[%s1553 + $0x18] sm:$0xff]
    %1558 = vmatpush.msra.mxu0 %v473
    %1559 = vmatpush.msra.mxu0 %v469
    %1560 = vmatpush.msra.mxu0 %v465
    %1561 = vmatpush.msra.mxu0 %v461
    %1562 = vmatpush.msra.mxu0 %v457
    %1563 = vmatpush.msra.mxu0 %v453
    %1564 = vmatpush.msra.mxu0 %v449
    %1565 = vmatpush.msra.mxu0 %v445
    %1566 = vmatpush.msra.mxu0 %v441
    %1567 = vmatpush.msra.mxu0 %v437
    %1568 = vmatpush.msra.mxu0 %v433
    %1569 = vmatpush.msra.mxu0 %v429
    %1570 = vmatpush.msra.mxu0 %v425
    %1571 = vmatpush.msra.mxu0 %v421
    %1572 = vmatpush.msra.mxu0 %v417
    %1573 = vmatpush.msra.mxu0 %v413
    %1574 = vmatmul.f32.gmra.mxu0 %v1550
    %v1575 = vpop.f32.mrf.mxu0
    %v1576 = vadd.f32 0.0, %v1575
    %1577 = vdwg.mxu0
    %1578 = vmatpush.msra.mxu0 %v474
    %1579 = vmatpush.msra.mxu0 %v470
    %1580 = vmatpush.msra.mxu0 %v466
    %1581 = vmatpush.msra.mxu0 %v462
    %1582 = vmatpush.msra.mxu0 %v458
    %1583 = vmatpush.msra.mxu0 %v454
    %1584 = vmatpush.msra.mxu0 %v450
    %1585 = vmatpush.msra.mxu0 %v446
    %1586 = vmatpush.msra.mxu0 %v442
    %1587 = vmatpush.msra.mxu0 %v438
    %1588 = vmatpush.msra.mxu0 %v434
    %1589 = vmatpush.msra.mxu0 %v430
    %1590 = vmatpush.msra.mxu0 %v426
    %1591 = vmatpush.msra.mxu0 %v422
    %1592 = vmatpush.msra.mxu0 %v418
    %1593 = vmatpush.msra.mxu0 %v414
    %1594 = vmatmul.f32.gmra.mxu0 %v1550
    %v1595 = vpop.f32.mrf.mxu0
    %v1596 = vadd.f32 0.0, %v1595
    %1597 = vdwg.mxu0
    %1598 = vmatpush.msra.mxu0 %v475
    %1599 = vmatpush.msra.mxu0 %v471
    %1600 = vmatpush.msra.mxu0 %v467
    %1601 = vmatpush.msra.mxu0 %v463
    %1602 = vmatpush.msra.mxu0 %v459
    %1603 = vmatpush.msra.mxu0 %v455
    %1604 = vmatpush.msra.mxu0 %v451
    %1605 = vmatpush.msra.mxu0 %v447
    %1606 = vmatpush.msra.mxu0 %v443
    %1607 = vmatpush.msra.mxu0 %v439
    %1608 = vmatpush.msra.mxu0 %v435
    %1609 = vmatpush.msra.mxu0 %v431
    %1610 = vmatpush.msra.mxu0 %v427
    %1611 = vmatpush.msra.mxu0 %v423
    %1612 = vmatpush.msra.mxu0 %v419
    %1613 = vmatpush.msra.mxu0 %v415
    %1614 = vmatmul.f32.gmra.mxu0 %v1550
    %v1615 = vpop.f32.mrf.mxu0
    %v1616 = vadd.f32 0.0, %v1615
    %1617 = vdwg.mxu0
    %1618 = vmatpush.msra.mxu0 %v476
    %1619 = vmatpush.msra.mxu0 %v472
    %1620 = vmatpush.msra.mxu0 %v468
    %1621 = vmatpush.msra.mxu0 %v464
    %1622 = vmatpush.msra.mxu0 %v460
    %1623 = vmatpush.msra.mxu0 %v456
    %1624 = vmatpush.msra.mxu0 %v452
    %1625 = vmatpush.msra.mxu0 %v448
    %1626 = vmatpush.msra.mxu0 %v444
    %1627 = vmatpush.msra.mxu0 %v440
    %1628 = vmatpush.msra.mxu0 %v436
    %1629 = vmatpush.msra.mxu0 %v432
    %1630 = vmatpush.msra.mxu0 %v428
    %1631 = vmatpush.msra.mxu0 %v424
    %1632 = vmatpush.msra.mxu0 %v420
    %1633 = vmatpush.msra.mxu0 %v416
    %1634 = vmatmul.f32.gmra.mxu0 %v1550
    %v1635 = vpop.f32.mrf.mxu0
    %v1636 = vadd.f32 0.0, %v1635
    %1637 = vdwg.mxu0
    %v1638 = vadd.f32 %v1554, %v1576
    %v1639 = vadd.f32 %v1555, %v1596
    %v1640 = vadd.f32 %v1556, %v1616
    %v1641 = vadd.f32 %v1557, %v1636
    %v1642 = vxor.u32 %v1638, 2147483648
    %v1643 = vxor.u32 %v1639, 2147483648
    %v1644 = vxor.u32 %v1640, 2147483648
    %v1645 = vmul.f32 %v1642, 1.442695
    %v1646 = vpow.pop %v1645
    %v1647 = vmul.f32 %v1643, 1.442695
    %v1648 = vpow.pop %v1647
    %v1649 = vmul.f32 %v1644, 1.442695
    %v1650 = vpow.pop %v1649
    %v1651 = vadd.f32 %v1646, 1.0
    %v1652 = vadd.f32 %v1648, 1.0
    %v1653 = vadd.f32 %v1650, 1.0
    %v1654 = vrcp.pop %v1651
    %v1655 = vmul.f32 %v1651, %v1654
    %v1656 = vsub.f32 1.0, %v1655
    %v1657 = vmul.f32 %v1654, %v1656
    %v1658 = vadd.f32 %v1654, %v1657
    %vm1659 = vweird.f32 %v1651
    %vm1660 = vweird.f32 %v1654
    %vm1661 = vmor %vm1659, %vm1660
    %v1662 = vsel %vm1661, %v1654, %v1658
    %v1663 = vand.u32 2147483647, %v1651
    %vm1664 = vcmp.eq.f32.partialorder %v1663, 8.507059e+37
    %v1665 = vand.u32 %v1651, 2147483648
    %v1666 = vor.u32 1.1754944e-38, %v1665
    %v1667 = vsel %vm1664, %v1666, %v1662
    %v1668 = vmul.f32 1.0, %v1667
    %v1669 = vrcp.pop %v1652
    %v1670 = vmul.f32 %v1652, %v1669
    %v1671 = vsub.f32 1.0, %v1670
    %v1672 = vmul.f32 %v1669, %v1671
    %v1673 = vadd.f32 %v1669, %v1672
    %vm1674 = vweird.f32 %v1652
    %vm1675 = vweird.f32 %v1669
    %vm1676 = vmor %vm1674, %vm1675
    %v1677 = vsel %vm1676, %v1669, %v1673
    %v1678 = vand.u32 2147483647, %v1652
    %vm1679 = vcmp.eq.f32.partialorder %v1678, 8.507059e+37
    %v1680 = vand.u32 %v1652, 2147483648
    %v1681 = vor.u32 1.1754944e-38, %v1680
    %v1682 = vsel %vm1679, %v1681, %v1677
    %v1683 = vmul.f32 1.0, %v1682
    %v1684 = vrcp.pop %v1653
    %v1685 = vmul.f32 %v1653, %v1684
    %v1686 = vsub.f32 1.0, %v1685
    %v1687 = vmul.f32 %v1684, %v1686
    %v1688 = vadd.f32 %v1684, %v1687
    %vm1689 = vweird.f32 %v1653
    %vm1690 = vweird.f32 %v1684
    %vm1691 = vmor %vm1689, %vm1690
    %v1692 = vsel %vm1691, %v1684, %v1688
    %v1693 = vand.u32 2147483647, %v1653
    %vm1694 = vcmp.eq.f32.partialorder %v1693, 8.507059e+37
    %v1695 = vand.u32 %v1653, 2147483648
    %v1696 = vor.u32 1.1754944e-38, %v1695
    %v1697 = vsel %vm1694, %v1696, %v1692
    %v1698 = vmul.f32 1.0, %v1697
    %v1699 = vtanh.pop %v1641
    %v1700 = vmul.f32 %v1683, %v1548
    %v1701 = vmul.f32 %v1668, %v1699
    %v1702 = vadd.f32 %v1700, %v1701
    %v1703 = vtanh.pop %v1702
    %v1704 = vmul.f32 %v1698, %v1703
    %s1705 = scalar_lea.vmem [#allocation2], 56
    %1706 = vst [vmem:[%s1705] sm:$0xff] %v1704
    %v1707 = vld [vmem:[#allocation2] sm:$0xff]
    %v1708 = vld [vmem:[#allocation2 + $0x8] sm:$0xff]
    %v1709 = vld [vmem:[#allocation2 + $0x10] sm:$0xff]
    %v1710 = vld [vmem:[#allocation2 + $0x18] sm:$0xff]
    %v1711 = vld [vmem:[#allocation2 + $0x20] sm:$0xff]
    %v1712 = vld [vmem:[#allocation2 + $0x28] sm:$0xff]
    %v1713 = vld [vmem:[#allocation2 + $0x30] sm:$0xff]
    %v1714 = vld [vmem:[#allocation2 + $0x38] sm:$0xff]
    %v1715 = vld [vmem:[#allocation8] sm:$0xff]
    %v1716 = vld [vmem:[#allocation8 + $0x8] sm:$0xff]
    %v1717 = vld [vmem:[#allocation8 + $0x10] sm:$0xff]
    %v1718 = vld [vmem:[#allocation8 + $0x18] sm:$0xff]
    %v1719 = vld [vmem:[#allocation8 + $0x20] sm:$0xff]
    %v1720 = vld [vmem:[#allocation8 + $0x28] sm:$0xff]
    %v1721 = vld [vmem:[#allocation8 + $0x30] sm:$0xff]
    %v1722 = vld [vmem:[#allocation8 + $0x38] sm:$0xff]
    %v1723 = vld [vmem:[#allocation8 + $0x40] sm:$0xff]
    %v1724 = vld [vmem:[#allocation8 + $0x48] sm:$0xff]
    %v1725 = vld [vmem:[#allocation8 + $0x50] sm:$0xff]
    %v1726 = vld [vmem:[#allocation8 + $0x58] sm:$0xff]
    %v1727 = vld [vmem:[#allocation8 + $0x60] sm:$0xff]
    %v1728 = vld [vmem:[#allocation8 + $0x68] sm:$0xff]
    %v1729 = vld [vmem:[#allocation8 + $0x70] sm:$0xff]
    %v1730 = vld [vmem:[#allocation8 + $0x78] sm:$0xff]
    %v1731 = vld [vmem:[#allocation8 + $0x80] sm:$0xff]
    %v1732 = vld [vmem:[#allocation8 + $0x88] sm:$0xff]
    %v1733 = vld [vmem:[#allocation8 + $0x90] sm:$0xff]
    %v1734 = vld [vmem:[#allocation8 + $0x98] sm:$0xff]
    %v1735 = vld [vmem:[#allocation8 + $0xa0] sm:$0xff]
    %v1736 = vld [vmem:[#allocation8 + $0xa8] sm:$0xff]
    %v1737 = vld [vmem:[#allocation8 + $0xb0] sm:$0xff]
    %v1738 = vld [vmem:[#allocation8 + $0xb8] sm:$0xff]
    %v1739 = vld [vmem:[#allocation8 + $0xc0] sm:$0xff]
    %v1740 = vld [vmem:[#allocation8 + $0xc8] sm:$0xff]
    %v1741 = vld [vmem:[#allocation8 + $0xd0] sm:$0xff]
    %v1742 = vld [vmem:[#allocation8 + $0xd8] sm:$0xff]
    %v1743 = vld [vmem:[#allocation8 + $0xe0] sm:$0xff]
    %v1744 = vld [vmem:[#allocation8 + $0xe8] sm:$0xff]
    %v1745 = vld [vmem:[#allocation8 + $0xf0] sm:$0xff]
    %v1746 = vld [vmem:[#allocation8 + $0xf8] sm:$0xff]
    %v1747 = vld [vmem:[#allocation8 + $0x100] sm:$0xff]
    %v1748 = vld [vmem:[#allocation8 + $0x108] sm:$0xff]
    %v1749 = vld [vmem:[#allocation8 + $0x110] sm:$0xff]
    %v1750 = vld [vmem:[#allocation8 + $0x118] sm:$0xff]
    %v1751 = vld [vmem:[#allocation8 + $0x120] sm:$0xff]
    %v1752 = vld [vmem:[#allocation8 + $0x128] sm:$0xff]
    %v1753 = vld [vmem:[#allocation8 + $0x130] sm:$0xff]
    %v1754 = vld [vmem:[#allocation8 + $0x138] sm:$0xff]
    %v1755 = vld [vmem:[#allocation8 + $0x140] sm:$0xff]
    %v1756 = vld [vmem:[#allocation8 + $0x148] sm:$0xff]
    %v1757 = vld [vmem:[#allocation8 + $0x150] sm:$0xff]
    %v1758 = vld [vmem:[#allocation8 + $0x158] sm:$0xff]
    %v1759 = vld [vmem:[#allocation8 + $0x160] sm:$0xff]
    %v1760 = vld [vmem:[#allocation8 + $0x168] sm:$0xff]
    %v1761 = vld [vmem:[#allocation8 + $0x170] sm:$0xff]
    %v1762 = vld [vmem:[#allocation8 + $0x178] sm:$0xff]
    %v1763 = vld [vmem:[#allocation8 + $0x180] sm:$0xff]
    %v1764 = vld [vmem:[#allocation8 + $0x188] sm:$0xff]
    %v1765 = vld [vmem:[#allocation8 + $0x190] sm:$0xff]
    %v1766 = vld [vmem:[#allocation8 + $0x198] sm:$0xff]
    %v1767 = vld [vmem:[#allocation8 + $0x1a0] sm:$0xff]
    %v1768 = vld [vmem:[#allocation8 + $0x1a8] sm:$0xff]
    %v1769 = vld [vmem:[#allocation8 + $0x1b0] sm:$0xff]
    %v1770 = vld [vmem:[#allocation8 + $0x1b8] sm:$0xff]
    %v1771 = vld [vmem:[#allocation8 + $0x1c0] sm:$0xff]
    %v1772 = vld [vmem:[#allocation8 + $0x1c8] sm:$0xff]
    %v1773 = vld [vmem:[#allocation8 + $0x1d0] sm:$0xff]
    %v1774 = vld [vmem:[#allocation8 + $0x1d8] sm:$0xff]
    %v1775 = vld [vmem:[#allocation8 + $0x1e0] sm:$0xff]
    %v1776 = vld [vmem:[#allocation8 + $0x1e8] sm:$0xff]
    %v1777 = vld [vmem:[#allocation8 + $0x1f0] sm:$0xff]
    %v1778 = vld [vmem:[#allocation8 + $0x1f8] sm:$0xff]
    %v1779 = vld [vmem:[%s6] sm:$0xf]
    %v1781 = vperm.slane %v1779, 0
    %v1782 = vperm.slane %v1779, 1
    %v1783 = vperm.slane %v1779, 2
    %v1784 = vperm.slane %v1779, 3
    %1789 = vmatpush.msra.mxu0 %v1775
    %1790 = vmatpush.msra.mxu0 %v1771
    %1791 = vmatpush.msra.mxu0 %v1767
    %1792 = vmatpush.msra.mxu0 %v1763
    %1793 = vmatpush.msra.mxu0 %v1759
    %1794 = vmatpush.msra.mxu0 %v1755
    %1795 = vmatpush.msra.mxu0 %v1751
    %1796 = vmatpush.msra.mxu0 %v1747
    %1797 = vmatpush.msra.mxu0 %v1743
    %1798 = vmatpush.msra.mxu0 %v1739
    %1799 = vmatpush.msra.mxu0 %v1735
    %1800 = vmatpush.msra.mxu0 %v1731
    %1801 = vmatpush.msra.mxu0 %v1727
    %1802 = vmatpush.msra.mxu0 %v1723
    %1803 = vmatpush.msra.mxu0 %v1719
    %1804 = vmatpush.msra.mxu0 %v1715
    %1805 = vmatmul.f32.gmra.mxu0 %v1707
    %v1806 = vpop.f32.mrf.mxu0
    %v1807 = vadd.f32 %v1781, %v1806
    %1808 = vmatmul.f32.gmra.mxu0 %v1708
    %v1809 = vpop.f32.mrf.mxu0
    %v1810 = vadd.f32 %v1781, %v1809
    %1811 = vmatmul.f32.gmra.mxu0 %v1709
    %v1812 = vpop.f32.mrf.mxu0
    %v1813 = vadd.f32 %v1781, %v1812
    %1814 = vmatmul.f32.gmra.mxu0 %v1710
    %v1815 = vpop.f32.mrf.mxu0
    %v1816 = vadd.f32 %v1781, %v1815
    %1817 = vmatmul.f32.gmra.mxu0 %v1711
    %v1818 = vpop.f32.mrf.mxu0
    %v1819 = vadd.f32 %v1781, %v1818
    %1820 = vmatmul.f32.gmra.mxu0 %v1712
    %v1821 = vpop.f32.mrf.mxu0
    %v1822 = vadd.f32 %v1781, %v1821
    %1823 = vmatmul.f32.gmra.mxu0 %v1713
    %v1824 = vpop.f32.mrf.mxu0
    %v1825 = vadd.f32 %v1781, %v1824
    %1826 = vmatmul.f32.gmra.mxu0 %v1714
    %v1827 = vpop.f32.mrf.mxu0
    %v1828 = vadd.f32 %v1781, %v1827
    %1829 = vdwg.mxu0
    %1830 = vmatpush.msra.mxu0 %v1776
    %1831 = vmatpush.msra.mxu0 %v1772
    %1832 = vmatpush.msra.mxu0 %v1768
    %1833 = vmatpush.msra.mxu0 %v1764
    %1834 = vmatpush.msra.mxu0 %v1760
    %1835 = vmatpush.msra.mxu0 %v1756
    %1836 = vmatpush.msra.mxu0 %v1752
    %1837 = vmatpush.msra.mxu0 %v1748
    %1838 = vmatpush.msra.mxu0 %v1744
    %1839 = vmatpush.msra.mxu0 %v1740
    %1840 = vmatpush.msra.mxu0 %v1736
    %1841 = vmatpush.msra.mxu0 %v1732
    %1842 = vmatpush.msra.mxu0 %v1728
    %1843 = vmatpush.msra.mxu0 %v1724
    %1844 = vmatpush.msra.mxu0 %v1720
    %1845 = vmatpush.msra.mxu0 %v1716
    %1846 = vmatmul.f32.gmra.mxu0 %v1707
    %v1847 = vpop.f32.mrf.mxu0
    %v1848 = vadd.f32 %v1782, %v1847
    %1849 = vmatmul.f32.gmra.mxu0 %v1708
    %v1850 = vpop.f32.mrf.mxu0
    %v1851 = vadd.f32 %v1782, %v1850
    %1852 = vmatmul.f32.gmra.mxu0 %v1709
    %v1853 = vpop.f32.mrf.mxu0
    %v1854 = vadd.f32 %v1782, %v1853
    %1855 = vmatmul.f32.gmra.mxu0 %v1710
    %v1856 = vpop.f32.mrf.mxu0
    %v1857 = vadd.f32 %v1782, %v1856
    %1858 = vmatmul.f32.gmra.mxu0 %v1711
    %v1859 = vpop.f32.mrf.mxu0
    %v1860 = vadd.f32 %v1782, %v1859
    %1861 = vmatmul.f32.gmra.mxu0 %v1712
    %v1862 = vpop.f32.mrf.mxu0
    %v1863 = vadd.f32 %v1782, %v1862
    %1864 = vmatmul.f32.gmra.mxu0 %v1713
    %v1865 = vpop.f32.mrf.mxu0
    %v1866 = vadd.f32 %v1782, %v1865
    %1867 = vmatmul.f32.gmra.mxu0 %v1714
    %v1868 = vpop.f32.mrf.mxu0
    %v1869 = vadd.f32 %v1782, %v1868
    %1870 = vdwg.mxu0
    %1871 = vmatpush.msra.mxu0 %v1777
    %1872 = vmatpush.msra.mxu0 %v1773
    %1873 = vmatpush.msra.mxu0 %v1769
    %1874 = vmatpush.msra.mxu0 %v1765
    %1875 = vmatpush.msra.mxu0 %v1761
    %1876 = vmatpush.msra.mxu0 %v1757
    %1877 = vmatpush.msra.mxu0 %v1753
    %1878 = vmatpush.msra.mxu0 %v1749
    %1879 = vmatpush.msra.mxu0 %v1745
    %1880 = vmatpush.msra.mxu0 %v1741
    %1881 = vmatpush.msra.mxu0 %v1737
    %1882 = vmatpush.msra.mxu0 %v1733
    %1883 = vmatpush.msra.mxu0 %v1729
    %1884 = vmatpush.msra.mxu0 %v1725
    %1885 = vmatpush.msra.mxu0 %v1721
    %1886 = vmatpush.msra.mxu0 %v1717
    %1887 = vmatmul.f32.gmra.mxu0 %v1707
    %v1888 = vpop.f32.mrf.mxu0
    %v1889 = vadd.f32 %v1783, %v1888
    %1890 = vmatmul.f32.gmra.mxu0 %v1708
    %v1891 = vpop.f32.mrf.mxu0
    %v1892 = vadd.f32 %v1783, %v1891
    %1893 = vmatmul.f32.gmra.mxu0 %v1709
    %v1894 = vpop.f32.mrf.mxu0
    %v1895 = vadd.f32 %v1783, %v1894
    %1896 = vmatmul.f32.gmra.mxu0 %v1710
    %v1897 = vpop.f32.mrf.mxu0
    %v1898 = vadd.f32 %v1783, %v1897
    %1899 = vmatmul.f32.gmra.mxu0 %v1711
    %v1900 = vpop.f32.mrf.mxu0
    %v1901 = vadd.f32 %v1783, %v1900
    %1902 = vmatmul.f32.gmra.mxu0 %v1712
    %v1903 = vpop.f32.mrf.mxu0
    %v1904 = vadd.f32 %v1783, %v1903
    %1905 = vmatmul.f32.gmra.mxu0 %v1713
    %v1906 = vpop.f32.mrf.mxu0
    %v1907 = vadd.f32 %v1783, %v1906
    %1908 = vmatmul.f32.gmra.mxu0 %v1714
    %v1909 = vpop.f32.mrf.mxu0
    %v1910 = vadd.f32 %v1783, %v1909
    %1911 = vdwg.mxu0
    %1912 = vmatpush.msra.mxu0 %v1778
    %1913 = vmatpush.msra.mxu0 %v1774
    %1914 = vmatpush.msra.mxu0 %v1770
    %1915 = vmatpush.msra.mxu0 %v1766
    %1916 = vmatpush.msra.mxu0 %v1762
    %1917 = vmatpush.msra.mxu0 %v1758
    %1918 = vmatpush.msra.mxu0 %v1754
    %1919 = vmatpush.msra.mxu0 %v1750
    %1920 = vmatpush.msra.mxu0 %v1746
    %1921 = vmatpush.msra.mxu0 %v1742
    %1922 = vmatpush.msra.mxu0 %v1738
    %1923 = vmatpush.msra.mxu0 %v1734
    %1924 = vmatpush.msra.mxu0 %v1730
    %1925 = vmatpush.msra.mxu0 %v1726
    %1926 = vmatpush.msra.mxu0 %v1722
    %1927 = vmatpush.msra.mxu0 %v1718
    %1928 = vmatmul.f32.gmra.mxu0 %v1707
    %v1929 = vpop.f32.mrf.mxu0
    %v1930 = vadd.f32 %v1784, %v1929
    %1931 = vmatmul.f32.gmra.mxu0 %v1708
    %v1932 = vpop.f32.mrf.mxu0
    %v1933 = vadd.f32 %v1784, %v1932
    %1934 = vmatmul.f32.gmra.mxu0 %v1709
    %v1935 = vpop.f32.mrf.mxu0
    %v1936 = vadd.f32 %v1784, %v1935
    %1937 = vmatmul.f32.gmra.mxu0 %v1710
    %v1938 = vpop.f32.mrf.mxu0
    %v1939 = vadd.f32 %v1784, %v1938
    %1940 = vmatmul.f32.gmra.mxu0 %v1711
    %v1941 = vpop.f32.mrf.mxu0
    %v1942 = vadd.f32 %v1784, %v1941
    %1943 = vmatmul.f32.gmra.mxu0 %v1712
    %v1944 = vpop.f32.mrf.mxu0
    %v1945 = vadd.f32 %v1784, %v1944
    %1946 = vmatmul.f32.gmra.mxu0 %v1713
    %v1947 = vpop.f32.mrf.mxu0
    %v1948 = vadd.f32 %v1784, %v1947
    %1949 = vmatmul.f32.gmra.mxu0 %v1714
    %v1950 = vpop.f32.mrf.mxu0
    %v1951 = vadd.f32 %v1784, %v1950
    %1952 = vdwg.mxu0
    %1953 = vst [vmem:[#allocation3] sm:$0xff] %v1807
    %1954 = vst [vmem:[#allocation3 + $0x8] sm:$0xff] %v1848
    %1955 = vst [vmem:[#allocation3 + $0x10] sm:$0xff] %v1889
    %1956 = vst [vmem:[#allocation3 + $0x18] sm:$0xff] %v1930
    %1957 = vst [vmem:[#allocation3 + $0x20] sm:$0xff] %v1810
    %1958 = vst [vmem:[#allocation3 + $0x28] sm:$0xff] %v1851
    %1959 = vst [vmem:[#allocation3 + $0x30] sm:$0xff] %v1892
    %1960 = vst [vmem:[#allocation3 + $0x38] sm:$0xff] %v1933
    %1961 = vst [vmem:[#allocation3 + $0x40] sm:$0xff] %v1813
    %1962 = vst [vmem:[#allocation3 + $0x48] sm:$0xff] %v1854
    %1963 = vst [vmem:[#allocation3 + $0x50] sm:$0xff] %v1895
    %1964 = vst [vmem:[#allocation3 + $0x58] sm:$0xff] %v1936
    %1965 = vst [vmem:[#allocation3 + $0x60] sm:$0xff] %v1816
    %1966 = vst [vmem:[#allocation3 + $0x68] sm:$0xff] %v1857
    %1967 = vst [vmem:[#allocation3 + $0x70] sm:$0xff] %v1898
    %1968 = vst [vmem:[#allocation3 + $0x78] sm:$0xff] %v1939
    %1969 = vst [vmem:[#allocation3 + $0x80] sm:$0xff] %v1819
    %1970 = vst [vmem:[#allocation3 + $0x88] sm:$0xff] %v1860
    %1971 = vst [vmem:[#allocation3 + $0x90] sm:$0xff] %v1901
    %1972 = vst [vmem:[#allocation3 + $0x98] sm:$0xff] %v1942
    %1973 = vst [vmem:[#allocation3 + $0xa0] sm:$0xff] %v1822
    %1974 = vst [vmem:[#allocation3 + $0xa8] sm:$0xff] %v1863
    %1975 = vst [vmem:[#allocation3 + $0xb0] sm:$0xff] %v1904
    %1976 = vst [vmem:[#allocation3 + $0xb8] sm:$0xff] %v1945
    %1977 = vst [vmem:[#allocation3 + $0xc0] sm:$0xff] %v1825
    %1978 = vst [vmem:[#allocation3 + $0xc8] sm:$0xff] %v1866
    %1979 = vst [vmem:[#allocation3 + $0xd0] sm:$0xff] %v1907
    %1980 = vst [vmem:[#allocation3 + $0xd8] sm:$0xff] %v1948
    %1981 = vst [vmem:[#allocation3 + $0xe0] sm:$0xff] %v1828
    %1982 = vst [vmem:[#allocation3 + $0xe8] sm:$0xff] %v1869
    %1983 = vst [vmem:[#allocation3 + $0xf0] sm:$0xff] %v1910
    %1984 = vst [vmem:[#allocation3 + $0xf8] sm:$0xff] %v1951
    %v1985 = vld [vmem:[#allocation9] sm:$0xff]
    %v1986 = vld [vmem:[#allocation9 + $0x8] sm:$0xff]
    %v1987 = vld [vmem:[#allocation9 + $0x10] sm:$0xff]
    %v1988 = vld [vmem:[#allocation9 + $0x18] sm:$0xff]
    %v1989 = vld [vmem:[#allocation9 + $0x20] sm:$0xff]
    %v1990 = vld [vmem:[#allocation9 + $0x28] sm:$0xff]
    %v1991 = vld [vmem:[#allocation9 + $0x30] sm:$0xff]
    %v1992 = vld [vmem:[#allocation9 + $0x38] sm:$0xff]
    %v1993 = vld [vmem:[#allocation9 + $0x40] sm:$0xff]
    %v1994 = vld [vmem:[#allocation9 + $0x48] sm:$0xff]
    %v1995 = vld [vmem:[#allocation9 + $0x50] sm:$0xff]
    %v1996 = vld [vmem:[#allocation9 + $0x58] sm:$0xff]
    %v1997 = vld [vmem:[#allocation9 + $0x60] sm:$0xff]
    %v1998 = vld [vmem:[#allocation9 + $0x68] sm:$0xff]
    %v1999 = vld [vmem:[#allocation9 + $0x70] sm:$0xff]
    %v2000 = vld [vmem:[#allocation9 + $0x78] sm:$0xff]
    %v2001 = vld [vmem:[#allocation9 + $0x80] sm:$0xff]
    %v2002 = vld [vmem:[#allocation9 + $0x88] sm:$0xff]
    %v2003 = vld [vmem:[#allocation9 + $0x90] sm:$0xff]
    %v2004 = vld [vmem:[#allocation9 + $0x98] sm:$0xff]
    %v2005 = vld [vmem:[#allocation9 + $0xa0] sm:$0xff]
    %v2006 = vld [vmem:[#allocation9 + $0xa8] sm:$0xff]
    %v2007 = vld [vmem:[#allocation9 + $0xb0] sm:$0xff]
    %v2008 = vld [vmem:[#allocation9 + $0xb8] sm:$0xff]
    %v2009 = vld [vmem:[#allocation9 + $0xc0] sm:$0xff]
    %v2010 = vld [vmem:[#allocation9 + $0xc8] sm:$0xff]
    %v2011 = vld [vmem:[#allocation9 + $0xd0] sm:$0xff]
    %v2012 = vld [vmem:[#allocation9 + $0xd8] sm:$0xff]
    %v2013 = vld [vmem:[#allocation9 + $0xe0] sm:$0xff]
    %v2014 = vld [vmem:[#allocation9 + $0xe8] sm:$0xff]
    %v2015 = vld [vmem:[#allocation9 + $0xf0] sm:$0xff]
    %v2016 = vld [vmem:[#allocation9 + $0xf8] sm:$0xff]
    %v2017 = vld [vmem:[#allocation9 + $0x100] sm:$0xff]
    %v2018 = vld [vmem:[#allocation9 + $0x108] sm:$0xff]
    %v2019 = vld [vmem:[#allocation9 + $0x110] sm:$0xff]
    %v2020 = vld [vmem:[#allocation9 + $0x118] sm:$0xff]
    %v2021 = vld [vmem:[#allocation9 + $0x120] sm:$0xff]
    %v2022 = vld [vmem:[#allocation9 + $0x128] sm:$0xff]
    %v2023 = vld [vmem:[#allocation9 + $0x130] sm:$0xff]
    %v2024 = vld [vmem:[#allocation9 + $0x138] sm:$0xff]
    %v2025 = vld [vmem:[#allocation9 + $0x140] sm:$0xff]
    %v2026 = vld [vmem:[#allocation9 + $0x148] sm:$0xff]
    %v2027 = vld [vmem:[#allocation9 + $0x150] sm:$0xff]
    %v2028 = vld [vmem:[#allocation9 + $0x158] sm:$0xff]
    %v2029 = vld [vmem:[#allocation9 + $0x160] sm:$0xff]
    %v2030 = vld [vmem:[#allocation9 + $0x168] sm:$0xff]
    %v2031 = vld [vmem:[#allocation9 + $0x170] sm:$0xff]
    %v2032 = vld [vmem:[#allocation9 + $0x178] sm:$0xff]
    %v2033 = vld [vmem:[#allocation9 + $0x180] sm:$0xff]
    %v2034 = vld [vmem:[#allocation9 + $0x188] sm:$0xff]
    %v2035 = vld [vmem:[#allocation9 + $0x190] sm:$0xff]
    %v2036 = vld [vmem:[#allocation9 + $0x198] sm:$0xff]
    %v2037 = vld [vmem:[#allocation9 + $0x1a0] sm:$0xff]
    %v2038 = vld [vmem:[#allocation9 + $0x1a8] sm:$0xff]
    %v2039 = vld [vmem:[#allocation9 + $0x1b0] sm:$0xff]
    %v2040 = vld [vmem:[#allocation9 + $0x1b8] sm:$0xff]
    %v2041 = vld [vmem:[#allocation9 + $0x1c0] sm:$0xff]
    %v2042 = vld [vmem:[#allocation9 + $0x1c8] sm:$0xff]
    %v2043 = vld [vmem:[#allocation9 + $0x1d0] sm:$0xff]
    %v2044 = vld [vmem:[#allocation9 + $0x1d8] sm:$0xff]
    %v2045 = vld [vmem:[#allocation9 + $0x1e0] sm:$0xff]
    %v2046 = vld [vmem:[#allocation9 + $0x1e8] sm:$0xff]
    %v2047 = vld [vmem:[#allocation9 + $0x1f0] sm:$0xff]
    %v2048 = vld [vmem:[#allocation9 + $0x1f8] sm:$0xff]
    %v2049 = vld [vmem:[#allocation3] sm:$0xff]
    %v2050 = vld [vmem:[#allocation3 + $0x8] sm:$0xff]
    %v2051 = vld [vmem:[#allocation3 + $0x10] sm:$0xff]
    %v2052 = vld [vmem:[#allocation3 + $0x18] sm:$0xff]
    %2053 = vmatpush.msra.mxu0 %v2045
    %2054 = vmatpush.msra.mxu0 %v2041
    %2055 = vmatpush.msra.mxu0 %v2037
    %2056 = vmatpush.msra.mxu0 %v2033
    %2057 = vmatpush.msra.mxu0 %v2029
    %2058 = vmatpush.msra.mxu0 %v2025
    %2059 = vmatpush.msra.mxu0 %v2021
    %2060 = vmatpush.msra.mxu0 %v2017
    %2061 = vmatpush.msra.mxu0 %v2013
    %2062 = vmatpush.msra.mxu0 %v2009
    %2063 = vmatpush.msra.mxu0 %v2005
    %2064 = vmatpush.msra.mxu0 %v2001
    %2065 = vmatpush.msra.mxu0 %v1997
    %2066 = vmatpush.msra.mxu0 %v1993
    %2067 = vmatpush.msra.mxu0 %v1989
    %2068 = vmatpush.msra.mxu0 %v1985
    %2069 = vmatmul.f32.gmra.mxu0 0.0
    %v2070 = vpop.f32.mrf.mxu0
    %v2071 = vadd.f32 0.0, %v2070
    %2072 = vdwg.mxu0
    %2073 = vmatpush.msra.mxu0 %v2046
    %2074 = vmatpush.msra.mxu0 %v2042
    %2075 = vmatpush.msra.mxu0 %v2038
    %2076 = vmatpush.msra.mxu0 %v2034
    %2077 = vmatpush.msra.mxu0 %v2030
    %2078 = vmatpush.msra.mxu0 %v2026
    %2079 = vmatpush.msra.mxu0 %v2022
    %2080 = vmatpush.msra.mxu0 %v2018
    %2081 = vmatpush.msra.mxu0 %v2014
    %2082 = vmatpush.msra.mxu0 %v2010
    %2083 = vmatpush.msra.mxu0 %v2006
    %2084 = vmatpush.msra.mxu0 %v2002
    %2085 = vmatpush.msra.mxu0 %v1998
    %2086 = vmatpush.msra.mxu0 %v1994
    %2087 = vmatpush.msra.mxu0 %v1990
    %2088 = vmatpush.msra.mxu0 %v1986
    %2089 = vmatmul.f32.gmra.mxu0 0.0
    %v2090 = vpop.f32.mrf.mxu0
    %v2091 = vadd.f32 0.0, %v2090
    %2092 = vdwg.mxu0
    %2093 = vmatpush.msra.mxu0 %v2047
    %2094 = vmatpush.msra.mxu0 %v2043
    %2095 = vmatpush.msra.mxu0 %v2039
    %2096 = vmatpush.msra.mxu0 %v2035
    %2097 = vmatpush.msra.mxu0 %v2031
    %2098 = vmatpush.msra.mxu0 %v2027
    %2099 = vmatpush.msra.mxu0 %v2023
    %2100 = vmatpush.msra.mxu0 %v2019
    %2101 = vmatpush.msra.mxu0 %v2015
    %2102 = vmatpush.msra.mxu0 %v2011
    %2103 = vmatpush.msra.mxu0 %v2007
    %2104 = vmatpush.msra.mxu0 %v2003
    %2105 = vmatpush.msra.mxu0 %v1999
    %2106 = vmatpush.msra.mxu0 %v1995
    %2107 = vmatpush.msra.mxu0 %v1991
    %2108 = vmatpush.msra.mxu0 %v1987
    %2109 = vmatmul.f32.gmra.mxu0 0.0
    %v2110 = vpop.f32.mrf.mxu0
    %v2111 = vadd.f32 0.0, %v2110
    %2112 = vdwg.mxu0
    %2113 = vmatpush.msra.mxu0 %v2048
    %2114 = vmatpush.msra.mxu0 %v2044
    %2115 = vmatpush.msra.mxu0 %v2040
    %2116 = vmatpush.msra.mxu0 %v2036
    %2117 = vmatpush.msra.mxu0 %v2032
    %2118 = vmatpush.msra.mxu0 %v2028
    %2119 = vmatpush.msra.mxu0 %v2024
    %2120 = vmatpush.msra.mxu0 %v2020
    %2121 = vmatpush.msra.mxu0 %v2016
    %2122 = vmatpush.msra.mxu0 %v2012
    %2123 = vmatpush.msra.mxu0 %v2008
    %2124 = vmatpush.msra.mxu0 %v2004
    %2125 = vmatpush.msra.mxu0 %v2000
    %2126 = vmatpush.msra.mxu0 %v1996
    %2127 = vmatpush.msra.mxu0 %v1992
    %2128 = vmatpush.msra.mxu0 %v1988
    %2129 = vmatmul.f32.gmra.mxu0 0.0
    %v2130 = vpop.f32.mrf.mxu0
    %v2131 = vadd.f32 0.0, %v2130
    %2132 = vdwg.mxu0
    %v2133 = vadd.f32 %v2049, %v2071
    %v2134 = vadd.f32 %v2050, %v2091
    %v2135 = vadd.f32 %v2051, %v2111
    %v2136 = vadd.f32 %v2052, %v2131
    %v2137 = vxor.u32 %v2133, 2147483648
    %v2138 = vxor.u32 %v2134, 2147483648
    %v2139 = vxor.u32 %v2135, 2147483648
    %v2140 = vmul.f32 %v2137, 1.442695
    %v2141 = vpow.pop %v2140
    %v2142 = vmul.f32 %v2138, 1.442695
    %v2143 = vpow.pop %v2142
    %v2144 = vmul.f32 %v2139, 1.442695
    %v2145 = vpow.pop %v2144
    %v2146 = vadd.f32 %v2141, 1.0
    %v2147 = vadd.f32 %v2143, 1.0
    %v2148 = vadd.f32 %v2145, 1.0
    %v2149 = vrcp.pop %v2146
    %v2150 = vmul.f32 %v2146, %v2149
    %v2151 = vsub.f32 1.0, %v2150
    %v2152 = vmul.f32 %v2149, %v2151
    %v2153 = vadd.f32 %v2149, %v2152
    %vm2154 = vweird.f32 %v2146
    %vm2155 = vweird.f32 %v2149
    %vm2156 = vmor %vm2154, %vm2155
    %v2157 = vsel %vm2156, %v2149, %v2153
    %v2158 = vand.u32 2147483647, %v2146
    %vm2159 = vcmp.eq.f32.partialorder %v2158, 8.507059e+37
    %v2160 = vand.u32 %v2146, 2147483648
    %v2161 = vor.u32 1.1754944e-38, %v2160
    %v2162 = vsel %vm2159, %v2161, %v2157
    %v2163 = vmul.f32 1.0, %v2162
    %v2164 = vrcp.pop %v2147
    %v2165 = vmul.f32 %v2147, %v2164
    %v2166 = vsub.f32 1.0, %v2165
    %v2167 = vmul.f32 %v2164, %v2166
    %v2168 = vadd.f32 %v2164, %v2167
    %vm2169 = vweird.f32 %v2147
    %vm2170 = vweird.f32 %v2164
    %vm2171 = vmor %vm2169, %vm2170
    %v2172 = vsel %vm2171, %v2164, %v2168
    %v2173 = vand.u32 2147483647, %v2147
    %vm2174 = vcmp.eq.f32.partialorder %v2173, 8.507059e+37
    %v2175 = vand.u32 %v2147, 2147483648
    %v2176 = vor.u32 1.1754944e-38, %v2175
    %v2177 = vsel %vm2174, %v2176, %v2172
    %v2178 = vmul.f32 1.0, %v2177
    %v2179 = vrcp.pop %v2148
    %v2180 = vmul.f32 %v2148, %v2179
    %v2181 = vsub.f32 1.0, %v2180
    %v2182 = vmul.f32 %v2179, %v2181
    %v2183 = vadd.f32 %v2179, %v2182
    %vm2184 = vweird.f32 %v2148
    %vm2185 = vweird.f32 %v2179
    %vm2186 = vmor %vm2184, %vm2185
    %v2187 = vsel %vm2186, %v2179, %v2183
    %v2188 = vand.u32 2147483647, %v2148
    %vm2189 = vcmp.eq.f32.partialorder %v2188, 8.507059e+37
    %v2190 = vand.u32 %v2148, 2147483648
    %v2191 = vor.u32 1.1754944e-38, %v2190
    %v2192 = vsel %vm2189, %v2191, %v2187
    %v2193 = vmul.f32 1.0, %v2192
    %v2194 = vtanh.pop %v2136
    %v2195 = vmul.f32 %v2178, 0.0
    %v2196 = vmul.f32 %v2163, %v2194
    %v2197 = vadd.f32 %v2195, %v2196
    %v2198 = vtanh.pop %v2197
    %v2199 = vmul.f32 %v2193, %v2198
    %2200 = vst [vmem:[#allocation2] sm:$0xff] %v2199
    %v2201 = vld [vmem:[%s629] sm:$0xff]
    %v2202 = vld [vmem:[%s629 + $0x8] sm:$0xff]
    %v2203 = vld [vmem:[%s629 + $0x10] sm:$0xff]
    %v2204 = vld [vmem:[%s629 + $0x18] sm:$0xff]
    %2205 = vmatpush.msra.mxu0 %v2045
    %2206 = vmatpush.msra.mxu0 %v2041
    %2207 = vmatpush.msra.mxu0 %v2037
    %2208 = vmatpush.msra.mxu0 %v2033
    %2209 = vmatpush.msra.mxu0 %v2029
    %2210 = vmatpush.msra.mxu0 %v2025
    %2211 = vmatpush.msra.mxu0 %v2021
    %2212 = vmatpush.msra.mxu0 %v2017
    %2213 = vmatpush.msra.mxu0 %v2013
    %2214 = vmatpush.msra.mxu0 %v2009
    %2215 = vmatpush.msra.mxu0 %v2005
    %2216 = vmatpush.msra.mxu0 %v2001
    %2217 = vmatpush.msra.mxu0 %v1997
    %2218 = vmatpush.msra.mxu0 %v1993
    %2219 = vmatpush.msra.mxu0 %v1989
    %2220 = vmatpush.msra.mxu0 %v1985
    %2221 = vmatmul.f32.gmra.mxu0 %v2199
    %v2222 = vpop.f32.mrf.mxu0
    %v2223 = vadd.f32 0.0, %v2222
    %2224 = vdwg.mxu0
    %2225 = vmatpush.msra.mxu0 %v2046
    %2226 = vmatpush.msra.mxu0 %v2042
    %2227 = vmatpush.msra.mxu0 %v2038
    %2228 = vmatpush.msra.mxu0 %v2034
    %2229 = vmatpush.msra.mxu0 %v2030
    %2230 = vmatpush.msra.mxu0 %v2026
    %2231 = vmatpush.msra.mxu0 %v2022
    %2232 = vmatpush.msra.mxu0 %v2018
    %2233 = vmatpush.msra.mxu0 %v2014
    %2234 = vmatpush.msra.mxu0 %v2010
    %2235 = vmatpush.msra.mxu0 %v2006
    %2236 = vmatpush.msra.mxu0 %v2002
    %2237 = vmatpush.msra.mxu0 %v1998
    %2238 = vmatpush.msra.mxu0 %v1994
    %2239 = vmatpush.msra.mxu0 %v1990
    %2240 = vmatpush.msra.mxu0 %v1986
    %2241 = vmatmul.f32.gmra.mxu0 %v2199
    %v2242 = vpop.f32.mrf.mxu0
    %v2243 = vadd.f32 0.0, %v2242
    %2244 = vdwg.mxu0
    %2245 = vmatpush.msra.mxu0 %v2047
    %2246 = vmatpush.msra.mxu0 %v2043
    %2247 = vmatpush.msra.mxu0 %v2039
    %2248 = vmatpush.msra.mxu0 %v2035
    %2249 = vmatpush.msra.mxu0 %v2031
    %2250 = vmatpush.msra.mxu0 %v2027
    %2251 = vmatpush.msra.mxu0 %v2023
    %2252 = vmatpush.msra.mxu0 %v2019
    %2253 = vmatpush.msra.mxu0 %v2015
    %2254 = vmatpush.msra.mxu0 %v2011
    %2255 = vmatpush.msra.mxu0 %v2007
    %2256 = vmatpush.msra.mxu0 %v2003
    %2257 = vmatpush.msra.mxu0 %v1999
    %2258 = vmatpush.msra.mxu0 %v1995
    %2259 = vmatpush.msra.mxu0 %v1991
    %2260 = vmatpush.msra.mxu0 %v1987
    %2261 = vmatmul.f32.gmra.mxu0 %v2199
    %v2262 = vpop.f32.mrf.mxu0
    %v2263 = vadd.f32 0.0, %v2262
    %2264 = vdwg.mxu0
    %2265 = vmatpush.msra.mxu0 %v2048
    %2266 = vmatpush.msra.mxu0 %v2044
    %2267 = vmatpush.msra.mxu0 %v2040
    %2268 = vmatpush.msra.mxu0 %v2036
    %2269 = vmatpush.msra.mxu0 %v2032
    %2270 = vmatpush.msra.mxu0 %v2028
    %2271 = vmatpush.msra.mxu0 %v2024
    %2272 = vmatpush.msra.mxu0 %v2020
    %2273 = vmatpush.msra.mxu0 %v2016
    %2274 = vmatpush.msra.mxu0 %v2012
    %2275 = vmatpush.msra.mxu0 %v2008
    %2276 = vmatpush.msra.mxu0 %v2004
    %2277 = vmatpush.msra.mxu0 %v2000
    %2278 = vmatpush.msra.mxu0 %v1996
    %2279 = vmatpush.msra.mxu0 %v1992
    %2280 = vmatpush.msra.mxu0 %v1988
    %2281 = vmatmul.f32.gmra.mxu0 %v2199
    %v2282 = vpop.f32.mrf.mxu0
    %v2283 = vadd.f32 0.0, %v2282
    %2284 = vdwg.mxu0
    %v2285 = vadd.f32 %v2201, %v2223
    %v2286 = vadd.f32 %v2202, %v2243
    %v2287 = vadd.f32 %v2203, %v2263
    %v2288 = vadd.f32 %v2204, %v2283
    %v2289 = vxor.u32 %v2285, 2147483648
    %v2290 = vxor.u32 %v2286, 2147483648
    %v2291 = vxor.u32 %v2287, 2147483648
    %v2292 = vmul.f32 %v2289, 1.442695
    %v2293 = vpow.pop %v2292
    %v2294 = vmul.f32 %v2290, 1.442695
    %v2295 = vpow.pop %v2294
    %v2296 = vmul.f32 %v2291, 1.442695
    %v2297 = vpow.pop %v2296
    %v2298 = vadd.f32 %v2293, 1.0
    %v2299 = vadd.f32 %v2295, 1.0
    %v2300 = vadd.f32 %v2297, 1.0
    %v2301 = vrcp.pop %v2298
    %v2302 = vmul.f32 %v2298, %v2301
    %v2303 = vsub.f32 1.0, %v2302
    %v2304 = vmul.f32 %v2301, %v2303
    %v2305 = vadd.f32 %v2301, %v2304
    %vm2306 = vweird.f32 %v2298
    %vm2307 = vweird.f32 %v2301
    %vm2308 = vmor %vm2306, %vm2307
    %v2309 = vsel %vm2308, %v2301, %v2305
    %v2310 = vand.u32 2147483647, %v2298
    %vm2311 = vcmp.eq.f32.partialorder %v2310, 8.507059e+37
    %v2312 = vand.u32 %v2298, 2147483648
    %v2313 = vor.u32 1.1754944e-38, %v2312
    %v2314 = vsel %vm2311, %v2313, %v2309
    %v2315 = vmul.f32 1.0, %v2314
    %v2316 = vrcp.pop %v2299
    %v2317 = vmul.f32 %v2299, %v2316
    %v2318 = vsub.f32 1.0, %v2317
    %v2319 = vmul.f32 %v2316, %v2318
    %v2320 = vadd.f32 %v2316, %v2319
    %vm2321 = vweird.f32 %v2299
    %vm2322 = vweird.f32 %v2316
    %vm2323 = vmor %vm2321, %vm2322
    %v2324 = vsel %vm2323, %v2316, %v2320
    %v2325 = vand.u32 2147483647, %v2299
    %vm2326 = vcmp.eq.f32.partialorder %v2325, 8.507059e+37
    %v2327 = vand.u32 %v2299, 2147483648
    %v2328 = vor.u32 1.1754944e-38, %v2327
    %v2329 = vsel %vm2326, %v2328, %v2324
    %v2330 = vmul.f32 1.0, %v2329
    %v2331 = vrcp.pop %v2300
    %v2332 = vmul.f32 %v2300, %v2331
    %v2333 = vsub.f32 1.0, %v2332
    %v2334 = vmul.f32 %v2331, %v2333
    %v2335 = vadd.f32 %v2331, %v2334
    %vm2336 = vweird.f32 %v2300
    %vm2337 = vweird.f32 %v2331
    %vm2338 = vmor %vm2336, %vm2337
    %v2339 = vsel %vm2338, %v2331, %v2335
    %v2340 = vand.u32 2147483647, %v2300
    %vm2341 = vcmp.eq.f32.partialorder %v2340, 8.507059e+37
    %v2342 = vand.u32 %v2300, 2147483648
    %v2343 = vor.u32 1.1754944e-38, %v2342
    %v2344 = vsel %vm2341, %v2343, %v2339
    %v2345 = vmul.f32 1.0, %v2344
    %v2346 = vtanh.pop %v2288
    %v2347 = vmul.f32 %v2330, %v2197
    %v2348 = vmul.f32 %v2315, %v2346
    %v2349 = vadd.f32 %v2347, %v2348
    %v2350 = vtanh.pop %v2349
    %v2351 = vmul.f32 %v2345, %v2350
    %2352 = vst [vmem:[%s781] sm:$0xff] %v2351
    %v2353 = vld [vmem:[%s783] sm:$0xff]
    %v2354 = vld [vmem:[%s783 + $0x8] sm:$0xff]
    %v2355 = vld [vmem:[%s783 + $0x10] sm:$0xff]
    %v2356 = vld [vmem:[%s783 + $0x18] sm:$0xff]
    %2357 = vmatpush.msra.mxu0 %v2045
    %2358 = vmatpush.msra.mxu0 %v2041
    %2359 = vmatpush.msra.mxu0 %v2037
    %2360 = vmatpush.msra.mxu0 %v2033
    %2361 = vmatpush.msra.mxu0 %v2029
    %2362 = vmatpush.msra.mxu0 %v2025
    %2363 = vmatpush.msra.mxu0 %v2021
    %2364 = vmatpush.msra.mxu0 %v2017
    %2365 = vmatpush.msra.mxu0 %v2013
    %2366 = vmatpush.msra.mxu0 %v2009
    %2367 = vmatpush.msra.mxu0 %v2005
    %2368 = vmatpush.msra.mxu0 %v2001
    %2369 = vmatpush.msra.mxu0 %v1997
    %2370 = vmatpush.msra.mxu0 %v1993
    %2371 = vmatpush.msra.mxu0 %v1989
    %2372 = vmatpush.msra.mxu0 %v1985
    %2373 = vmatmul.f32.gmra.mxu0 %v2351
    %v2374 = vpop.f32.mrf.mxu0
    %v2375 = vadd.f32 0.0, %v2374
    %2376 = vdwg.mxu0
    %2377 = vmatpush.msra.mxu0 %v2046
    %2378 = vmatpush.msra.mxu0 %v2042
    %2379 = vmatpush.msra.mxu0 %v2038
    %2380 = vmatpush.msra.mxu0 %v2034
    %2381 = vmatpush.msra.mxu0 %v2030
    %2382 = vmatpush.msra.mxu0 %v2026
    %2383 = vmatpush.msra.mxu0 %v2022
    %2384 = vmatpush.msra.mxu0 %v2018
    %2385 = vmatpush.msra.mxu0 %v2014
    %2386 = vmatpush.msra.mxu0 %v2010
    %2387 = vmatpush.msra.mxu0 %v2006
    %2388 = vmatpush.msra.mxu0 %v2002
    %2389 = vmatpush.msra.mxu0 %v1998
    %2390 = vmatpush.msra.mxu0 %v1994
    %2391 = vmatpush.msra.mxu0 %v1990
    %2392 = vmatpush.msra.mxu0 %v1986
    %2393 = vmatmul.f32.gmra.mxu0 %v2351
    %v2394 = vpop.f32.mrf.mxu0
    %v2395 = vadd.f32 0.0, %v2394
    %2396 = vdwg.mxu0
    %2397 = vmatpush.msra.mxu0 %v2047
    %2398 = vmatpush.msra.mxu0 %v2043
    %2399 = vmatpush.msra.mxu0 %v2039
    %2400 = vmatpush.msra.mxu0 %v2035
    %2401 = vmatpush.msra.mxu0 %v2031
    %2402 = vmatpush.msra.mxu0 %v2027
    %2403 = vmatpush.msra.mxu0 %v2023
    %2404 = vmatpush.msra.mxu0 %v2019
    %2405 = vmatpush.msra.mxu0 %v2015
    %2406 = vmatpush.msra.mxu0 %v2011
    %2407 = vmatpush.msra.mxu0 %v2007
    %2408 = vmatpush.msra.mxu0 %v2003
    %2409 = vmatpush.msra.mxu0 %v1999
    %2410 = vmatpush.msra.mxu0 %v1995
    %2411 = vmatpush.msra.mxu0 %v1991
    %2412 = vmatpush.msra.mxu0 %v1987
    %2413 = vmatmul.f32.gmra.mxu0 %v2351
    %v2414 = vpop.f32.mrf.mxu0
    %v2415 = vadd.f32 0.0, %v2414
    %2416 = vdwg.mxu0
    %2417 = vmatpush.msra.mxu0 %v2048
    %2418 = vmatpush.msra.mxu0 %v2044
    %2419 = vmatpush.msra.mxu0 %v2040
    %2420 = vmatpush.msra.mxu0 %v2036
    %2421 = vmatpush.msra.mxu0 %v2032
    %2422 = vmatpush.msra.mxu0 %v2028
    %2423 = vmatpush.msra.mxu0 %v2024
    %2424 = vmatpush.msra.mxu0 %v2020
    %2425 = vmatpush.msra.mxu0 %v2016
    %2426 = vmatpush.msra.mxu0 %v2012
    %2427 = vmatpush.msra.mxu0 %v2008
    %2428 = vmatpush.msra.mxu0 %v2004
    %2429 = vmatpush.msra.mxu0 %v2000
    %2430 = vmatpush.msra.mxu0 %v1996
    %2431 = vmatpush.msra.mxu0 %v1992
    %2432 = vmatpush.msra.mxu0 %v1988
    %2433 = vmatmul.f32.gmra.mxu0 %v2351
    %v2434 = vpop.f32.mrf.mxu0
    %v2435 = vadd.f32 0.0, %v2434
    %2436 = vdwg.mxu0
    %v2437 = vadd.f32 %v2353, %v2375
    %v2438 = vadd.f32 %v2354, %v2395
    %v2439 = vadd.f32 %v2355, %v2415
    %v2440 = vadd.f32 %v2356, %v2435
    %v2441 = vxor.u32 %v2437, 2147483648
    %v2442 = vxor.u32 %v2438, 2147483648
    %v2443 = vxor.u32 %v2439, 2147483648
    %v2444 = vmul.f32 %v2441, 1.442695
    %v2445 = vpow.pop %v2444
    %v2446 = vmul.f32 %v2442, 1.442695
    %v2447 = vpow.pop %v2446
    %v2448 = vmul.f32 %v2443, 1.442695
    %v2449 = vpow.pop %v2448
    %v2450 = vadd.f32 %v2445, 1.0
    %v2451 = vadd.f32 %v2447, 1.0
    %v2452 = vadd.f32 %v2449, 1.0
    %v2453 = vrcp.pop %v2450
    %v2454 = vmul.f32 %v2450, %v2453
    %v2455 = vsub.f32 1.0, %v2454
    %v2456 = vmul.f32 %v2453, %v2455
    %v2457 = vadd.f32 %v2453, %v2456
    %vm2458 = vweird.f32 %v2450
    %vm2459 = vweird.f32 %v2453
    %vm2460 = vmor %vm2458, %vm2459
    %v2461 = vsel %vm2460, %v2453, %v2457
    %v2462 = vand.u32 2147483647, %v2450
    %vm2463 = vcmp.eq.f32.partialorder %v2462, 8.507059e+37
    %v2464 = vand.u32 %v2450, 2147483648
    %v2465 = vor.u32 1.1754944e-38, %v2464
    %v2466 = vsel %vm2463, %v2465, %v2461
    %v2467 = vmul.f32 1.0, %v2466
    %v2468 = vrcp.pop %v2451
    %v2469 = vmul.f32 %v2451, %v2468
    %v2470 = vsub.f32 1.0, %v2469
    %v2471 = vmul.f32 %v2468, %v2470
    %v2472 = vadd.f32 %v2468, %v2471
    %vm2473 = vweird.f32 %v2451
    %vm2474 = vweird.f32 %v2468
    %vm2475 = vmor %vm2473, %vm2474
    %v2476 = vsel %vm2475, %v2468, %v2472
    %v2477 = vand.u32 2147483647, %v2451
    %vm2478 = vcmp.eq.f32.partialorder %v2477, 8.507059e+37
    %v2479 = vand.u32 %v2451, 2147483648
    %v2480 = vor.u32 1.1754944e-38, %v2479
    %v2481 = vsel %vm2478, %v2480, %v2476
    %v2482 = vmul.f32 1.0, %v2481
    %v2483 = vrcp.pop %v2452
    %v2484 = vmul.f32 %v2452, %v2483
    %v2485 = vsub.f32 1.0, %v2484
    %v2486 = vmul.f32 %v2483, %v2485
    %v2487 = vadd.f32 %v2483, %v2486
    %vm2488 = vweird.f32 %v2452
    %vm2489 = vweird.f32 %v2483
    %vm2490 = vmor %vm2488, %vm2489
    %v2491 = vsel %vm2490, %v2483, %v2487
    %v2492 = vand.u32 2147483647, %v2452
    %vm2493 = vcmp.eq.f32.partialorder %v2492, 8.507059e+37
    %v2494 = vand.u32 %v2452, 2147483648
    %v2495 = vor.u32 1.1754944e-38, %v2494
    %v2496 = vsel %vm2493, %v2495, %v2491
    %v2497 = vmul.f32 1.0, %v2496
    %v2498 = vtanh.pop %v2440
    %v2499 = vmul.f32 %v2482, %v2349
    %v2500 = vmul.f32 %v2467, %v2498
    %v2501 = vadd.f32 %v2499, %v2500
    %v2502 = vtanh.pop %v2501
    %v2503 = vmul.f32 %v2497, %v2502
    %2504 = vst [vmem:[%s935] sm:$0xff] %v2503
    %v2505 = vld [vmem:[%s937] sm:$0xff]
    %v2506 = vld [vmem:[%s937 + $0x8] sm:$0xff]
    %v2507 = vld [vmem:[%s937 + $0x10] sm:$0xff]
    %v2508 = vld [vmem:[%s937 + $0x18] sm:$0xff]
    %2509 = vmatpush.msra.mxu0 %v2045
    %2510 = vmatpush.msra.mxu0 %v2041
    %2511 = vmatpush.msra.mxu0 %v2037
    %2512 = vmatpush.msra.mxu0 %v2033
    %2513 = vmatpush.msra.mxu0 %v2029
    %2514 = vmatpush.msra.mxu0 %v2025
    %2515 = vmatpush.msra.mxu0 %v2021
    %2516 = vmatpush.msra.mxu0 %v2017
    %2517 = vmatpush.msra.mxu0 %v2013
    %2518 = vmatpush.msra.mxu0 %v2009
    %2519 = vmatpush.msra.mxu0 %v2005
    %2520 = vmatpush.msra.mxu0 %v2001
    %2521 = vmatpush.msra.mxu0 %v1997
    %2522 = vmatpush.msra.mxu0 %v1993
    %2523 = vmatpush.msra.mxu0 %v1989
    %2524 = vmatpush.msra.mxu0 %v1985
    %2525 = vmatmul.f32.gmra.mxu0 %v2503
    %v2526 = vpop.f32.mrf.mxu0
    %v2527 = vadd.f32 0.0, %v2526
    %2528 = vdwg.mxu0
    %2529 = vmatpush.msra.mxu0 %v2046
    %2530 = vmatpush.msra.mxu0 %v2042
    %2531 = vmatpush.msra.mxu0 %v2038
    %2532 = vmatpush.msra.mxu0 %v2034
    %2533 = vmatpush.msra.mxu0 %v2030
    %2534 = vmatpush.msra.mxu0 %v2026
    %2535 = vmatpush.msra.mxu0 %v2022
    %2536 = vmatpush.msra.mxu0 %v2018
    %2537 = vmatpush.msra.mxu0 %v2014
    %2538 = vmatpush.msra.mxu0 %v2010
    %2539 = vmatpush.msra.mxu0 %v2006
    %2540 = vmatpush.msra.mxu0 %v2002
    %2541 = vmatpush.msra.mxu0 %v1998
    %2542 = vmatpush.msra.mxu0 %v1994
    %2543 = vmatpush.msra.mxu0 %v1990
    %2544 = vmatpush.msra.mxu0 %v1986
    %2545 = vmatmul.f32.gmra.mxu0 %v2503
    %v2546 = vpop.f32.mrf.mxu0
    %v2547 = vadd.f32 0.0, %v2546
    %2548 = vdwg.mxu0
    %2549 = vmatpush.msra.mxu0 %v2047
    %2550 = vmatpush.msra.mxu0 %v2043
    %2551 = vmatpush.msra.mxu0 %v2039
    %2552 = vmatpush.msra.mxu0 %v2035
    %2553 = vmatpush.msra.mxu0 %v2031
    %2554 = vmatpush.msra.mxu0 %v2027
    %2555 = vmatpush.msra.mxu0 %v2023
    %2556 = vmatpush.msra.mxu0 %v2019
    %2557 = vmatpush.msra.mxu0 %v2015
    %2558 = vmatpush.msra.mxu0 %v2011
    %2559 = vmatpush.msra.mxu0 %v2007
    %2560 = vmatpush.msra.mxu0 %v2003
    %2561 = vmatpush.msra.mxu0 %v1999
    %2562 = vmatpush.msra.mxu0 %v1995
    %2563 = vmatpush.msra.mxu0 %v1991
    %2564 = vmatpush.msra.mxu0 %v1987
    %2565 = vmatmul.f32.gmra.mxu0 %v2503
    %v2566 = vpop.f32.mrf.mxu0
    %v2567 = vadd.f32 0.0, %v2566
    %2568 = vdwg.mxu0
    %2569 = vmatpush.msra.mxu0 %v2048
    %2570 = vmatpush.msra.mxu0 %v2044
    %2571 = vmatpush.msra.mxu0 %v2040
    %2572 = vmatpush.msra.mxu0 %v2036
    %2573 = vmatpush.msra.mxu0 %v2032
    %2574 = vmatpush.msra.mxu0 %v2028
    %2575 = vmatpush.msra.mxu0 %v2024
    %2576 = vmatpush.msra.mxu0 %v2020
    %2577 = vmatpush.msra.mxu0 %v2016
    %2578 = vmatpush.msra.mxu0 %v2012
    %2579 = vmatpush.msra.mxu0 %v2008
    %2580 = vmatpush.msra.mxu0 %v2004
    %2581 = vmatpush.msra.mxu0 %v2000
    %2582 = vmatpush.msra.mxu0 %v1996
    %2583 = vmatpush.msra.mxu0 %v1992
    %2584 = vmatpush.msra.mxu0 %v1988
    %2585 = vmatmul.f32.gmra.mxu0 %v2503
    %v2586 = vpop.f32.mrf.mxu0
    %v2587 = vadd.f32 0.0, %v2586
    %2588 = vdwg.mxu0
    %v2589 = vadd.f32 %v2505, %v2527
    %v2590 = vadd.f32 %v2506, %v2547
    %v2591 = vadd.f32 %v2507, %v2567
    %v2592 = vadd.f32 %v2508, %v2587
    %v2593 = vxor.u32 %v2589, 2147483648
    %v2594 = vxor.u32 %v2590, 2147483648
    %v2595 = vxor.u32 %v2591, 2147483648
    %v2596 = vmul.f32 %v2593, 1.442695
    %v2597 = vpow.pop %v2596
    %v2598 = vmul.f32 %v2594, 1.442695
    %v2599 = vpow.pop %v2598
    %v2600 = vmul.f32 %v2595, 1.442695
    %v2601 = vpow.pop %v2600
    %v2602 = vadd.f32 %v2597, 1.0
    %v2603 = vadd.f32 %v2599, 1.0
    %v2604 = vadd.f32 %v2601, 1.0
    %v2605 = vrcp.pop %v2602
    %v2606 = vmul.f32 %v2602, %v2605
    %v2607 = vsub.f32 1.0, %v2606
    %v2608 = vmul.f32 %v2605, %v2607
    %v2609 = vadd.f32 %v2605, %v2608
    %vm2610 = vweird.f32 %v2602
    %vm2611 = vweird.f32 %v2605
    %vm2612 = vmor %vm2610, %vm2611
    %v2613 = vsel %vm2612, %v2605, %v2609
    %v2614 = vand.u32 2147483647, %v2602
    %vm2615 = vcmp.eq.f32.partialorder %v2614, 8.507059e+37
    %v2616 = vand.u32 %v2602, 2147483648
    %v2617 = vor.u32 1.1754944e-38, %v2616
    %v2618 = vsel %vm2615, %v2617, %v2613
    %v2619 = vmul.f32 1.0, %v2618
    %v2620 = vrcp.pop %v2603
    %v2621 = vmul.f32 %v2603, %v2620
    %v2622 = vsub.f32 1.0, %v2621
    %v2623 = vmul.f32 %v2620, %v2622
    %v2624 = vadd.f32 %v2620, %v2623
    %vm2625 = vweird.f32 %v2603
    %vm2626 = vweird.f32 %v2620
    %vm2627 = vmor %vm2625, %vm2626
    %v2628 = vsel %vm2627, %v2620, %v2624
    %v2629 = vand.u32 2147483647, %v2603
    %vm2630 = vcmp.eq.f32.partialorder %v2629, 8.507059e+37
    %v2631 = vand.u32 %v2603, 2147483648
    %v2632 = vor.u32 1.1754944e-38, %v2631
    %v2633 = vsel %vm2630, %v2632, %v2628
    %v2634 = vmul.f32 1.0, %v2633
    %v2635 = vrcp.pop %v2604
    %v2636 = vmul.f32 %v2604, %v2635
    %v2637 = vsub.f32 1.0, %v2636
    %v2638 = vmul.f32 %v2635, %v2637
    %v2639 = vadd.f32 %v2635, %v2638
    %vm2640 = vweird.f32 %v2604
    %vm2641 = vweird.f32 %v2635
    %vm2642 = vmor %vm2640, %vm2641
    %v2643 = vsel %vm2642, %v2635, %v2639
    %v2644 = vand.u32 2147483647, %v2604
    %vm2645 = vcmp.eq.f32.partialorder %v2644, 8.507059e+37
    %v2646 = vand.u32 %v2604, 2147483648
    %v2647 = vor.u32 1.1754944e-38, %v2646
    %v2648 = vsel %vm2645, %v2647, %v2643
    %v2649 = vmul.f32 1.0, %v2648
    %v2650 = vtanh.pop %v2592
    %v2651 = vmul.f32 %v2634, %v2501
    %v2652 = vmul.f32 %v2619, %v2650
    %v2653 = vadd.f32 %v2651, %v2652
    %v2654 = vtanh.pop %v2653
    %v2655 = vmul.f32 %v2649, %v2654
    %2656 = vst [vmem:[%s1089] sm:$0xff] %v2655
    %v2657 = vld [vmem:[%s1091] sm:$0xff]
    %v2658 = vld [vmem:[%s1091 + $0x8] sm:$0xff]
    %v2659 = vld [vmem:[%s1091 + $0x10] sm:$0xff]
    %v2660 = vld [vmem:[%s1091 + $0x18] sm:$0xff]
    %2661 = vmatpush.msra.mxu0 %v2045
    %2662 = vmatpush.msra.mxu0 %v2041
    %2663 = vmatpush.msra.mxu0 %v2037
    %2664 = vmatpush.msra.mxu0 %v2033
    %2665 = vmatpush.msra.mxu0 %v2029
    %2666 = vmatpush.msra.mxu0 %v2025
    %2667 = vmatpush.msra.mxu0 %v2021
    %2668 = vmatpush.msra.mxu0 %v2017
    %2669 = vmatpush.msra.mxu0 %v2013
    %2670 = vmatpush.msra.mxu0 %v2009
    %2671 = vmatpush.msra.mxu0 %v2005
    %2672 = vmatpush.msra.mxu0 %v2001
    %2673 = vmatpush.msra.mxu0 %v1997
    %2674 = vmatpush.msra.mxu0 %v1993
    %2675 = vmatpush.msra.mxu0 %v1989
    %2676 = vmatpush.msra.mxu0 %v1985
    %2677 = vmatmul.f32.gmra.mxu0 %v2655
    %v2678 = vpop.f32.mrf.mxu0
    %v2679 = vadd.f32 0.0, %v2678
    %2680 = vdwg.mxu0
    %2681 = vmatpush.msra.mxu0 %v2046
    %2682 = vmatpush.msra.mxu0 %v2042
    %2683 = vmatpush.msra.mxu0 %v2038
    %2684 = vmatpush.msra.mxu0 %v2034
    %2685 = vmatpush.msra.mxu0 %v2030
    %2686 = vmatpush.msra.mxu0 %v2026
    %2687 = vmatpush.msra.mxu0 %v2022
    %2688 = vmatpush.msra.mxu0 %v2018
    %2689 = vmatpush.msra.mxu0 %v2014
    %2690 = vmatpush.msra.mxu0 %v2010
    %2691 = vmatpush.msra.mxu0 %v2006
    %2692 = vmatpush.msra.mxu0 %v2002
    %2693 = vmatpush.msra.mxu0 %v1998
    %2694 = vmatpush.msra.mxu0 %v1994
    %2695 = vmatpush.msra.mxu0 %v1990
    %2696 = vmatpush.msra.mxu0 %v1986
    %2697 = vmatmul.f32.gmra.mxu0 %v2655
    %v2698 = vpop.f32.mrf.mxu0
    %v2699 = vadd.f32 0.0, %v2698
    %2700 = vdwg.mxu0
    %2701 = vmatpush.msra.mxu0 %v2047
    %2702 = vmatpush.msra.mxu0 %v2043
    %2703 = vmatpush.msra.mxu0 %v2039
    %2704 = vmatpush.msra.mxu0 %v2035
    %2705 = vmatpush.msra.mxu0 %v2031
    %2706 = vmatpush.msra.mxu0 %v2027
    %2707 = vmatpush.msra.mxu0 %v2023
    %2708 = vmatpush.msra.mxu0 %v2019
    %2709 = vmatpush.msra.mxu0 %v2015
    %2710 = vmatpush.msra.mxu0 %v2011
    %2711 = vmatpush.msra.mxu0 %v2007
    %2712 = vmatpush.msra.mxu0 %v2003
    %2713 = vmatpush.msra.mxu0 %v1999
    %2714 = vmatpush.msra.mxu0 %v1995
    %2715 = vmatpush.msra.mxu0 %v1991
    %2716 = vmatpush.msra.mxu0 %v1987
    %2717 = vmatmul.f32.gmra.mxu0 %v2655
    %v2718 = vpop.f32.mrf.mxu0
    %v2719 = vadd.f32 0.0, %v2718
    %2720 = vdwg.mxu0
    %2721 = vmatpush.msra.mxu0 %v2048
    %2722 = vmatpush.msra.mxu0 %v2044
    %2723 = vmatpush.msra.mxu0 %v2040
    %2724 = vmatpush.msra.mxu0 %v2036
    %2725 = vmatpush.msra.mxu0 %v2032
    %2726 = vmatpush.msra.mxu0 %v2028
    %2727 = vmatpush.msra.mxu0 %v2024
    %2728 = vmatpush.msra.mxu0 %v2020
    %2729 = vmatpush.msra.mxu0 %v2016
    %2730 = vmatpush.msra.mxu0 %v2012
    %2731 = vmatpush.msra.mxu0 %v2008
    %2732 = vmatpush.msra.mxu0 %v2004
    %2733 = vmatpush.msra.mxu0 %v2000
    %2734 = vmatpush.msra.mxu0 %v1996
    %2735 = vmatpush.msra.mxu0 %v1992
    %2736 = vmatpush.msra.mxu0 %v1988
    %2737 = vmatmul.f32.gmra.mxu0 %v2655
    %v2738 = vpop.f32.mrf.mxu0
    %v2739 = vadd.f32 0.0, %v2738
    %2740 = vdwg.mxu0
    %v2741 = vadd.f32 %v2657, %v2679
    %v2742 = vadd.f32 %v2658, %v2699
    %v2743 = vadd.f32 %v2659, %v2719
    %v2744 = vadd.f32 %v2660, %v2739
    %v2745 = vxor.u32 %v2741, 2147483648
    %v2746 = vxor.u32 %v2742, 2147483648
    %v2747 = vxor.u32 %v2743, 2147483648
    %v2748 = vmul.f32 %v2745, 1.442695
    %v2749 = vpow.pop %v2748
    %v2750 = vmul.f32 %v2746, 1.442695
    %v2751 = vpow.pop %v2750
    %v2752 = vmul.f32 %v2747, 1.442695
    %v2753 = vpow.pop %v2752
    %v2754 = vadd.f32 %v2749, 1.0
    %v2755 = vadd.f32 %v2751, 1.0
    %v2756 = vadd.f32 %v2753, 1.0
    %v2757 = vrcp.pop %v2754
    %v2758 = vmul.f32 %v2754, %v2757
    %v2759 = vsub.f32 1.0, %v2758
    %v2760 = vmul.f32 %v2757, %v2759
    %v2761 = vadd.f32 %v2757, %v2760
    %vm2762 = vweird.f32 %v2754
    %vm2763 = vweird.f32 %v2757
    %vm2764 = vmor %vm2762, %vm2763
    %v2765 = vsel %vm2764, %v2757, %v2761
    %v2766 = vand.u32 2147483647, %v2754
    %vm2767 = vcmp.eq.f32.partialorder %v2766, 8.507059e+37
    %v2768 = vand.u32 %v2754, 2147483648
    %v2769 = vor.u32 1.1754944e-38, %v2768
    %v2770 = vsel %vm2767, %v2769, %v2765
    %v2771 = vmul.f32 1.0, %v2770
    %v2772 = vrcp.pop %v2755
    %v2773 = vmul.f32 %v2755, %v2772
    %v2774 = vsub.f32 1.0, %v2773
    %v2775 = vmul.f32 %v2772, %v2774
    %v2776 = vadd.f32 %v2772, %v2775
    %vm2777 = vweird.f32 %v2755
    %vm2778 = vweird.f32 %v2772
    %vm2779 = vmor %vm2777, %vm2778
    %v2780 = vsel %vm2779, %v2772, %v2776
    %v2781 = vand.u32 2147483647, %v2755
    %vm2782 = vcmp.eq.f32.partialorder %v2781, 8.507059e+37
    %v2783 = vand.u32 %v2755, 2147483648
    %v2784 = vor.u32 1.1754944e-38, %v2783
    %v2785 = vsel %vm2782, %v2784, %v2780
    %v2786 = vmul.f32 1.0, %v2785
    %v2787 = vrcp.pop %v2756
    %v2788 = vmul.f32 %v2756, %v2787
    %v2789 = vsub.f32 1.0, %v2788
    %v2790 = vmul.f32 %v2787, %v2789
    %v2791 = vadd.f32 %v2787, %v2790
    %vm2792 = vweird.f32 %v2756
    %vm2793 = vweird.f32 %v2787
    %vm2794 = vmor %vm2792, %vm2793
    %v2795 = vsel %vm2794, %v2787, %v2791
    %v2796 = vand.u32 2147483647, %v2756
    %vm2797 = vcmp.eq.f32.partialorder %v2796, 8.507059e+37
    %v2798 = vand.u32 %v2756, 2147483648
    %v2799 = vor.u32 1.1754944e-38, %v2798
    %v2800 = vsel %vm2797, %v2799, %v2795
    %v2801 = vmul.f32 1.0, %v2800
    %v2802 = vtanh.pop %v2744
    %v2803 = vmul.f32 %v2786, %v2653
    %v2804 = vmul.f32 %v2771, %v2802
    %v2805 = vadd.f32 %v2803, %v2804
    %v2806 = vtanh.pop %v2805
    %v2807 = vmul.f32 %v2801, %v2806
    %2808 = vst [vmem:[%s1243] sm:$0xff] %v2807
    %v2809 = vld [vmem:[%s1245] sm:$0xff]
    %v2810 = vld [vmem:[%s1245 + $0x8] sm:$0xff]
    %v2811 = vld [vmem:[%s1245 + $0x10] sm:$0xff]
    %v2812 = vld [vmem:[%s1245 + $0x18] sm:$0xff]
    %2813 = vmatpush.msra.mxu0 %v2045
    %2814 = vmatpush.msra.mxu0 %v2041
    %2815 = vmatpush.msra.mxu0 %v2037
    %2816 = vmatpush.msra.mxu0 %v2033
    %2817 = vmatpush.msra.mxu0 %v2029
    %2818 = vmatpush.msra.mxu0 %v2025
    %2819 = vmatpush.msra.mxu0 %v2021
    %2820 = vmatpush.msra.mxu0 %v2017
    %2821 = vmatpush.msra.mxu0 %v2013
    %2822 = vmatpush.msra.mxu0 %v2009
    %2823 = vmatpush.msra.mxu0 %v2005
    %2824 = vmatpush.msra.mxu0 %v2001
    %2825 = vmatpush.msra.mxu0 %v1997
    %2826 = vmatpush.msra.mxu0 %v1993
    %2827 = vmatpush.msra.mxu0 %v1989
    %2828 = vmatpush.msra.mxu0 %v1985
    %2829 = vmatmul.f32.gmra.mxu0 %v2807
    %v2830 = vpop.f32.mrf.mxu0
    %v2831 = vadd.f32 0.0, %v2830
    %2832 = vdwg.mxu0
    %2833 = vmatpush.msra.mxu0 %v2046
    %2834 = vmatpush.msra.mxu0 %v2042
    %2835 = vmatpush.msra.mxu0 %v2038
    %2836 = vmatpush.msra.mxu0 %v2034
    %2837 = vmatpush.msra.mxu0 %v2030
    %2838 = vmatpush.msra.mxu0 %v2026
    %2839 = vmatpush.msra.mxu0 %v2022
    %2840 = vmatpush.msra.mxu0 %v2018
    %2841 = vmatpush.msra.mxu0 %v2014
    %2842 = vmatpush.msra.mxu0 %v2010
    %2843 = vmatpush.msra.mxu0 %v2006
    %2844 = vmatpush.msra.mxu0 %v2002
    %2845 = vmatpush.msra.mxu0 %v1998
    %2846 = vmatpush.msra.mxu0 %v1994
    %2847 = vmatpush.msra.mxu0 %v1990
    %2848 = vmatpush.msra.mxu0 %v1986
    %2849 = vmatmul.f32.gmra.mxu0 %v2807
    %v2850 = vpop.f32.mrf.mxu0
    %v2851 = vadd.f32 0.0, %v2850
    %2852 = vdwg.mxu0
    %2853 = vmatpush.msra.mxu0 %v2047
    %2854 = vmatpush.msra.mxu0 %v2043
    %2855 = vmatpush.msra.mxu0 %v2039
    %2856 = vmatpush.msra.mxu0 %v2035
    %2857 = vmatpush.msra.mxu0 %v2031
    %2858 = vmatpush.msra.mxu0 %v2027
    %2859 = vmatpush.msra.mxu0 %v2023
    %2860 = vmatpush.msra.mxu0 %v2019
    %2861 = vmatpush.msra.mxu0 %v2015
    %2862 = vmatpush.msra.mxu0 %v2011
    %2863 = vmatpush.msra.mxu0 %v2007
    %2864 = vmatpush.msra.mxu0 %v2003
    %2865 = vmatpush.msra.mxu0 %v1999
    %2866 = vmatpush.msra.mxu0 %v1995
    %2867 = vmatpush.msra.mxu0 %v1991
    %2868 = vmatpush.msra.mxu0 %v1987
    %2869 = vmatmul.f32.gmra.mxu0 %v2807
    %v2870 = vpop.f32.mrf.mxu0
    %v2871 = vadd.f32 0.0, %v2870
    %2872 = vdwg.mxu0
    %2873 = vmatpush.msra.mxu0 %v2048
    %2874 = vmatpush.msra.mxu0 %v2044
    %2875 = vmatpush.msra.mxu0 %v2040
    %2876 = vmatpush.msra.mxu0 %v2036
    %2877 = vmatpush.msra.mxu0 %v2032
    %2878 = vmatpush.msra.mxu0 %v2028
    %2879 = vmatpush.msra.mxu0 %v2024
    %2880 = vmatpush.msra.mxu0 %v2020
    %2881 = vmatpush.msra.mxu0 %v2016
    %2882 = vmatpush.msra.mxu0 %v2012
    %2883 = vmatpush.msra.mxu0 %v2008
    %2884 = vmatpush.msra.mxu0 %v2004
    %2885 = vmatpush.msra.mxu0 %v2000
    %2886 = vmatpush.msra.mxu0 %v1996
    %2887 = vmatpush.msra.mxu0 %v1992
    %2888 = vmatpush.msra.mxu0 %v1988
    %2889 = vmatmul.f32.gmra.mxu0 %v2807
    %v2890 = vpop.f32.mrf.mxu0
    %v2891 = vadd.f32 0.0, %v2890
    %2892 = vdwg.mxu0
    %v2893 = vadd.f32 %v2809, %v2831
    %v2894 = vadd.f32 %v2810, %v2851
    %v2895 = vadd.f32 %v2811, %v2871
    %v2896 = vadd.f32 %v2812, %v2891
    %v2897 = vxor.u32 %v2893, 2147483648
    %v2898 = vxor.u32 %v2894, 2147483648
    %v2899 = vxor.u32 %v2895, 2147483648
    %v2900 = vmul.f32 %v2897, 1.442695
    %v2901 = vpow.pop %v2900
    %v2902 = vmul.f32 %v2898, 1.442695
    %v2903 = vpow.pop %v2902
    %v2904 = vmul.f32 %v2899, 1.442695
    %v2905 = vpow.pop %v2904
    %v2906 = vadd.f32 %v2901, 1.0
    %v2907 = vadd.f32 %v2903, 1.0
    %v2908 = vadd.f32 %v2905, 1.0
    %v2909 = vrcp.pop %v2906
    %v2910 = vmul.f32 %v2906, %v2909
    %v2911 = vsub.f32 1.0, %v2910
    %v2912 = vmul.f32 %v2909, %v2911
    %v2913 = vadd.f32 %v2909, %v2912
    %vm2914 = vweird.f32 %v2906
    %vm2915 = vweird.f32 %v2909
    %vm2916 = vmor %vm2914, %vm2915
    %v2917 = vsel %vm2916, %v2909, %v2913
    %v2918 = vand.u32 2147483647, %v2906
    %vm2919 = vcmp.eq.f32.partialorder %v2918, 8.507059e+37
    %v2920 = vand.u32 %v2906, 2147483648
    %v2921 = vor.u32 1.1754944e-38, %v2920
    %v2922 = vsel %vm2919, %v2921, %v2917
    %v2923 = vmul.f32 1.0, %v2922
    %v2924 = vrcp.pop %v2907
    %v2925 = vmul.f32 %v2907, %v2924
    %v2926 = vsub.f32 1.0, %v2925
    %v2927 = vmul.f32 %v2924, %v2926
    %v2928 = vadd.f32 %v2924, %v2927
    %vm2929 = vweird.f32 %v2907
    %vm2930 = vweird.f32 %v2924
    %vm2931 = vmor %vm2929, %vm2930
    %v2932 = vsel %vm2931, %v2924, %v2928
    %v2933 = vand.u32 2147483647, %v2907
    %vm2934 = vcmp.eq.f32.partialorder %v2933, 8.507059e+37
    %v2935 = vand.u32 %v2907, 2147483648
    %v2936 = vor.u32 1.1754944e-38, %v2935
    %v2937 = vsel %vm2934, %v2936, %v2932
    %v2938 = vmul.f32 1.0, %v2937
    %v2939 = vrcp.pop %v2908
    %v2940 = vmul.f32 %v2908, %v2939
    %v2941 = vsub.f32 1.0, %v2940
    %v2942 = vmul.f32 %v2939, %v2941
    %v2943 = vadd.f32 %v2939, %v2942
    %vm2944 = vweird.f32 %v2908
    %vm2945 = vweird.f32 %v2939
    %vm2946 = vmor %vm2944, %vm2945
    %v2947 = vsel %vm2946, %v2939, %v2943
    %v2948 = vand.u32 2147483647, %v2908
    %vm2949 = vcmp.eq.f32.partialorder %v2948, 8.507059e+37
    %v2950 = vand.u32 %v2908, 2147483648
    %v2951 = vor.u32 1.1754944e-38, %v2950
    %v2952 = vsel %vm2949, %v2951, %v2947
    %v2953 = vmul.f32 1.0, %v2952
    %v2954 = vtanh.pop %v2896
    %v2955 = vmul.f32 %v2938, %v2805
    %v2956 = vmul.f32 %v2923, %v2954
    %v2957 = vadd.f32 %v2955, %v2956
    %v2958 = vtanh.pop %v2957
    %v2959 = vmul.f32 %v2953, %v2958
    %2960 = vst [vmem:[%s1397] sm:$0xff] %v2959
    %v2961 = vld [vmem:[%s1399] sm:$0xff]
    %v2962 = vld [vmem:[%s1399 + $0x8] sm:$0xff]
    %v2963 = vld [vmem:[%s1399 + $0x10] sm:$0xff]
    %v2964 = vld [vmem:[%s1399 + $0x18] sm:$0xff]
    %2965 = vmatpush.msra.mxu0 %v2045
    %2966 = vmatpush.msra.mxu0 %v2041
    %2967 = vmatpush.msra.mxu0 %v2037
    %2968 = vmatpush.msra.mxu0 %v2033
    %2969 = vmatpush.msra.mxu0 %v2029
    %2970 = vmatpush.msra.mxu0 %v2025
    %2971 = vmatpush.msra.mxu0 %v2021
    %2972 = vmatpush.msra.mxu0 %v2017
    %2973 = vmatpush.msra.mxu0 %v2013
    %2974 = vmatpush.msra.mxu0 %v2009
    %2975 = vmatpush.msra.mxu0 %v2005
    %2976 = vmatpush.msra.mxu0 %v2001
    %2977 = vmatpush.msra.mxu0 %v1997
    %2978 = vmatpush.msra.mxu0 %v1993
    %2979 = vmatpush.msra.mxu0 %v1989
    %2980 = vmatpush.msra.mxu0 %v1985
    %2981 = vmatmul.f32.gmra.mxu0 %v2959
    %v2982 = vpop.f32.mrf.mxu0
    %v2983 = vadd.f32 0.0, %v2982
    %2984 = vdwg.mxu0
    %2985 = vmatpush.msra.mxu0 %v2046
    %2986 = vmatpush.msra.mxu0 %v2042
    %2987 = vmatpush.msra.mxu0 %v2038
    %2988 = vmatpush.msra.mxu0 %v2034
    %2989 = vmatpush.msra.mxu0 %v2030
    %2990 = vmatpush.msra.mxu0 %v2026
    %2991 = vmatpush.msra.mxu0 %v2022
    %2992 = vmatpush.msra.mxu0 %v2018
    %2993 = vmatpush.msra.mxu0 %v2014
    %2994 = vmatpush.msra.mxu0 %v2010
    %2995 = vmatpush.msra.mxu0 %v2006
    %2996 = vmatpush.msra.mxu0 %v2002
    %2997 = vmatpush.msra.mxu0 %v1998
    %2998 = vmatpush.msra.mxu0 %v1994
    %2999 = vmatpush.msra.mxu0 %v1990
    %3000 = vmatpush.msra.mxu0 %v1986
    %3001 = vmatmul.f32.gmra.mxu0 %v2959
    %v3002 = vpop.f32.mrf.mxu0
    %v3003 = vadd.f32 0.0, %v3002
    %3004 = vdwg.mxu0
    %3005 = vmatpush.msra.mxu0 %v2047
    %3006 = vmatpush.msra.mxu0 %v2043
    %3007 = vmatpush.msra.mxu0 %v2039
    %3008 = vmatpush.msra.mxu0 %v2035
    %3009 = vmatpush.msra.mxu0 %v2031
    %3010 = vmatpush.msra.mxu0 %v2027
    %3011 = vmatpush.msra.mxu0 %v2023
    %3012 = vmatpush.msra.mxu0 %v2019
    %3013 = vmatpush.msra.mxu0 %v2015
    %3014 = vmatpush.msra.mxu0 %v2011
    %3015 = vmatpush.msra.mxu0 %v2007
    %3016 = vmatpush.msra.mxu0 %v2003
    %3017 = vmatpush.msra.mxu0 %v1999
    %3018 = vmatpush.msra.mxu0 %v1995
    %3019 = vmatpush.msra.mxu0 %v1991
    %3020 = vmatpush.msra.mxu0 %v1987
    %3021 = vmatmul.f32.gmra.mxu0 %v2959
    %v3022 = vpop.f32.mrf.mxu0
    %v3023 = vadd.f32 0.0, %v3022
    %3024 = vdwg.mxu0
    %3025 = vmatpush.msra.mxu0 %v2048
    %3026 = vmatpush.msra.mxu0 %v2044
    %3027 = vmatpush.msra.mxu0 %v2040
    %3028 = vmatpush.msra.mxu0 %v2036
    %3029 = vmatpush.msra.mxu0 %v2032
    %3030 = vmatpush.msra.mxu0 %v2028
    %3031 = vmatpush.msra.mxu0 %v2024
    %3032 = vmatpush.msra.mxu0 %v2020
    %3033 = vmatpush.msra.mxu0 %v2016
    %3034 = vmatpush.msra.mxu0 %v2012
    %3035 = vmatpush.msra.mxu0 %v2008
    %3036 = vmatpush.msra.mxu0 %v2004
    %3037 = vmatpush.msra.mxu0 %v2000
    %3038 = vmatpush.msra.mxu0 %v1996
    %3039 = vmatpush.msra.mxu0 %v1992
    %3040 = vmatpush.msra.mxu0 %v1988
    %3041 = vmatmul.f32.gmra.mxu0 %v2959
    %v3042 = vpop.f32.mrf.mxu0
    %v3043 = vadd.f32 0.0, %v3042
    %3044 = vdwg.mxu0
    %v3045 = vadd.f32 %v2961, %v2983
    %v3046 = vadd.f32 %v2962, %v3003
    %v3047 = vadd.f32 %v2963, %v3023
    %v3048 = vadd.f32 %v2964, %v3043
    %v3049 = vxor.u32 %v3045, 2147483648
    %v3050 = vxor.u32 %v3046, 2147483648
    %v3051 = vxor.u32 %v3047, 2147483648
    %v3052 = vmul.f32 %v3049, 1.442695
    %v3053 = vpow.pop %v3052
    %v3054 = vmul.f32 %v3050, 1.442695
    %v3055 = vpow.pop %v3054
    %v3056 = vmul.f32 %v3051, 1.442695
    %v3057 = vpow.pop %v3056
    %v3058 = vadd.f32 %v3053, 1.0
    %v3059 = vadd.f32 %v3055, 1.0
    %v3060 = vadd.f32 %v3057, 1.0
    %v3061 = vrcp.pop %v3058
    %v3062 = vmul.f32 %v3058, %v3061
    %v3063 = vsub.f32 1.0, %v3062
    %v3064 = vmul.f32 %v3061, %v3063
    %v3065 = vadd.f32 %v3061, %v3064
    %vm3066 = vweird.f32 %v3058
    %vm3067 = vweird.f32 %v3061
    %vm3068 = vmor %vm3066, %vm3067
    %v3069 = vsel %vm3068, %v3061, %v3065
    %v3070 = vand.u32 2147483647, %v3058
    %vm3071 = vcmp.eq.f32.partialorder %v3070, 8.507059e+37
    %v3072 = vand.u32 %v3058, 2147483648
    %v3073 = vor.u32 1.1754944e-38, %v3072
    %v3074 = vsel %vm3071, %v3073, %v3069
    %v3075 = vmul.f32 1.0, %v3074
    %v3076 = vrcp.pop %v3059
    %v3077 = vmul.f32 %v3059, %v3076
    %v3078 = vsub.f32 1.0, %v3077
    %v3079 = vmul.f32 %v3076, %v3078
    %v3080 = vadd.f32 %v3076, %v3079
    %vm3081 = vweird.f32 %v3059
    %vm3082 = vweird.f32 %v3076
    %vm3083 = vmor %vm3081, %vm3082
    %v3084 = vsel %vm3083, %v3076, %v3080
    %v3085 = vand.u32 2147483647, %v3059
    %vm3086 = vcmp.eq.f32.partialorder %v3085, 8.507059e+37
    %v3087 = vand.u32 %v3059, 2147483648
    %v3088 = vor.u32 1.1754944e-38, %v3087
    %v3089 = vsel %vm3086, %v3088, %v3084
    %v3090 = vmul.f32 1.0, %v3089
    %v3091 = vrcp.pop %v3060
    %v3092 = vmul.f32 %v3060, %v3091
    %v3093 = vsub.f32 1.0, %v3092
    %v3094 = vmul.f32 %v3091, %v3093
    %v3095 = vadd.f32 %v3091, %v3094
    %vm3096 = vweird.f32 %v3060
    %vm3097 = vweird.f32 %v3091
    %vm3098 = vmor %vm3096, %vm3097
    %v3099 = vsel %vm3098, %v3091, %v3095
    %v3100 = vand.u32 2147483647, %v3060
    %vm3101 = vcmp.eq.f32.partialorder %v3100, 8.507059e+37
    %v3102 = vand.u32 %v3060, 2147483648
    %v3103 = vor.u32 1.1754944e-38, %v3102
    %v3104 = vsel %vm3101, %v3103, %v3099
    %v3105 = vmul.f32 1.0, %v3104
    %v3106 = vtanh.pop %v3048
    %v3107 = vmul.f32 %v3090, %v2957
    %v3108 = vmul.f32 %v3075, %v3106
    %v3109 = vadd.f32 %v3107, %v3108
    %v3110 = vtanh.pop %v3109
    %v3111 = vmul.f32 %v3105, %v3110
    %3112 = vst [vmem:[%s1551] sm:$0xff] %v3111
    %v3113 = vld [vmem:[%s1553] sm:$0xff]
    %v3114 = vld [vmem:[%s1553 + $0x8] sm:$0xff]
    %v3115 = vld [vmem:[%s1553 + $0x10] sm:$0xff]
    %v3116 = vld [vmem:[%s1553 + $0x18] sm:$0xff]
    %3117 = vmatpush.msra.mxu0 %v2045
    %3118 = vmatpush.msra.mxu0 %v2041
    %3119 = vmatpush.msra.mxu0 %v2037
    %3120 = vmatpush.msra.mxu0 %v2033
    %3121 = vmatpush.msra.mxu0 %v2029
    %3122 = vmatpush.msra.mxu0 %v2025
    %3123 = vmatpush.msra.mxu0 %v2021
    %3124 = vmatpush.msra.mxu0 %v2017
    %3125 = vmatpush.msra.mxu0 %v2013
    %3126 = vmatpush.msra.mxu0 %v2009
    %3127 = vmatpush.msra.mxu0 %v2005
    %3128 = vmatpush.msra.mxu0 %v2001
    %3129 = vmatpush.msra.mxu0 %v1997
    %3130 = vmatpush.msra.mxu0 %v1993
    %3131 = vmatpush.msra.mxu0 %v1989
    %3132 = vmatpush.msra.mxu0 %v1985
    %3133 = vmatmul.f32.gmra.mxu0 %v3111
    %v3134 = vpop.f32.mrf.mxu0
    %v3135 = vadd.f32 0.0, %v3134
    %3136 = vdwg.mxu0
    %3137 = vmatpush.msra.mxu0 %v2046
    %3138 = vmatpush.msra.mxu0 %v2042
    %3139 = vmatpush.msra.mxu0 %v2038
    %3140 = vmatpush.msra.mxu0 %v2034
    %3141 = vmatpush.msra.mxu0 %v2030
    %3142 = vmatpush.msra.mxu0 %v2026
    %3143 = vmatpush.msra.mxu0 %v2022
    %3144 = vmatpush.msra.mxu0 %v2018
    %3145 = vmatpush.msra.mxu0 %v2014
    %3146 = vmatpush.msra.mxu0 %v2010
    %3147 = vmatpush.msra.mxu0 %v2006
    %3148 = vmatpush.msra.mxu0 %v2002
    %3149 = vmatpush.msra.mxu0 %v1998
    %3150 = vmatpush.msra.mxu0 %v1994
    %3151 = vmatpush.msra.mxu0 %v1990
    %3152 = vmatpush.msra.mxu0 %v1986
    %3153 = vmatmul.f32.gmra.mxu0 %v3111
    %v3154 = vpop.f32.mrf.mxu0
    %v3155 = vadd.f32 0.0, %v3154
    %3156 = vdwg.mxu0
    %3157 = vmatpush.msra.mxu0 %v2047
    %3158 = vmatpush.msra.mxu0 %v2043
    %3159 = vmatpush.msra.mxu0 %v2039
    %3160 = vmatpush.msra.mxu0 %v2035
    %3161 = vmatpush.msra.mxu0 %v2031
    %3162 = vmatpush.msra.mxu0 %v2027
    %3163 = vmatpush.msra.mxu0 %v2023
    %3164 = vmatpush.msra.mxu0 %v2019
    %3165 = vmatpush.msra.mxu0 %v2015
    %3166 = vmatpush.msra.mxu0 %v2011
    %3167 = vmatpush.msra.mxu0 %v2007
    %3168 = vmatpush.msra.mxu0 %v2003
    %3169 = vmatpush.msra.mxu0 %v1999
    %3170 = vmatpush.msra.mxu0 %v1995
    %3171 = vmatpush.msra.mxu0 %v1991
    %3172 = vmatpush.msra.mxu0 %v1987
    %3173 = vmatmul.f32.gmra.mxu0 %v3111
    %v3174 = vpop.f32.mrf.mxu0
    %v3175 = vadd.f32 0.0, %v3174
    %3176 = vdwg.mxu0
    %3177 = vmatpush.msra.mxu0 %v2048
    %3178 = vmatpush.msra.mxu0 %v2044
    %3179 = vmatpush.msra.mxu0 %v2040
    %3180 = vmatpush.msra.mxu0 %v2036
    %3181 = vmatpush.msra.mxu0 %v2032
    %3182 = vmatpush.msra.mxu0 %v2028
    %3183 = vmatpush.msra.mxu0 %v2024
    %3184 = vmatpush.msra.mxu0 %v2020
    %3185 = vmatpush.msra.mxu0 %v2016
    %3186 = vmatpush.msra.mxu0 %v2012
    %3187 = vmatpush.msra.mxu0 %v2008
    %3188 = vmatpush.msra.mxu0 %v2004
    %3189 = vmatpush.msra.mxu0 %v2000
    %3190 = vmatpush.msra.mxu0 %v1996
    %3191 = vmatpush.msra.mxu0 %v1992
    %3192 = vmatpush.msra.mxu0 %v1988
    %3193 = vmatmul.f32.gmra.mxu0 %v3111
    %v3194 = vpop.f32.mrf.mxu0
    %v3195 = vadd.f32 0.0, %v3194
    %3196 = vdwg.mxu0
    %v3197 = vadd.f32 %v3113, %v3135
    %v3198 = vadd.f32 %v3114, %v3155
    %v3199 = vadd.f32 %v3115, %v3175
    %v3200 = vadd.f32 %v3116, %v3195
    %v3201 = vxor.u32 %v3197, 2147483648
    %v3202 = vxor.u32 %v3198, 2147483648
    %v3203 = vxor.u32 %v3199, 2147483648
    %v3204 = vmul.f32 %v3201, 1.442695
    %v3205 = vpow.pop %v3204
    %v3206 = vmul.f32 %v3202, 1.442695
    %v3207 = vpow.pop %v3206
    %v3208 = vmul.f32 %v3203, 1.442695
    %v3209 = vpow.pop %v3208
    %v3210 = vadd.f32 %v3205, 1.0
    %v3211 = vadd.f32 %v3207, 1.0
    %v3212 = vadd.f32 %v3209, 1.0
    %v3213 = vrcp.pop %v3210
    %v3214 = vmul.f32 %v3210, %v3213
    %v3215 = vsub.f32 1.0, %v3214
    %v3216 = vmul.f32 %v3213, %v3215
    %v3217 = vadd.f32 %v3213, %v3216
    %vm3218 = vweird.f32 %v3210
    %vm3219 = vweird.f32 %v3213
    %vm3220 = vmor %vm3218, %vm3219
    %v3221 = vsel %vm3220, %v3213, %v3217
    %v3222 = vand.u32 2147483647, %v3210
    %vm3223 = vcmp.eq.f32.partialorder %v3222, 8.507059e+37
    %v3224 = vand.u32 %v3210, 2147483648
    %v3225 = vor.u32 1.1754944e-38, %v3224
    %v3226 = vsel %vm3223, %v3225, %v3221
    %v3227 = vmul.f32 1.0, %v3226
    %v3228 = vrcp.pop %v3211
    %v3229 = vmul.f32 %v3211, %v3228
    %v3230 = vsub.f32 1.0, %v3229
    %v3231 = vmul.f32 %v3228, %v3230
    %v3232 = vadd.f32 %v3228, %v3231
    %vm3233 = vweird.f32 %v3211
    %vm3234 = vweird.f32 %v3228
    %vm3235 = vmor %vm3233, %vm3234
    %v3236 = vsel %vm3235, %v3228, %v3232
    %v3237 = vand.u32 2147483647, %v3211
    %vm3238 = vcmp.eq.f32.partialorder %v3237, 8.507059e+37
    %v3239 = vand.u32 %v3211, 2147483648
    %v3240 = vor.u32 1.1754944e-38, %v3239
    %v3241 = vsel %vm3238, %v3240, %v3236
    %v3242 = vmul.f32 1.0, %v3241
    %v3243 = vrcp.pop %v3212
    %v3244 = vmul.f32 %v3212, %v3243
    %v3245 = vsub.f32 1.0, %v3244
    %v3246 = vmul.f32 %v3243, %v3245
    %v3247 = vadd.f32 %v3243, %v3246
    %vm3248 = vweird.f32 %v3212
    %vm3249 = vweird.f32 %v3243
    %vm3250 = vmor %vm3248, %vm3249
    %v3251 = vsel %vm3250, %v3243, %v3247
    %v3252 = vand.u32 2147483647, %v3212
    %vm3253 = vcmp.eq.f32.partialorder %v3252, 8.507059e+37
    %v3254 = vand.u32 %v3212, 2147483648
    %v3255 = vor.u32 1.1754944e-38, %v3254
    %v3256 = vsel %vm3253, %v3255, %v3251
    %v3257 = vmul.f32 1.0, %v3256
    %v3258 = vtanh.pop %v3200
    %v3259 = vmul.f32 %v3242, %v3109
    %v3260 = vmul.f32 %v3227, %v3258
    %v3261 = vadd.f32 %v3259, %v3260
    %v3262 = vtanh.pop %v3261
    %v3263 = vmul.f32 %v3257, %v3262
    %3264 = vst [vmem:[%s1705] sm:$0xff] %v3263
    %v3265 = vld [vmem:[#allocation2] sm:$0xff]
    %v3266 = vld [vmem:[#allocation2 + $0x8] sm:$0xff]
    %v3267 = vld [vmem:[#allocation2 + $0x10] sm:$0xff]
    %v3268 = vld [vmem:[#allocation2 + $0x18] sm:$0xff]
    %v3269 = vld [vmem:[#allocation2 + $0x20] sm:$0xff]
    %v3270 = vld [vmem:[#allocation2 + $0x28] sm:$0xff]
    %v3271 = vld [vmem:[#allocation2 + $0x30] sm:$0xff]
    %v3272 = vld [vmem:[#allocation2 + $0x38] sm:$0xff]
    %v3273 = vld [vmem:[#allocation11] sm:$0xff]
    %v3274 = vld [vmem:[#allocation11 + $0x8] sm:$0xff]
    %v3275 = vld [vmem:[#allocation11 + $0x10] sm:$0xff]
    %v3276 = vld [vmem:[#allocation11 + $0x18] sm:$0xff]
    %v3277 = vld [vmem:[#allocation11 + $0x20] sm:$0xff]
    %v3278 = vld [vmem:[#allocation11 + $0x28] sm:$0xff]
    %v3279 = vld [vmem:[#allocation11 + $0x30] sm:$0xff]
    %v3280 = vld [vmem:[#allocation11 + $0x38] sm:$0xff]
    %v3281 = vld [vmem:[#allocation11 + $0x40] sm:$0xff]
    %v3282 = vld [vmem:[#allocation11 + $0x48] sm:$0xff]
    %v3283 = vld [vmem:[#allocation11 + $0x50] sm:$0xff]
    %v3284 = vld [vmem:[#allocation11 + $0x58] sm:$0xff]
    %v3285 = vld [vmem:[#allocation11 + $0x60] sm:$0xff]
    %v3286 = vld [vmem:[#allocation11 + $0x68] sm:$0xff]
    %v3287 = vld [vmem:[#allocation11 + $0x70] sm:$0xff]
    %v3288 = vld [vmem:[#allocation11 + $0x78] sm:$0xff]
    %v3289 = vld [vmem:[#allocation11 + $0x80] sm:$0xff]
    %v3290 = vld [vmem:[#allocation11 + $0x88] sm:$0xff]
    %v3291 = vld [vmem:[#allocation11 + $0x90] sm:$0xff]
    %v3292 = vld [vmem:[#allocation11 + $0x98] sm:$0xff]
    %v3293 = vld [vmem:[#allocation11 + $0xa0] sm:$0xff]
    %v3294 = vld [vmem:[#allocation11 + $0xa8] sm:$0xff]
    %v3295 = vld [vmem:[#allocation11 + $0xb0] sm:$0xff]
    %v3296 = vld [vmem:[#allocation11 + $0xb8] sm:$0xff]
    %v3297 = vld [vmem:[#allocation11 + $0xc0] sm:$0xff]
    %v3298 = vld [vmem:[#allocation11 + $0xc8] sm:$0xff]
    %v3299 = vld [vmem:[#allocation11 + $0xd0] sm:$0xff]
    %v3300 = vld [vmem:[#allocation11 + $0xd8] sm:$0xff]
    %v3301 = vld [vmem:[#allocation11 + $0xe0] sm:$0xff]
    %v3302 = vld [vmem:[#allocation11 + $0xe8] sm:$0xff]
    %v3303 = vld [vmem:[#allocation11 + $0xf0] sm:$0xff]
    %v3304 = vld [vmem:[#allocation11 + $0xf8] sm:$0xff]
    %v3305 = vld [vmem:[#allocation11 + $0x100] sm:$0xff]
    %v3306 = vld [vmem:[#allocation11 + $0x108] sm:$0xff]
    %v3307 = vld [vmem:[#allocation11 + $0x110] sm:$0xff]
    %v3308 = vld [vmem:[#allocation11 + $0x118] sm:$0xff]
    %v3309 = vld [vmem:[#allocation11 + $0x120] sm:$0xff]
    %v3310 = vld [vmem:[#allocation11 + $0x128] sm:$0xff]
    %v3311 = vld [vmem:[#allocation11 + $0x130] sm:$0xff]
    %v3312 = vld [vmem:[#allocation11 + $0x138] sm:$0xff]
    %v3313 = vld [vmem:[#allocation11 + $0x140] sm:$0xff]
    %v3314 = vld [vmem:[#allocation11 + $0x148] sm:$0xff]
    %v3315 = vld [vmem:[#allocation11 + $0x150] sm:$0xff]
    %v3316 = vld [vmem:[#allocation11 + $0x158] sm:$0xff]
    %v3317 = vld [vmem:[#allocation11 + $0x160] sm:$0xff]
    %v3318 = vld [vmem:[#allocation11 + $0x168] sm:$0xff]
    %v3319 = vld [vmem:[#allocation11 + $0x170] sm:$0xff]
    %v3320 = vld [vmem:[#allocation11 + $0x178] sm:$0xff]
    %v3321 = vld [vmem:[#allocation11 + $0x180] sm:$0xff]
    %v3322 = vld [vmem:[#allocation11 + $0x188] sm:$0xff]
    %v3323 = vld [vmem:[#allocation11 + $0x190] sm:$0xff]
    %v3324 = vld [vmem:[#allocation11 + $0x198] sm:$0xff]
    %v3325 = vld [vmem:[#allocation11 + $0x1a0] sm:$0xff]
    %v3326 = vld [vmem:[#allocation11 + $0x1a8] sm:$0xff]
    %v3327 = vld [vmem:[#allocation11 + $0x1b0] sm:$0xff]
    %v3328 = vld [vmem:[#allocation11 + $0x1b8] sm:$0xff]
    %v3329 = vld [vmem:[#allocation11 + $0x1c0] sm:$0xff]
    %v3330 = vld [vmem:[#allocation11 + $0x1c8] sm:$0xff]
    %v3331 = vld [vmem:[#allocation11 + $0x1d0] sm:$0xff]
    %v3332 = vld [vmem:[#allocation11 + $0x1d8] sm:$0xff]
    %v3333 = vld [vmem:[#allocation11 + $0x1e0] sm:$0xff]
    %v3334 = vld [vmem:[#allocation11 + $0x1e8] sm:$0xff]
    %v3335 = vld [vmem:[#allocation11 + $0x1f0] sm:$0xff]
    %v3336 = vld [vmem:[#allocation11 + $0x1f8] sm:$0xff]
    %v3337 = vld [vmem:[%s9] sm:$0xf]
    %v3339 = vperm.slane %v3337, 0
    %v3340 = vperm.slane %v3337, 1
    %v3341 = vperm.slane %v3337, 2
    %v3342 = vperm.slane %v3337, 3
    %3347 = vmatpush.msra.mxu0 %v3333
    %3348 = vmatpush.msra.mxu0 %v3329
    %3349 = vmatpush.msra.mxu0 %v3325
    %3350 = vmatpush.msra.mxu0 %v3321
    %3351 = vmatpush.msra.mxu0 %v3317
    %3352 = vmatpush.msra.mxu0 %v3313
    %3353 = vmatpush.msra.mxu0 %v3309
    %3354 = vmatpush.msra.mxu0 %v3305
    %3355 = vmatpush.msra.mxu0 %v3301
    %3356 = vmatpush.msra.mxu0 %v3297
    %3357 = vmatpush.msra.mxu0 %v3293
    %3358 = vmatpush.msra.mxu0 %v3289
    %3359 = vmatpush.msra.mxu0 %v3285
    %3360 = vmatpush.msra.mxu0 %v3281
    %3361 = vmatpush.msra.mxu0 %v3277
    %3362 = vmatpush.msra.mxu0 %v3273
    %3363 = vmatmul.f32.gmra.mxu0 %v3265
    %v3364 = vpop.f32.mrf.mxu0
    %v3365 = vadd.f32 %v3339, %v3364
    %3366 = vmatmul.f32.gmra.mxu0 %v3266
    %v3367 = vpop.f32.mrf.mxu0
    %v3368 = vadd.f32 %v3339, %v3367
    %3369 = vmatmul.f32.gmra.mxu0 %v3267
    %v3370 = vpop.f32.mrf.mxu0
    %v3371 = vadd.f32 %v3339, %v3370
    %3372 = vmatmul.f32.gmra.mxu0 %v3268
    %v3373 = vpop.f32.mrf.mxu0
    %v3374 = vadd.f32 %v3339, %v3373
    %3375 = vmatmul.f32.gmra.mxu0 %v3269
    %v3376 = vpop.f32.mrf.mxu0
    %v3377 = vadd.f32 %v3339, %v3376
    %3378 = vmatmul.f32.gmra.mxu0 %v3270
    %v3379 = vpop.f32.mrf.mxu0
    %v3380 = vadd.f32 %v3339, %v3379
    %3381 = vmatmul.f32.gmra.mxu0 %v3271
    %v3382 = vpop.f32.mrf.mxu0
    %v3383 = vadd.f32 %v3339, %v3382
    %3384 = vmatmul.f32.gmra.mxu0 %v3272
    %v3385 = vpop.f32.mrf.mxu0
    %v3386 = vadd.f32 %v3339, %v3385
    %3387 = vdwg.mxu0
    %3388 = vmatpush.msra.mxu0 %v3334
    %3389 = vmatpush.msra.mxu0 %v3330
    %3390 = vmatpush.msra.mxu0 %v3326
    %3391 = vmatpush.msra.mxu0 %v3322
    %3392 = vmatpush.msra.mxu0 %v3318
    %3393 = vmatpush.msra.mxu0 %v3314
    %3394 = vmatpush.msra.mxu0 %v3310
    %3395 = vmatpush.msra.mxu0 %v3306
    %3396 = vmatpush.msra.mxu0 %v3302
    %3397 = vmatpush.msra.mxu0 %v3298
    %3398 = vmatpush.msra.mxu0 %v3294
    %3399 = vmatpush.msra.mxu0 %v3290
    %3400 = vmatpush.msra.mxu0 %v3286
    %3401 = vmatpush.msra.mxu0 %v3282
    %3402 = vmatpush.msra.mxu0 %v3278
    %3403 = vmatpush.msra.mxu0 %v3274
    %3404 = vmatmul.f32.gmra.mxu0 %v3265
    %v3405 = vpop.f32.mrf.mxu0
    %v3406 = vadd.f32 %v3340, %v3405
    %3407 = vmatmul.f32.gmra.mxu0 %v3266
    %v3408 = vpop.f32.mrf.mxu0
    %v3409 = vadd.f32 %v3340, %v3408
    %3410 = vmatmul.f32.gmra.mxu0 %v3267
    %v3411 = vpop.f32.mrf.mxu0
    %v3412 = vadd.f32 %v3340, %v3411
    %3413 = vmatmul.f32.gmra.mxu0 %v3268
    %v3414 = vpop.f32.mrf.mxu0
    %v3415 = vadd.f32 %v3340, %v3414
    %3416 = vmatmul.f32.gmra.mxu0 %v3269
    %v3417 = vpop.f32.mrf.mxu0
    %v3418 = vadd.f32 %v3340, %v3417
    %3419 = vmatmul.f32.gmra.mxu0 %v3270
    %v3420 = vpop.f32.mrf.mxu0
    %v3421 = vadd.f32 %v3340, %v3420
    %3422 = vmatmul.f32.gmra.mxu0 %v3271
    %v3423 = vpop.f32.mrf.mxu0
    %v3424 = vadd.f32 %v3340, %v3423
    %3425 = vmatmul.f32.gmra.mxu0 %v3272
    %v3426 = vpop.f32.mrf.mxu0
    %v3427 = vadd.f32 %v3340, %v3426
    %3428 = vdwg.mxu0
    %3429 = vmatpush.msra.mxu0 %v3335
    %3430 = vmatpush.msra.mxu0 %v3331
    %3431 = vmatpush.msra.mxu0 %v3327
    %3432 = vmatpush.msra.mxu0 %v3323
    %3433 = vmatpush.msra.mxu0 %v3319
    %3434 = vmatpush.msra.mxu0 %v3315
    %3435 = vmatpush.msra.mxu0 %v3311
    %3436 = vmatpush.msra.mxu0 %v3307
    %3437 = vmatpush.msra.mxu0 %v3303
    %3438 = vmatpush.msra.mxu0 %v3299
    %3439 = vmatpush.msra.mxu0 %v3295
    %3440 = vmatpush.msra.mxu0 %v3291
    %3441 = vmatpush.msra.mxu0 %v3287
    %3442 = vmatpush.msra.mxu0 %v3283
    %3443 = vmatpush.msra.mxu0 %v3279
    %3444 = vmatpush.msra.mxu0 %v3275
    %3445 = vmatmul.f32.gmra.mxu0 %v3265
    %v3446 = vpop.f32.mrf.mxu0
    %v3447 = vadd.f32 %v3341, %v3446
    %3448 = vmatmul.f32.gmra.mxu0 %v3266
    %v3449 = vpop.f32.mrf.mxu0
    %v3450 = vadd.f32 %v3341, %v3449
    %3451 = vmatmul.f32.gmra.mxu0 %v3267
    %v3452 = vpop.f32.mrf.mxu0
    %v3453 = vadd.f32 %v3341, %v3452
    %3454 = vmatmul.f32.gmra.mxu0 %v3268
    %v3455 = vpop.f32.mrf.mxu0
    %v3456 = vadd.f32 %v3341, %v3455
    %3457 = vmatmul.f32.gmra.mxu0 %v3269
    %v3458 = vpop.f32.mrf.mxu0
    %v3459 = vadd.f32 %v3341, %v3458
    %3460 = vmatmul.f32.gmra.mxu0 %v3270
    %v3461 = vpop.f32.mrf.mxu0
    %v3462 = vadd.f32 %v3341, %v3461
    %3463 = vmatmul.f32.gmra.mxu0 %v3271
    %v3464 = vpop.f32.mrf.mxu0
    %v3465 = vadd.f32 %v3341, %v3464
    %3466 = vmatmul.f32.gmra.mxu0 %v3272
    %v3467 = vpop.f32.mrf.mxu0
    %v3468 = vadd.f32 %v3341, %v3467
    %3469 = vdwg.mxu0
    %3470 = vmatpush.msra.mxu0 %v3336
    %3471 = vmatpush.msra.mxu0 %v3332
    %3472 = vmatpush.msra.mxu0 %v3328
    %3473 = vmatpush.msra.mxu0 %v3324
    %3474 = vmatpush.msra.mxu0 %v3320
    %3475 = vmatpush.msra.mxu0 %v3316
    %3476 = vmatpush.msra.mxu0 %v3312
    %3477 = vmatpush.msra.mxu0 %v3308
    %3478 = vmatpush.msra.mxu0 %v3304
    %3479 = vmatpush.msra.mxu0 %v3300
    %3480 = vmatpush.msra.mxu0 %v3296
    %3481 = vmatpush.msra.mxu0 %v3292
    %3482 = vmatpush.msra.mxu0 %v3288
    %3483 = vmatpush.msra.mxu0 %v3284
    %3484 = vmatpush.msra.mxu0 %v3280
    %3485 = vmatpush.msra.mxu0 %v3276
    %3486 = vmatmul.f32.gmra.mxu0 %v3265
    %v3487 = vpop.f32.mrf.mxu0
    %v3488 = vadd.f32 %v3342, %v3487
    %3489 = vmatmul.f32.gmra.mxu0 %v3266
    %v3490 = vpop.f32.mrf.mxu0
    %v3491 = vadd.f32 %v3342, %v3490
    %3492 = vmatmul.f32.gmra.mxu0 %v3267
    %v3493 = vpop.f32.mrf.mxu0
    %v3494 = vadd.f32 %v3342, %v3493
    %3495 = vmatmul.f32.gmra.mxu0 %v3268
    %v3496 = vpop.f32.mrf.mxu0
    %v3497 = vadd.f32 %v3342, %v3496
    %3498 = vmatmul.f32.gmra.mxu0 %v3269
    %v3499 = vpop.f32.mrf.mxu0
    %v3500 = vadd.f32 %v3342, %v3499
    %3501 = vmatmul.f32.gmra.mxu0 %v3270
    %v3502 = vpop.f32.mrf.mxu0
    %v3503 = vadd.f32 %v3342, %v3502
    %3504 = vmatmul.f32.gmra.mxu0 %v3271
    %v3505 = vpop.f32.mrf.mxu0
    %v3506 = vadd.f32 %v3342, %v3505
    %3507 = vmatmul.f32.gmra.mxu0 %v3272
    %v3508 = vpop.f32.mrf.mxu0
    %v3509 = vadd.f32 %v3342, %v3508
    %3510 = vdwg.mxu0
    %3511 = vst [vmem:[#allocation3] sm:$0xff] %v3365
    %3512 = vst [vmem:[#allocation3 + $0x8] sm:$0xff] %v3406
    %3513 = vst [vmem:[#allocation3 + $0x10] sm:$0xff] %v3447
    %3514 = vst [vmem:[#allocation3 + $0x18] sm:$0xff] %v3488
    %3515 = vst [vmem:[#allocation3 + $0x20] sm:$0xff] %v3368
    %3516 = vst [vmem:[#allocation3 + $0x28] sm:$0xff] %v3409
    %3517 = vst [vmem:[#allocation3 + $0x30] sm:$0xff] %v3450
    %3518 = vst [vmem:[#allocation3 + $0x38] sm:$0xff] %v3491
    %3519 = vst [vmem:[#allocation3 + $0x40] sm:$0xff] %v3371
    %3520 = vst [vmem:[#allocation3 + $0x48] sm:$0xff] %v3412
    %3521 = vst [vmem:[#allocation3 + $0x50] sm:$0xff] %v3453
    %3522 = vst [vmem:[#allocation3 + $0x58] sm:$0xff] %v3494
    %3523 = vst [vmem:[#allocation3 + $0x60] sm:$0xff] %v3374
    %3524 = vst [vmem:[#allocation3 + $0x68] sm:$0xff] %v3415
    %3525 = vst [vmem:[#allocation3 + $0x70] sm:$0xff] %v3456
    %3526 = vst [vmem:[#allocation3 + $0x78] sm:$0xff] %v3497
    %3527 = vst [vmem:[#allocation3 + $0x80] sm:$0xff] %v3377
    %3528 = vst [vmem:[#allocation3 + $0x88] sm:$0xff] %v3418
    %3529 = vst [vmem:[#allocation3 + $0x90] sm:$0xff] %v3459
    %3530 = vst [vmem:[#allocation3 + $0x98] sm:$0xff] %v3500
    %3531 = vst [vmem:[#allocation3 + $0xa0] sm:$0xff] %v3380
    %3532 = vst [vmem:[#allocation3 + $0xa8] sm:$0xff] %v3421
    %3533 = vst [vmem:[#allocation3 + $0xb0] sm:$0xff] %v3462
    %3534 = vst [vmem:[#allocation3 + $0xb8] sm:$0xff] %v3503
    %3535 = vst [vmem:[#allocation3 + $0xc0] sm:$0xff] %v3383
    %3536 = vst [vmem:[#allocation3 + $0xc8] sm:$0xff] %v3424
    %3537 = vst [vmem:[#allocation3 + $0xd0] sm:$0xff] %v3465
    %3538 = vst [vmem:[#allocation3 + $0xd8] sm:$0xff] %v3506
    %3539 = vst [vmem:[#allocation3 + $0xe0] sm:$0xff] %v3386
    %3540 = vst [vmem:[#allocation3 + $0xe8] sm:$0xff] %v3427
    %3541 = vst [vmem:[#allocation3 + $0xf0] sm:$0xff] %v3468
    %3542 = vst [vmem:[#allocation3 + $0xf8] sm:$0xff] %v3509
    %v3543 = vld [vmem:[#allocation12] sm:$0xff]
    %v3544 = vld [vmem:[#allocation12 + $0x8] sm:$0xff]
    %v3545 = vld [vmem:[#allocation12 + $0x10] sm:$0xff]
    %v3546 = vld [vmem:[#allocation12 + $0x18] sm:$0xff]
    %v3547 = vld [vmem:[#allocation12 + $0x20] sm:$0xff]
    %v3548 = vld [vmem:[#allocation12 + $0x28] sm:$0xff]
    %v3549 = vld [vmem:[#allocation12 + $0x30] sm:$0xff]
    %v3550 = vld [vmem:[#allocation12 + $0x38] sm:$0xff]
    %v3551 = vld [vmem:[#allocation12 + $0x40] sm:$0xff]
    %v3552 = vld [vmem:[#allocation12 + $0x48] sm:$0xff]
    %v3553 = vld [vmem:[#allocation12 + $0x50] sm:$0xff]
    %v3554 = vld [vmem:[#allocation12 + $0x58] sm:$0xff]
    %v3555 = vld [vmem:[#allocation12 + $0x60] sm:$0xff]
    %v3556 = vld [vmem:[#allocation12 + $0x68] sm:$0xff]
    %v3557 = vld [vmem:[#allocation12 + $0x70] sm:$0xff]
    %v3558 = vld [vmem:[#allocation12 + $0x78] sm:$0xff]
    %v3559 = vld [vmem:[#allocation12 + $0x80] sm:$0xff]
    %v3560 = vld [vmem:[#allocation12 + $0x88] sm:$0xff]
    %v3561 = vld [vmem:[#allocation12 + $0x90] sm:$0xff]
    %v3562 = vld [vmem:[#allocation12 + $0x98] sm:$0xff]
    %v3563 = vld [vmem:[#allocation12 + $0xa0] sm:$0xff]
    %v3564 = vld [vmem:[#allocation12 + $0xa8] sm:$0xff]
    %v3565 = vld [vmem:[#allocation12 + $0xb0] sm:$0xff]
    %v3566 = vld [vmem:[#allocation12 + $0xb8] sm:$0xff]
    %v3567 = vld [vmem:[#allocation12 + $0xc0] sm:$0xff]
    %v3568 = vld [vmem:[#allocation12 + $0xc8] sm:$0xff]
    %v3569 = vld [vmem:[#allocation12 + $0xd0] sm:$0xff]
    %v3570 = vld [vmem:[#allocation12 + $0xd8] sm:$0xff]
    %v3571 = vld [vmem:[#allocation12 + $0xe0] sm:$0xff]
    %v3572 = vld [vmem:[#allocation12 + $0xe8] sm:$0xff]
    %v3573 = vld [vmem:[#allocation12 + $0xf0] sm:$0xff]
    %v3574 = vld [vmem:[#allocation12 + $0xf8] sm:$0xff]
    %v3575 = vld [vmem:[#allocation12 + $0x100] sm:$0xff]
    %v3576 = vld [vmem:[#allocation12 + $0x108] sm:$0xff]
    %v3577 = vld [vmem:[#allocation12 + $0x110] sm:$0xff]
    %v3578 = vld [vmem:[#allocation12 + $0x118] sm:$0xff]
    %v3579 = vld [vmem:[#allocation12 + $0x120] sm:$0xff]
    %v3580 = vld [vmem:[#allocation12 + $0x128] sm:$0xff]
    %v3581 = vld [vmem:[#allocation12 + $0x130] sm:$0xff]
    %v3582 = vld [vmem:[#allocation12 + $0x138] sm:$0xff]
    %v3583 = vld [vmem:[#allocation12 + $0x140] sm:$0xff]
    %v3584 = vld [vmem:[#allocation12 + $0x148] sm:$0xff]
    %v3585 = vld [vmem:[#allocation12 + $0x150] sm:$0xff]
    %v3586 = vld [vmem:[#allocation12 + $0x158] sm:$0xff]
    %v3587 = vld [vmem:[#allocation12 + $0x160] sm:$0xff]
    %v3588 = vld [vmem:[#allocation12 + $0x168] sm:$0xff]
    %v3589 = vld [vmem:[#allocation12 + $0x170] sm:$0xff]
    %v3590 = vld [vmem:[#allocation12 + $0x178] sm:$0xff]
    %v3591 = vld [vmem:[#allocation12 + $0x180] sm:$0xff]
    %v3592 = vld [vmem:[#allocation12 + $0x188] sm:$0xff]
    %v3593 = vld [vmem:[#allocation12 + $0x190] sm:$0xff]
    %v3594 = vld [vmem:[#allocation12 + $0x198] sm:$0xff]
    %v3595 = vld [vmem:[#allocation12 + $0x1a0] sm:$0xff]
    %v3596 = vld [vmem:[#allocation12 + $0x1a8] sm:$0xff]
    %v3597 = vld [vmem:[#allocation12 + $0x1b0] sm:$0xff]
    %v3598 = vld [vmem:[#allocation12 + $0x1b8] sm:$0xff]
    %v3599 = vld [vmem:[#allocation12 + $0x1c0] sm:$0xff]
    %v3600 = vld [vmem:[#allocation12 + $0x1c8] sm:$0xff]
    %v3601 = vld [vmem:[#allocation12 + $0x1d0] sm:$0xff]
    %v3602 = vld [vmem:[#allocation12 + $0x1d8] sm:$0xff]
    %v3603 = vld [vmem:[#allocation12 + $0x1e0] sm:$0xff]
    %v3604 = vld [vmem:[#allocation12 + $0x1e8] sm:$0xff]
    %v3605 = vld [vmem:[#allocation12 + $0x1f0] sm:$0xff]
    %v3606 = vld [vmem:[#allocation12 + $0x1f8] sm:$0xff]
    %v3607 = vld [vmem:[#allocation3] sm:$0xff]
    %v3608 = vld [vmem:[#allocation3 + $0x8] sm:$0xff]
    %v3609 = vld [vmem:[#allocation3 + $0x10] sm:$0xff]
    %v3610 = vld [vmem:[#allocation3 + $0x18] sm:$0xff]
    %3611 = vmatpush.msra.mxu0 %v3603
    %3612 = vmatpush.msra.mxu0 %v3599
    %3613 = vmatpush.msra.mxu0 %v3595
    %3614 = vmatpush.msra.mxu0 %v3591
    %3615 = vmatpush.msra.mxu0 %v3587
    %3616 = vmatpush.msra.mxu0 %v3583
    %3617 = vmatpush.msra.mxu0 %v3579
    %3618 = vmatpush.msra.mxu0 %v3575
    %3619 = vmatpush.msra.mxu0 %v3571
    %3620 = vmatpush.msra.mxu0 %v3567
    %3621 = vmatpush.msra.mxu0 %v3563
    %3622 = vmatpush.msra.mxu0 %v3559
    %3623 = vmatpush.msra.mxu0 %v3555
    %3624 = vmatpush.msra.mxu0 %v3551
    %3625 = vmatpush.msra.mxu0 %v3547
    %3626 = vmatpush.msra.mxu0 %v3543
    %3627 = vmatmul.f32.gmra.mxu0 0.0
    %v3628 = vpop.f32.mrf.mxu0
    %v3629 = vadd.f32 0.0, %v3628
    %3630 = vdwg.mxu0
    %3631 = vmatpush.msra.mxu0 %v3604
    %3632 = vmatpush.msra.mxu0 %v3600
    %3633 = vmatpush.msra.mxu0 %v3596
    %3634 = vmatpush.msra.mxu0 %v3592
    %3635 = vmatpush.msra.mxu0 %v3588
    %3636 = vmatpush.msra.mxu0 %v3584
    %3637 = vmatpush.msra.mxu0 %v3580
    %3638 = vmatpush.msra.mxu0 %v3576
    %3639 = vmatpush.msra.mxu0 %v3572
    %3640 = vmatpush.msra.mxu0 %v3568
    %3641 = vmatpush.msra.mxu0 %v3564
    %3642 = vmatpush.msra.mxu0 %v3560
    %3643 = vmatpush.msra.mxu0 %v3556
    %3644 = vmatpush.msra.mxu0 %v3552
    %3645 = vmatpush.msra.mxu0 %v3548
    %3646 = vmatpush.msra.mxu0 %v3544
    %3647 = vmatmul.f32.gmra.mxu0 0.0
    %v3648 = vpop.f32.mrf.mxu0
    %v3649 = vadd.f32 0.0, %v3648
    %3650 = vdwg.mxu0
    %3651 = vmatpush.msra.mxu0 %v3605
    %3652 = vmatpush.msra.mxu0 %v3601
    %3653 = vmatpush.msra.mxu0 %v3597
    %3654 = vmatpush.msra.mxu0 %v3593
    %3655 = vmatpush.msra.mxu0 %v3589
    %3656 = vmatpush.msra.mxu0 %v3585
    %3657 = vmatpush.msra.mxu0 %v3581
    %3658 = vmatpush.msra.mxu0 %v3577
    %3659 = vmatpush.msra.mxu0 %v3573
    %3660 = vmatpush.msra.mxu0 %v3569
    %3661 = vmatpush.msra.mxu0 %v3565
    %3662 = vmatpush.msra.mxu0 %v3561
    %3663 = vmatpush.msra.mxu0 %v3557
    %3664 = vmatpush.msra.mxu0 %v3553
    %3665 = vmatpush.msra.mxu0 %v3549
    %3666 = vmatpush.msra.mxu0 %v3545
    %3667 = vmatmul.f32.gmra.mxu0 0.0
    %v3668 = vpop.f32.mrf.mxu0
    %v3669 = vadd.f32 0.0, %v3668
    %3670 = vdwg.mxu0
    %3671 = vmatpush.msra.mxu0 %v3606
    %3672 = vmatpush.msra.mxu0 %v3602
    %3673 = vmatpush.msra.mxu0 %v3598
    %3674 = vmatpush.msra.mxu0 %v3594
    %3675 = vmatpush.msra.mxu0 %v3590
    %3676 = vmatpush.msra.mxu0 %v3586
    %3677 = vmatpush.msra.mxu0 %v3582
    %3678 = vmatpush.msra.mxu0 %v3578
    %3679 = vmatpush.msra.mxu0 %v3574
    %3680 = vmatpush.msra.mxu0 %v3570
    %3681 = vmatpush.msra.mxu0 %v3566
    %3682 = vmatpush.msra.mxu0 %v3562
    %3683 = vmatpush.msra.mxu0 %v3558
    %3684 = vmatpush.msra.mxu0 %v3554
    %3685 = vmatpush.msra.mxu0 %v3550
    %3686 = vmatpush.msra.mxu0 %v3546
    %3687 = vmatmul.f32.gmra.mxu0 0.0
    %v3688 = vpop.f32.mrf.mxu0
    %v3689 = vadd.f32 0.0, %v3688
    %3690 = vdwg.mxu0
    %v3691 = vadd.f32 %v3607, %v3629
    %v3692 = vadd.f32 %v3608, %v3649
    %v3693 = vadd.f32 %v3609, %v3669
    %v3694 = vadd.f32 %v3610, %v3689
    %v3695 = vxor.u32 %v3691, 2147483648
    %v3696 = vxor.u32 %v3692, 2147483648
    %v3697 = vxor.u32 %v3693, 2147483648
    %v3698 = vmul.f32 %v3695, 1.442695
    %v3699 = vpow.pop %v3698
    %v3700 = vmul.f32 %v3696, 1.442695
    %v3701 = vpow.pop %v3700
    %v3702 = vmul.f32 %v3697, 1.442695
    %v3703 = vpow.pop %v3702
    %v3704 = vadd.f32 %v3699, 1.0
    %v3705 = vadd.f32 %v3701, 1.0
    %v3706 = vadd.f32 %v3703, 1.0
    %v3707 = vrcp.pop %v3704
    %v3708 = vmul.f32 %v3704, %v3707
    %v3709 = vsub.f32 1.0, %v3708
    %v3710 = vmul.f32 %v3707, %v3709
    %v3711 = vadd.f32 %v3707, %v3710
    %vm3712 = vweird.f32 %v3704
    %vm3713 = vweird.f32 %v3707
    %vm3714 = vmor %vm3712, %vm3713
    %v3715 = vsel %vm3714, %v3707, %v3711
    %v3716 = vand.u32 2147483647, %v3704
    %vm3717 = vcmp.eq.f32.partialorder %v3716, 8.507059e+37
    %v3718 = vand.u32 %v3704, 2147483648
    %v3719 = vor.u32 1.1754944e-38, %v3718
    %v3720 = vsel %vm3717, %v3719, %v3715
    %v3721 = vmul.f32 1.0, %v3720
    %v3722 = vrcp.pop %v3705
    %v3723 = vmul.f32 %v3705, %v3722
    %v3724 = vsub.f32 1.0, %v3723
    %v3725 = vmul.f32 %v3722, %v3724
    %v3726 = vadd.f32 %v3722, %v3725
    %vm3727 = vweird.f32 %v3705
    %vm3728 = vweird.f32 %v3722
    %vm3729 = vmor %vm3727, %vm3728
    %v3730 = vsel %vm3729, %v3722, %v3726
    %v3731 = vand.u32 2147483647, %v3705
    %vm3732 = vcmp.eq.f32.partialorder %v3731, 8.507059e+37
    %v3733 = vand.u32 %v3705, 2147483648
    %v3734 = vor.u32 1.1754944e-38, %v3733
    %v3735 = vsel %vm3732, %v3734, %v3730
    %v3736 = vmul.f32 1.0, %v3735
    %v3737 = vrcp.pop %v3706
    %v3738 = vmul.f32 %v3706, %v3737
    %v3739 = vsub.f32 1.0, %v3738
    %v3740 = vmul.f32 %v3737, %v3739
    %v3741 = vadd.f32 %v3737, %v3740
    %vm3742 = vweird.f32 %v3706
    %vm3743 = vweird.f32 %v3737
    %vm3744 = vmor %vm3742, %vm3743
    %v3745 = vsel %vm3744, %v3737, %v3741
    %v3746 = vand.u32 2147483647, %v3706
    %vm3747 = vcmp.eq.f32.partialorder %v3746, 8.507059e+37
    %v3748 = vand.u32 %v3706, 2147483648
    %v3749 = vor.u32 1.1754944e-38, %v3748
    %v3750 = vsel %vm3747, %v3749, %v3745
    %v3751 = vmul.f32 1.0, %v3750
    %v3752 = vtanh.pop %v3694
    %v3753 = vmul.f32 %v3736, 0.0
    %v3754 = vmul.f32 %v3721, %v3752
    %v3755 = vadd.f32 %v3753, %v3754
    %v3756 = vtanh.pop %v3755
    %v3757 = vmul.f32 %v3751, %v3756
    %v3758 = vld [vmem:[%s629] sm:$0xff]
    %v3759 = vld [vmem:[%s629 + $0x8] sm:$0xff]
    %v3760 = vld [vmem:[%s629 + $0x10] sm:$0xff]
    %v3761 = vld [vmem:[%s629 + $0x18] sm:$0xff]
    %3762 = vmatpush.msra.mxu0 %v3603
    %3763 = vmatpush.msra.mxu0 %v3599
    %3764 = vmatpush.msra.mxu0 %v3595
    %3765 = vmatpush.msra.mxu0 %v3591
    %3766 = vmatpush.msra.mxu0 %v3587
    %3767 = vmatpush.msra.mxu0 %v3583
    %3768 = vmatpush.msra.mxu0 %v3579
    %3769 = vmatpush.msra.mxu0 %v3575
    %3770 = vmatpush.msra.mxu0 %v3571
    %3771 = vmatpush.msra.mxu0 %v3567
    %3772 = vmatpush.msra.mxu0 %v3563
    %3773 = vmatpush.msra.mxu0 %v3559
    %3774 = vmatpush.msra.mxu0 %v3555
    %3775 = vmatpush.msra.mxu0 %v3551
    %3776 = vmatpush.msra.mxu0 %v3547
    %3777 = vmatpush.msra.mxu0 %v3543
    %3778 = vmatmul.f32.gmra.mxu0 %v3757
    %v3779 = vpop.f32.mrf.mxu0
    %v3780 = vadd.f32 0.0, %v3779
    %3781 = vdwg.mxu0
    %3782 = vmatpush.msra.mxu0 %v3604
    %3783 = vmatpush.msra.mxu0 %v3600
    %3784 = vmatpush.msra.mxu0 %v3596
    %3785 = vmatpush.msra.mxu0 %v3592
    %3786 = vmatpush.msra.mxu0 %v3588
    %3787 = vmatpush.msra.mxu0 %v3584
    %3788 = vmatpush.msra.mxu0 %v3580
    %3789 = vmatpush.msra.mxu0 %v3576
    %3790 = vmatpush.msra.mxu0 %v3572
    %3791 = vmatpush.msra.mxu0 %v3568
    %3792 = vmatpush.msra.mxu0 %v3564
    %3793 = vmatpush.msra.mxu0 %v3560
    %3794 = vmatpush.msra.mxu0 %v3556
    %3795 = vmatpush.msra.mxu0 %v3552
    %3796 = vmatpush.msra.mxu0 %v3548
    %3797 = vmatpush.msra.mxu0 %v3544
    %3798 = vmatmul.f32.gmra.mxu0 %v3757
    %v3799 = vpop.f32.mrf.mxu0
    %v3800 = vadd.f32 0.0, %v3799
    %3801 = vdwg.mxu0
    %3802 = vmatpush.msra.mxu0 %v3605
    %3803 = vmatpush.msra.mxu0 %v3601
    %3804 = vmatpush.msra.mxu0 %v3597
    %3805 = vmatpush.msra.mxu0 %v3593
    %3806 = vmatpush.msra.mxu0 %v3589
    %3807 = vmatpush.msra.mxu0 %v3585
    %3808 = vmatpush.msra.mxu0 %v3581
    %3809 = vmatpush.msra.mxu0 %v3577
    %3810 = vmatpush.msra.mxu0 %v3573
    %3811 = vmatpush.msra.mxu0 %v3569
    %3812 = vmatpush.msra.mxu0 %v3565
    %3813 = vmatpush.msra.mxu0 %v3561
    %3814 = vmatpush.msra.mxu0 %v3557
    %3815 = vmatpush.msra.mxu0 %v3553
    %3816 = vmatpush.msra.mxu0 %v3549
    %3817 = vmatpush.msra.mxu0 %v3545
    %3818 = vmatmul.f32.gmra.mxu0 %v3757
    %v3819 = vpop.f32.mrf.mxu0
    %v3820 = vadd.f32 0.0, %v3819
    %3821 = vdwg.mxu0
    %3822 = vmatpush.msra.mxu0 %v3606
    %3823 = vmatpush.msra.mxu0 %v3602
    %3824 = vmatpush.msra.mxu0 %v3598
    %3825 = vmatpush.msra.mxu0 %v3594
    %3826 = vmatpush.msra.mxu0 %v3590
    %3827 = vmatpush.msra.mxu0 %v3586
    %3828 = vmatpush.msra.mxu0 %v3582
    %3829 = vmatpush.msra.mxu0 %v3578
    %3830 = vmatpush.msra.mxu0 %v3574
    %3831 = vmatpush.msra.mxu0 %v3570
    %3832 = vmatpush.msra.mxu0 %v3566
    %3833 = vmatpush.msra.mxu0 %v3562
    %3834 = vmatpush.msra.mxu0 %v3558
    %3835 = vmatpush.msra.mxu0 %v3554
    %3836 = vmatpush.msra.mxu0 %v3550
    %3837 = vmatpush.msra.mxu0 %v3546
    %3838 = vmatmul.f32.gmra.mxu0 %v3757
    %v3839 = vpop.f32.mrf.mxu0
    %v3840 = vadd.f32 0.0, %v3839
    %3841 = vdwg.mxu0
    %v3842 = vadd.f32 %v3758, %v3780
    %v3843 = vadd.f32 %v3759, %v3800
    %v3844 = vadd.f32 %v3760, %v3820
    %v3845 = vadd.f32 %v3761, %v3840
    %v3846 = vxor.u32 %v3842, 2147483648
    %v3847 = vxor.u32 %v3843, 2147483648
    %v3848 = vxor.u32 %v3844, 2147483648
    %v3849 = vmul.f32 %v3846, 1.442695
    %v3850 = vpow.pop %v3849
    %v3851 = vmul.f32 %v3847, 1.442695
    %v3852 = vpow.pop %v3851
    %v3853 = vmul.f32 %v3848, 1.442695
    %v3854 = vpow.pop %v3853
    %v3855 = vadd.f32 %v3850, 1.0
    %v3856 = vadd.f32 %v3852, 1.0
    %v3857 = vadd.f32 %v3854, 1.0
    %v3858 = vrcp.pop %v3855
    %v3859 = vmul.f32 %v3855, %v3858
    %v3860 = vsub.f32 1.0, %v3859
    %v3861 = vmul.f32 %v3858, %v3860
    %v3862 = vadd.f32 %v3858, %v3861
    %vm3863 = vweird.f32 %v3855
    %vm3864 = vweird.f32 %v3858
    %vm3865 = vmor %vm3863, %vm3864
    %v3866 = vsel %vm3865, %v3858, %v3862
    %v3867 = vand.u32 2147483647, %v3855
    %vm3868 = vcmp.eq.f32.partialorder %v3867, 8.507059e+37
    %v3869 = vand.u32 %v3855, 2147483648
    %v3870 = vor.u32 1.1754944e-38, %v3869
    %v3871 = vsel %vm3868, %v3870, %v3866
    %v3872 = vmul.f32 1.0, %v3871
    %v3873 = vrcp.pop %v3856
    %v3874 = vmul.f32 %v3856, %v3873
    %v3875 = vsub.f32 1.0, %v3874
    %v3876 = vmul.f32 %v3873, %v3875
    %v3877 = vadd.f32 %v3873, %v3876
    %vm3878 = vweird.f32 %v3856
    %vm3879 = vweird.f32 %v3873
    %vm3880 = vmor %vm3878, %vm3879
    %v3881 = vsel %vm3880, %v3873, %v3877
    %v3882 = vand.u32 2147483647, %v3856
    %vm3883 = vcmp.eq.f32.partialorder %v3882, 8.507059e+37
    %v3884 = vand.u32 %v3856, 2147483648
    %v3885 = vor.u32 1.1754944e-38, %v3884
    %v3886 = vsel %vm3883, %v3885, %v3881
    %v3887 = vmul.f32 1.0, %v3886
    %v3888 = vrcp.pop %v3857
    %v3889 = vmul.f32 %v3857, %v3888
    %v3890 = vsub.f32 1.0, %v3889
    %v3891 = vmul.f32 %v3888, %v3890
    %v3892 = vadd.f32 %v3888, %v3891
    %vm3893 = vweird.f32 %v3857
    %vm3894 = vweird.f32 %v3888
    %vm3895 = vmor %vm3893, %vm3894
    %v3896 = vsel %vm3895, %v3888, %v3892
    %v3897 = vand.u32 2147483647, %v3857
    %vm3898 = vcmp.eq.f32.partialorder %v3897, 8.507059e+37
    %v3899 = vand.u32 %v3857, 2147483648
    %v3900 = vor.u32 1.1754944e-38, %v3899
    %v3901 = vsel %vm3898, %v3900, %v3896
    %v3902 = vmul.f32 1.0, %v3901
    %v3903 = vtanh.pop %v3845
    %v3904 = vmul.f32 %v3887, %v3755
    %v3905 = vmul.f32 %v3872, %v3903
    %v3906 = vadd.f32 %v3904, %v3905
    %v3907 = vtanh.pop %v3906
    %v3908 = vmul.f32 %v3902, %v3907
    %v3909 = vld [vmem:[%s783] sm:$0xff]
    %v3910 = vld [vmem:[%s783 + $0x8] sm:$0xff]
    %v3911 = vld [vmem:[%s783 + $0x10] sm:$0xff]
    %v3912 = vld [vmem:[%s783 + $0x18] sm:$0xff]
    %3913 = vmatpush.msra.mxu0 %v3603
    %3914 = vmatpush.msra.mxu0 %v3599
    %3915 = vmatpush.msra.mxu0 %v3595
    %3916 = vmatpush.msra.mxu0 %v3591
    %3917 = vmatpush.msra.mxu0 %v3587
    %3918 = vmatpush.msra.mxu0 %v3583
    %3919 = vmatpush.msra.mxu0 %v3579
    %3920 = vmatpush.msra.mxu0 %v3575
    %3921 = vmatpush.msra.mxu0 %v3571
    %3922 = vmatpush.msra.mxu0 %v3567
    %3923 = vmatpush.msra.mxu0 %v3563
    %3924 = vmatpush.msra.mxu0 %v3559
    %3925 = vmatpush.msra.mxu0 %v3555
    %3926 = vmatpush.msra.mxu0 %v3551
    %3927 = vmatpush.msra.mxu0 %v3547
    %3928 = vmatpush.msra.mxu0 %v3543
    %3929 = vmatmul.f32.gmra.mxu0 %v3908
    %v3930 = vpop.f32.mrf.mxu0
    %v3931 = vadd.f32 0.0, %v3930
    %3932 = vdwg.mxu0
    %3933 = vmatpush.msra.mxu0 %v3604
    %3934 = vmatpush.msra.mxu0 %v3600
    %3935 = vmatpush.msra.mxu0 %v3596
    %3936 = vmatpush.msra.mxu0 %v3592
    %3937 = vmatpush.msra.mxu0 %v3588
    %3938 = vmatpush.msra.mxu0 %v3584
    %3939 = vmatpush.msra.mxu0 %v3580
    %3940 = vmatpush.msra.mxu0 %v3576
    %3941 = vmatpush.msra.mxu0 %v3572
    %3942 = vmatpush.msra.mxu0 %v3568
    %3943 = vmatpush.msra.mxu0 %v3564
    %3944 = vmatpush.msra.mxu0 %v3560
    %3945 = vmatpush.msra.mxu0 %v3556
    %3946 = vmatpush.msra.mxu0 %v3552
    %3947 = vmatpush.msra.mxu0 %v3548
    %3948 = vmatpush.msra.mxu0 %v3544
    %3949 = vmatmul.f32.gmra.mxu0 %v3908
    %v3950 = vpop.f32.mrf.mxu0
    %v3951 = vadd.f32 0.0, %v3950
    %3952 = vdwg.mxu0
    %3953 = vmatpush.msra.mxu0 %v3605
    %3954 = vmatpush.msra.mxu0 %v3601
    %3955 = vmatpush.msra.mxu0 %v3597
    %3956 = vmatpush.msra.mxu0 %v3593
    %3957 = vmatpush.msra.mxu0 %v3589
    %3958 = vmatpush.msra.mxu0 %v3585
    %3959 = vmatpush.msra.mxu0 %v3581
    %3960 = vmatpush.msra.mxu0 %v3577
    %3961 = vmatpush.msra.mxu0 %v3573
    %3962 = vmatpush.msra.mxu0 %v3569
    %3963 = vmatpush.msra.mxu0 %v3565
    %3964 = vmatpush.msra.mxu0 %v3561
    %3965 = vmatpush.msra.mxu0 %v3557
    %3966 = vmatpush.msra.mxu0 %v3553
    %3967 = vmatpush.msra.mxu0 %v3549
    %3968 = vmatpush.msra.mxu0 %v3545
    %3969 = vmatmul.f32.gmra.mxu0 %v3908
    %v3970 = vpop.f32.mrf.mxu0
    %v3971 = vadd.f32 0.0, %v3970
    %3972 = vdwg.mxu0
    %3973 = vmatpush.msra.mxu0 %v3606
    %3974 = vmatpush.msra.mxu0 %v3602
    %3975 = vmatpush.msra.mxu0 %v3598
    %3976 = vmatpush.msra.mxu0 %v3594
    %3977 = vmatpush.msra.mxu0 %v3590
    %3978 = vmatpush.msra.mxu0 %v3586
    %3979 = vmatpush.msra.mxu0 %v3582
    %3980 = vmatpush.msra.mxu0 %v3578
    %3981 = vmatpush.msra.mxu0 %v3574
    %3982 = vmatpush.msra.mxu0 %v3570
    %3983 = vmatpush.msra.mxu0 %v3566
    %3984 = vmatpush.msra.mxu0 %v3562
    %3985 = vmatpush.msra.mxu0 %v3558
    %3986 = vmatpush.msra.mxu0 %v3554
    %3987 = vmatpush.msra.mxu0 %v3550
    %3988 = vmatpush.msra.mxu0 %v3546
    %3989 = vmatmul.f32.gmra.mxu0 %v3908
    %v3990 = vpop.f32.mrf.mxu0
    %v3991 = vadd.f32 0.0, %v3990
    %3992 = vdwg.mxu0
    %v3993 = vadd.f32 %v3909, %v3931
    %v3994 = vadd.f32 %v3910, %v3951
    %v3995 = vadd.f32 %v3911, %v3971
    %v3996 = vadd.f32 %v3912, %v3991
    %v3997 = vxor.u32 %v3993, 2147483648
    %v3998 = vxor.u32 %v3994, 2147483648
    %v3999 = vxor.u32 %v3995, 2147483648
    %v4000 = vmul.f32 %v3997, 1.442695
    %v4001 = vpow.pop %v4000
    %v4002 = vmul.f32 %v3998, 1.442695
    %v4003 = vpow.pop %v4002
    %v4004 = vmul.f32 %v3999, 1.442695
    %v4005 = vpow.pop %v4004
    %v4006 = vadd.f32 %v4001, 1.0
    %v4007 = vadd.f32 %v4003, 1.0
    %v4008 = vadd.f32 %v4005, 1.0
    %v4009 = vrcp.pop %v4006
    %v4010 = vmul.f32 %v4006, %v4009
    %v4011 = vsub.f32 1.0, %v4010
    %v4012 = vmul.f32 %v4009, %v4011
    %v4013 = vadd.f32 %v4009, %v4012
    %vm4014 = vweird.f32 %v4006
    %vm4015 = vweird.f32 %v4009
    %vm4016 = vmor %vm4014, %vm4015
    %v4017 = vsel %vm4016, %v4009, %v4013
    %v4018 = vand.u32 2147483647, %v4006
    %vm4019 = vcmp.eq.f32.partialorder %v4018, 8.507059e+37
    %v4020 = vand.u32 %v4006, 2147483648
    %v4021 = vor.u32 1.1754944e-38, %v4020
    %v4022 = vsel %vm4019, %v4021, %v4017
    %v4023 = vmul.f32 1.0, %v4022
    %v4024 = vrcp.pop %v4007
    %v4025 = vmul.f32 %v4007, %v4024
    %v4026 = vsub.f32 1.0, %v4025
    %v4027 = vmul.f32 %v4024, %v4026
    %v4028 = vadd.f32 %v4024, %v4027
    %vm4029 = vweird.f32 %v4007
    %vm4030 = vweird.f32 %v4024
    %vm4031 = vmor %vm4029, %vm4030
    %v4032 = vsel %vm4031, %v4024, %v4028
    %v4033 = vand.u32 2147483647, %v4007
    %vm4034 = vcmp.eq.f32.partialorder %v4033, 8.507059e+37
    %v4035 = vand.u32 %v4007, 2147483648
    %v4036 = vor.u32 1.1754944e-38, %v4035
    %v4037 = vsel %vm4034, %v4036, %v4032
    %v4038 = vmul.f32 1.0, %v4037
    %v4039 = vrcp.pop %v4008
    %v4040 = vmul.f32 %v4008, %v4039
    %v4041 = vsub.f32 1.0, %v4040
    %v4042 = vmul.f32 %v4039, %v4041
    %v4043 = vadd.f32 %v4039, %v4042
    %vm4044 = vweird.f32 %v4008
    %vm4045 = vweird.f32 %v4039
    %vm4046 = vmor %vm4044, %vm4045
    %v4047 = vsel %vm4046, %v4039, %v4043
    %v4048 = vand.u32 2147483647, %v4008
    %vm4049 = vcmp.eq.f32.partialorder %v4048, 8.507059e+37
    %v4050 = vand.u32 %v4008, 2147483648
    %v4051 = vor.u32 1.1754944e-38, %v4050
    %v4052 = vsel %vm4049, %v4051, %v4047
    %v4053 = vmul.f32 1.0, %v4052
    %v4054 = vtanh.pop %v3996
    %v4055 = vmul.f32 %v4038, %v3906
    %v4056 = vmul.f32 %v4023, %v4054
    %v4057 = vadd.f32 %v4055, %v4056
    %v4058 = vtanh.pop %v4057
    %v4059 = vmul.f32 %v4053, %v4058
    %v4060 = vld [vmem:[%s937] sm:$0xff]
    %v4061 = vld [vmem:[%s937 + $0x8] sm:$0xff]
    %v4062 = vld [vmem:[%s937 + $0x10] sm:$0xff]
    %v4063 = vld [vmem:[%s937 + $0x18] sm:$0xff]
    %4064 = vmatpush.msra.mxu0 %v3603
    %4065 = vmatpush.msra.mxu0 %v3599
    %4066 = vmatpush.msra.mxu0 %v3595
    %4067 = vmatpush.msra.mxu0 %v3591
    %4068 = vmatpush.msra.mxu0 %v3587
    %4069 = vmatpush.msra.mxu0 %v3583
    %4070 = vmatpush.msra.mxu0 %v3579
    %4071 = vmatpush.msra.mxu0 %v3575
    %4072 = vmatpush.msra.mxu0 %v3571
    %4073 = vmatpush.msra.mxu0 %v3567
    %4074 = vmatpush.msra.mxu0 %v3563
    %4075 = vmatpush.msra.mxu0 %v3559
    %4076 = vmatpush.msra.mxu0 %v3555
    %4077 = vmatpush.msra.mxu0 %v3551
    %4078 = vmatpush.msra.mxu0 %v3547
    %4079 = vmatpush.msra.mxu0 %v3543
    %4080 = vmatmul.f32.gmra.mxu0 %v4059
    %v4081 = vpop.f32.mrf.mxu0
    %v4082 = vadd.f32 0.0, %v4081
    %4083 = vdwg.mxu0
    %4084 = vmatpush.msra.mxu0 %v3604
    %4085 = vmatpush.msra.mxu0 %v3600
    %4086 = vmatpush.msra.mxu0 %v3596
    %4087 = vmatpush.msra.mxu0 %v3592
    %4088 = vmatpush.msra.mxu0 %v3588
    %4089 = vmatpush.msra.mxu0 %v3584
    %4090 = vmatpush.msra.mxu0 %v3580
    %4091 = vmatpush.msra.mxu0 %v3576
    %4092 = vmatpush.msra.mxu0 %v3572
    %4093 = vmatpush.msra.mxu0 %v3568
    %4094 = vmatpush.msra.mxu0 %v3564
    %4095 = vmatpush.msra.mxu0 %v3560
    %4096 = vmatpush.msra.mxu0 %v3556
    %4097 = vmatpush.msra.mxu0 %v3552
    %4098 = vmatpush.msra.mxu0 %v3548
    %4099 = vmatpush.msra.mxu0 %v3544
    %4100 = vmatmul.f32.gmra.mxu0 %v4059
    %v4101 = vpop.f32.mrf.mxu0
    %v4102 = vadd.f32 0.0, %v4101
    %4103 = vdwg.mxu0
    %4104 = vmatpush.msra.mxu0 %v3605
    %4105 = vmatpush.msra.mxu0 %v3601
    %4106 = vmatpush.msra.mxu0 %v3597
    %4107 = vmatpush.msra.mxu0 %v3593
    %4108 = vmatpush.msra.mxu0 %v3589
    %4109 = vmatpush.msra.mxu0 %v3585
    %4110 = vmatpush.msra.mxu0 %v3581
    %4111 = vmatpush.msra.mxu0 %v3577
    %4112 = vmatpush.msra.mxu0 %v3573
    %4113 = vmatpush.msra.mxu0 %v3569
    %4114 = vmatpush.msra.mxu0 %v3565
    %4115 = vmatpush.msra.mxu0 %v3561
    %4116 = vmatpush.msra.mxu0 %v3557
    %4117 = vmatpush.msra.mxu0 %v3553
    %4118 = vmatpush.msra.mxu0 %v3549
    %4119 = vmatpush.msra.mxu0 %v3545
    %4120 = vmatmul.f32.gmra.mxu0 %v4059
    %v4121 = vpop.f32.mrf.mxu0
    %v4122 = vadd.f32 0.0, %v4121
    %4123 = vdwg.mxu0
    %4124 = vmatpush.msra.mxu0 %v3606
    %4125 = vmatpush.msra.mxu0 %v3602
    %4126 = vmatpush.msra.mxu0 %v3598
    %4127 = vmatpush.msra.mxu0 %v3594
    %4128 = vmatpush.msra.mxu0 %v3590
    %4129 = vmatpush.msra.mxu0 %v3586
    %4130 = vmatpush.msra.mxu0 %v3582
    %4131 = vmatpush.msra.mxu0 %v3578
    %4132 = vmatpush.msra.mxu0 %v3574
    %4133 = vmatpush.msra.mxu0 %v3570
    %4134 = vmatpush.msra.mxu0 %v3566
    %4135 = vmatpush.msra.mxu0 %v3562
    %4136 = vmatpush.msra.mxu0 %v3558
    %4137 = vmatpush.msra.mxu0 %v3554
    %4138 = vmatpush.msra.mxu0 %v3550
    %4139 = vmatpush.msra.mxu0 %v3546
    %4140 = vmatmul.f32.gmra.mxu0 %v4059
    %v4141 = vpop.f32.mrf.mxu0
    %v4142 = vadd.f32 0.0, %v4141
    %4143 = vdwg.mxu0
    %v4144 = vadd.f32 %v4060, %v4082
    %v4145 = vadd.f32 %v4061, %v4102
    %v4146 = vadd.f32 %v4062, %v4122
    %v4147 = vadd.f32 %v4063, %v4142
    %v4148 = vxor.u32 %v4144, 2147483648
    %v4149 = vxor.u32 %v4145, 2147483648
    %v4150 = vxor.u32 %v4146, 2147483648
    %v4151 = vmul.f32 %v4148, 1.442695
    %v4152 = vpow.pop %v4151
    %v4153 = vmul.f32 %v4149, 1.442695
    %v4154 = vpow.pop %v4153
    %v4155 = vmul.f32 %v4150, 1.442695
    %v4156 = vpow.pop %v4155
    %v4157 = vadd.f32 %v4152, 1.0
    %v4158 = vadd.f32 %v4154, 1.0
    %v4159 = vadd.f32 %v4156, 1.0
    %v4160 = vrcp.pop %v4157
    %v4161 = vmul.f32 %v4157, %v4160
    %v4162 = vsub.f32 1.0, %v4161
    %v4163 = vmul.f32 %v4160, %v4162
    %v4164 = vadd.f32 %v4160, %v4163
    %vm4165 = vweird.f32 %v4157
    %vm4166 = vweird.f32 %v4160
    %vm4167 = vmor %vm4165, %vm4166
    %v4168 = vsel %vm4167, %v4160, %v4164
    %v4169 = vand.u32 2147483647, %v4157
    %vm4170 = vcmp.eq.f32.partialorder %v4169, 8.507059e+37
    %v4171 = vand.u32 %v4157, 2147483648
    %v4172 = vor.u32 1.1754944e-38, %v4171
    %v4173 = vsel %vm4170, %v4172, %v4168
    %v4174 = vmul.f32 1.0, %v4173
    %v4175 = vrcp.pop %v4158
    %v4176 = vmul.f32 %v4158, %v4175
    %v4177 = vsub.f32 1.0, %v4176
    %v4178 = vmul.f32 %v4175, %v4177
    %v4179 = vadd.f32 %v4175, %v4178
    %vm4180 = vweird.f32 %v4158
    %vm4181 = vweird.f32 %v4175
    %vm4182 = vmor %vm4180, %vm4181
    %v4183 = vsel %vm4182, %v4175, %v4179
    %v4184 = vand.u32 2147483647, %v4158
    %vm4185 = vcmp.eq.f32.partialorder %v4184, 8.507059e+37
    %v4186 = vand.u32 %v4158, 2147483648
    %v4187 = vor.u32 1.1754944e-38, %v4186
    %v4188 = vsel %vm4185, %v4187, %v4183
    %v4189 = vmul.f32 1.0, %v4188
    %v4190 = vrcp.pop %v4159
    %v4191 = vmul.f32 %v4159, %v4190
    %v4192 = vsub.f32 1.0, %v4191
    %v4193 = vmul.f32 %v4190, %v4192
    %v4194 = vadd.f32 %v4190, %v4193
    %vm4195 = vweird.f32 %v4159
    %vm4196 = vweird.f32 %v4190
    %vm4197 = vmor %vm4195, %vm4196
    %v4198 = vsel %vm4197, %v4190, %v4194
    %v4199 = vand.u32 2147483647, %v4159
    %vm4200 = vcmp.eq.f32.partialorder %v4199, 8.507059e+37
    %v4201 = vand.u32 %v4159, 2147483648
    %v4202 = vor.u32 1.1754944e-38, %v4201
    %v4203 = vsel %vm4200, %v4202, %v4198
    %v4204 = vmul.f32 1.0, %v4203
    %v4205 = vtanh.pop %v4147
    %v4206 = vmul.f32 %v4189, %v4057
    %v4207 = vmul.f32 %v4174, %v4205
    %v4208 = vadd.f32 %v4206, %v4207
    %v4209 = vtanh.pop %v4208
    %v4210 = vmul.f32 %v4204, %v4209
    %v4211 = vld [vmem:[%s1091] sm:$0xff]
    %v4212 = vld [vmem:[%s1091 + $0x8] sm:$0xff]
    %v4213 = vld [vmem:[%s1091 + $0x10] sm:$0xff]
    %v4214 = vld [vmem:[%s1091 + $0x18] sm:$0xff]
    %4215 = vmatpush.msra.mxu0 %v3603
    %4216 = vmatpush.msra.mxu0 %v3599
    %4217 = vmatpush.msra.mxu0 %v3595
    %4218 = vmatpush.msra.mxu0 %v3591
    %4219 = vmatpush.msra.mxu0 %v3587
    %4220 = vmatpush.msra.mxu0 %v3583
    %4221 = vmatpush.msra.mxu0 %v3579
    %4222 = vmatpush.msra.mxu0 %v3575
    %4223 = vmatpush.msra.mxu0 %v3571
    %4224 = vmatpush.msra.mxu0 %v3567
    %4225 = vmatpush.msra.mxu0 %v3563
    %4226 = vmatpush.msra.mxu0 %v3559
    %4227 = vmatpush.msra.mxu0 %v3555
    %4228 = vmatpush.msra.mxu0 %v3551
    %4229 = vmatpush.msra.mxu0 %v3547
    %4230 = vmatpush.msra.mxu0 %v3543
    %4231 = vmatmul.f32.gmra.mxu0 %v4210
    %v4232 = vpop.f32.mrf.mxu0
    %v4233 = vadd.f32 0.0, %v4232
    %4234 = vdwg.mxu0
    %4235 = vmatpush.msra.mxu0 %v3604
    %4236 = vmatpush.msra.mxu0 %v3600
    %4237 = vmatpush.msra.mxu0 %v3596
    %4238 = vmatpush.msra.mxu0 %v3592
    %4239 = vmatpush.msra.mxu0 %v3588
    %4240 = vmatpush.msra.mxu0 %v3584
    %4241 = vmatpush.msra.mxu0 %v3580
    %4242 = vmatpush.msra.mxu0 %v3576
    %4243 = vmatpush.msra.mxu0 %v3572
    %4244 = vmatpush.msra.mxu0 %v3568
    %4245 = vmatpush.msra.mxu0 %v3564
    %4246 = vmatpush.msra.mxu0 %v3560
    %4247 = vmatpush.msra.mxu0 %v3556
    %4248 = vmatpush.msra.mxu0 %v3552
    %4249 = vmatpush.msra.mxu0 %v3548
    %4250 = vmatpush.msra.mxu0 %v3544
    %4251 = vmatmul.f32.gmra.mxu0 %v4210
    %v4252 = vpop.f32.mrf.mxu0
    %v4253 = vadd.f32 0.0, %v4252
    %4254 = vdwg.mxu0
    %4255 = vmatpush.msra.mxu0 %v3605
    %4256 = vmatpush.msra.mxu0 %v3601
    %4257 = vmatpush.msra.mxu0 %v3597
    %4258 = vmatpush.msra.mxu0 %v3593
    %4259 = vmatpush.msra.mxu0 %v3589
    %4260 = vmatpush.msra.mxu0 %v3585
    %4261 = vmatpush.msra.mxu0 %v3581
    %4262 = vmatpush.msra.mxu0 %v3577
    %4263 = vmatpush.msra.mxu0 %v3573
    %4264 = vmatpush.msra.mxu0 %v3569
    %4265 = vmatpush.msra.mxu0 %v3565
    %4266 = vmatpush.msra.mxu0 %v3561
    %4267 = vmatpush.msra.mxu0 %v3557
    %4268 = vmatpush.msra.mxu0 %v3553
    %4269 = vmatpush.msra.mxu0 %v3549
    %4270 = vmatpush.msra.mxu0 %v3545
    %4271 = vmatmul.f32.gmra.mxu0 %v4210
    %v4272 = vpop.f32.mrf.mxu0
    %v4273 = vadd.f32 0.0, %v4272
    %4274 = vdwg.mxu0
    %4275 = vmatpush.msra.mxu0 %v3606
    %4276 = vmatpush.msra.mxu0 %v3602
    %4277 = vmatpush.msra.mxu0 %v3598
    %4278 = vmatpush.msra.mxu0 %v3594
    %4279 = vmatpush.msra.mxu0 %v3590
    %4280 = vmatpush.msra.mxu0 %v3586
    %4281 = vmatpush.msra.mxu0 %v3582
    %4282 = vmatpush.msra.mxu0 %v3578
    %4283 = vmatpush.msra.mxu0 %v3574
    %4284 = vmatpush.msra.mxu0 %v3570
    %4285 = vmatpush.msra.mxu0 %v3566
    %4286 = vmatpush.msra.mxu0 %v3562
    %4287 = vmatpush.msra.mxu0 %v3558
    %4288 = vmatpush.msra.mxu0 %v3554
    %4289 = vmatpush.msra.mxu0 %v3550
    %4290 = vmatpush.msra.mxu0 %v3546
    %4291 = vmatmul.f32.gmra.mxu0 %v4210
    %v4292 = vpop.f32.mrf.mxu0
    %v4293 = vadd.f32 0.0, %v4292
    %4294 = vdwg.mxu0
    %v4295 = vadd.f32 %v4211, %v4233
    %v4296 = vadd.f32 %v4212, %v4253
    %v4297 = vadd.f32 %v4213, %v4273
    %v4298 = vadd.f32 %v4214, %v4293
    %v4299 = vxor.u32 %v4295, 2147483648
    %v4300 = vxor.u32 %v4296, 2147483648
    %v4301 = vxor.u32 %v4297, 2147483648
    %v4302 = vmul.f32 %v4299, 1.442695
    %v4303 = vpow.pop %v4302
    %v4304 = vmul.f32 %v4300, 1.442695
    %v4305 = vpow.pop %v4304
    %v4306 = vmul.f32 %v4301, 1.442695
    %v4307 = vpow.pop %v4306
    %v4308 = vadd.f32 %v4303, 1.0
    %v4309 = vadd.f32 %v4305, 1.0
    %v4310 = vadd.f32 %v4307, 1.0
    %v4311 = vrcp.pop %v4308
    %v4312 = vmul.f32 %v4308, %v4311
    %v4313 = vsub.f32 1.0, %v4312
    %v4314 = vmul.f32 %v4311, %v4313
    %v4315 = vadd.f32 %v4311, %v4314
    %vm4316 = vweird.f32 %v4308
    %vm4317 = vweird.f32 %v4311
    %vm4318 = vmor %vm4316, %vm4317
    %v4319 = vsel %vm4318, %v4311, %v4315
    %v4320 = vand.u32 2147483647, %v4308
    %vm4321 = vcmp.eq.f32.partialorder %v4320, 8.507059e+37
    %v4322 = vand.u32 %v4308, 2147483648
    %v4323 = vor.u32 1.1754944e-38, %v4322
    %v4324 = vsel %vm4321, %v4323, %v4319
    %v4325 = vmul.f32 1.0, %v4324
    %v4326 = vrcp.pop %v4309
    %v4327 = vmul.f32 %v4309, %v4326
    %v4328 = vsub.f32 1.0, %v4327
    %v4329 = vmul.f32 %v4326, %v4328
    %v4330 = vadd.f32 %v4326, %v4329
    %vm4331 = vweird.f32 %v4309
    %vm4332 = vweird.f32 %v4326
    %vm4333 = vmor %vm4331, %vm4332
    %v4334 = vsel %vm4333, %v4326, %v4330
    %v4335 = vand.u32 2147483647, %v4309
    %vm4336 = vcmp.eq.f32.partialorder %v4335, 8.507059e+37
    %v4337 = vand.u32 %v4309, 2147483648
    %v4338 = vor.u32 1.1754944e-38, %v4337
    %v4339 = vsel %vm4336, %v4338, %v4334
    %v4340 = vmul.f32 1.0, %v4339
    %v4341 = vrcp.pop %v4310
    %v4342 = vmul.f32 %v4310, %v4341
    %v4343 = vsub.f32 1.0, %v4342
    %v4344 = vmul.f32 %v4341, %v4343
    %v4345 = vadd.f32 %v4341, %v4344
    %vm4346 = vweird.f32 %v4310
    %vm4347 = vweird.f32 %v4341
    %vm4348 = vmor %vm4346, %vm4347
    %v4349 = vsel %vm4348, %v4341, %v4345
    %v4350 = vand.u32 2147483647, %v4310
    %vm4351 = vcmp.eq.f32.partialorder %v4350, 8.507059e+37
    %v4352 = vand.u32 %v4310, 2147483648
    %v4353 = vor.u32 1.1754944e-38, %v4352
    %v4354 = vsel %vm4351, %v4353, %v4349
    %v4355 = vmul.f32 1.0, %v4354
    %v4356 = vtanh.pop %v4298
    %v4357 = vmul.f32 %v4340, %v4208
    %v4358 = vmul.f32 %v4325, %v4356
    %v4359 = vadd.f32 %v4357, %v4358
    %v4360 = vtanh.pop %v4359
    %v4361 = vmul.f32 %v4355, %v4360
    %v4362 = vld [vmem:[%s1245] sm:$0xff]
    %v4363 = vld [vmem:[%s1245 + $0x8] sm:$0xff]
    %v4364 = vld [vmem:[%s1245 + $0x10] sm:$0xff]
    %v4365 = vld [vmem:[%s1245 + $0x18] sm:$0xff]
    %4366 = vmatpush.msra.mxu0 %v3603
    %4367 = vmatpush.msra.mxu0 %v3599
    %4368 = vmatpush.msra.mxu0 %v3595
    %4369 = vmatpush.msra.mxu0 %v3591
    %4370 = vmatpush.msra.mxu0 %v3587
    %4371 = vmatpush.msra.mxu0 %v3583
    %4372 = vmatpush.msra.mxu0 %v3579
    %4373 = vmatpush.msra.mxu0 %v3575
    %4374 = vmatpush.msra.mxu0 %v3571
    %4375 = vmatpush.msra.mxu0 %v3567
    %4376 = vmatpush.msra.mxu0 %v3563
    %4377 = vmatpush.msra.mxu0 %v3559
    %4378 = vmatpush.msra.mxu0 %v3555
    %4379 = vmatpush.msra.mxu0 %v3551
    %4380 = vmatpush.msra.mxu0 %v3547
    %4381 = vmatpush.msra.mxu0 %v3543
    %4382 = vmatmul.f32.gmra.mxu0 %v4361
    %v4383 = vpop.f32.mrf.mxu0
    %v4384 = vadd.f32 0.0, %v4383
    %4385 = vdwg.mxu0
    %4386 = vmatpush.msra.mxu0 %v3604
    %4387 = vmatpush.msra.mxu0 %v3600
    %4388 = vmatpush.msra.mxu0 %v3596
    %4389 = vmatpush.msra.mxu0 %v3592
    %4390 = vmatpush.msra.mxu0 %v3588
    %4391 = vmatpush.msra.mxu0 %v3584
    %4392 = vmatpush.msra.mxu0 %v3580
    %4393 = vmatpush.msra.mxu0 %v3576
    %4394 = vmatpush.msra.mxu0 %v3572
    %4395 = vmatpush.msra.mxu0 %v3568
    %4396 = vmatpush.msra.mxu0 %v3564
    %4397 = vmatpush.msra.mxu0 %v3560
    %4398 = vmatpush.msra.mxu0 %v3556
    %4399 = vmatpush.msra.mxu0 %v3552
    %4400 = vmatpush.msra.mxu0 %v3548
    %4401 = vmatpush.msra.mxu0 %v3544
    %4402 = vmatmul.f32.gmra.mxu0 %v4361
    %v4403 = vpop.f32.mrf.mxu0
    %v4404 = vadd.f32 0.0, %v4403
    %4405 = vdwg.mxu0
    %4406 = vmatpush.msra.mxu0 %v3605
    %4407 = vmatpush.msra.mxu0 %v3601
    %4408 = vmatpush.msra.mxu0 %v3597
    %4409 = vmatpush.msra.mxu0 %v3593
    %4410 = vmatpush.msra.mxu0 %v3589
    %4411 = vmatpush.msra.mxu0 %v3585
    %4412 = vmatpush.msra.mxu0 %v3581
    %4413 = vmatpush.msra.mxu0 %v3577
    %4414 = vmatpush.msra.mxu0 %v3573
    %4415 = vmatpush.msra.mxu0 %v3569
    %4416 = vmatpush.msra.mxu0 %v3565
    %4417 = vmatpush.msra.mxu0 %v3561
    %4418 = vmatpush.msra.mxu0 %v3557
    %4419 = vmatpush.msra.mxu0 %v3553
    %4420 = vmatpush.msra.mxu0 %v3549
    %4421 = vmatpush.msra.mxu0 %v3545
    %4422 = vmatmul.f32.gmra.mxu0 %v4361
    %v4423 = vpop.f32.mrf.mxu0
    %v4424 = vadd.f32 0.0, %v4423
    %4425 = vdwg.mxu0
    %4426 = vmatpush.msra.mxu0 %v3606
    %4427 = vmatpush.msra.mxu0 %v3602
    %4428 = vmatpush.msra.mxu0 %v3598
    %4429 = vmatpush.msra.mxu0 %v3594
    %4430 = vmatpush.msra.mxu0 %v3590
    %4431 = vmatpush.msra.mxu0 %v3586
    %4432 = vmatpush.msra.mxu0 %v3582
    %4433 = vmatpush.msra.mxu0 %v3578
    %4434 = vmatpush.msra.mxu0 %v3574
    %4435 = vmatpush.msra.mxu0 %v3570
    %4436 = vmatpush.msra.mxu0 %v3566
    %4437 = vmatpush.msra.mxu0 %v3562
    %4438 = vmatpush.msra.mxu0 %v3558
    %4439 = vmatpush.msra.mxu0 %v3554
    %4440 = vmatpush.msra.mxu0 %v3550
    %4441 = vmatpush.msra.mxu0 %v3546
    %4442 = vmatmul.f32.gmra.mxu0 %v4361
    %v4443 = vpop.f32.mrf.mxu0
    %v4444 = vadd.f32 0.0, %v4443
    %4445 = vdwg.mxu0
    %v4446 = vadd.f32 %v4362, %v4384
    %v4447 = vadd.f32 %v4363, %v4404
    %v4448 = vadd.f32 %v4364, %v4424
    %v4449 = vadd.f32 %v4365, %v4444
    %v4450 = vxor.u32 %v4446, 2147483648
    %v4451 = vxor.u32 %v4447, 2147483648
    %v4452 = vxor.u32 %v4448, 2147483648
    %v4453 = vmul.f32 %v4450, 1.442695
    %v4454 = vpow.pop %v4453
    %v4455 = vmul.f32 %v4451, 1.442695
    %v4456 = vpow.pop %v4455
    %v4457 = vmul.f32 %v4452, 1.442695
    %v4458 = vpow.pop %v4457
    %v4459 = vadd.f32 %v4454, 1.0
    %v4460 = vadd.f32 %v4456, 1.0
    %v4461 = vadd.f32 %v4458, 1.0
    %v4462 = vrcp.pop %v4459
    %v4463 = vmul.f32 %v4459, %v4462
    %v4464 = vsub.f32 1.0, %v4463
    %v4465 = vmul.f32 %v4462, %v4464
    %v4466 = vadd.f32 %v4462, %v4465
    %vm4467 = vweird.f32 %v4459
    %vm4468 = vweird.f32 %v4462
    %vm4469 = vmor %vm4467, %vm4468
    %v4470 = vsel %vm4469, %v4462, %v4466
    %v4471 = vand.u32 2147483647, %v4459
    %vm4472 = vcmp.eq.f32.partialorder %v4471, 8.507059e+37
    %v4473 = vand.u32 %v4459, 2147483648
    %v4474 = vor.u32 1.1754944e-38, %v4473
    %v4475 = vsel %vm4472, %v4474, %v4470
    %v4476 = vmul.f32 1.0, %v4475
    %v4477 = vrcp.pop %v4460
    %v4478 = vmul.f32 %v4460, %v4477
    %v4479 = vsub.f32 1.0, %v4478
    %v4480 = vmul.f32 %v4477, %v4479
    %v4481 = vadd.f32 %v4477, %v4480
    %vm4482 = vweird.f32 %v4460
    %vm4483 = vweird.f32 %v4477
    %vm4484 = vmor %vm4482, %vm4483
    %v4485 = vsel %vm4484, %v4477, %v4481
    %v4486 = vand.u32 2147483647, %v4460
    %vm4487 = vcmp.eq.f32.partialorder %v4486, 8.507059e+37
    %v4488 = vand.u32 %v4460, 2147483648
    %v4489 = vor.u32 1.1754944e-38, %v4488
    %v4490 = vsel %vm4487, %v4489, %v4485
    %v4491 = vmul.f32 1.0, %v4490
    %v4492 = vrcp.pop %v4461
    %v4493 = vmul.f32 %v4461, %v4492
    %v4494 = vsub.f32 1.0, %v4493
    %v4495 = vmul.f32 %v4492, %v4494
    %v4496 = vadd.f32 %v4492, %v4495
    %vm4497 = vweird.f32 %v4461
    %vm4498 = vweird.f32 %v4492
    %vm4499 = vmor %vm4497, %vm4498
    %v4500 = vsel %vm4499, %v4492, %v4496
    %v4501 = vand.u32 2147483647, %v4461
    %vm4502 = vcmp.eq.f32.partialorder %v4501, 8.507059e+37
    %v4503 = vand.u32 %v4461, 2147483648
    %v4504 = vor.u32 1.1754944e-38, %v4503
    %v4505 = vsel %vm4502, %v4504, %v4500
    %v4506 = vmul.f32 1.0, %v4505
    %v4507 = vtanh.pop %v4449
    %v4508 = vmul.f32 %v4491, %v4359
    %v4509 = vmul.f32 %v4476, %v4507
    %v4510 = vadd.f32 %v4508, %v4509
    %v4511 = vtanh.pop %v4510
    %v4512 = vmul.f32 %v4506, %v4511
    %v4513 = vld [vmem:[%s1399] sm:$0xff]
    %v4514 = vld [vmem:[%s1399 + $0x8] sm:$0xff]
    %v4515 = vld [vmem:[%s1399 + $0x10] sm:$0xff]
    %v4516 = vld [vmem:[%s1399 + $0x18] sm:$0xff]
    %4517 = vmatpush.msra.mxu0 %v3603
    %4518 = vmatpush.msra.mxu0 %v3599
    %4519 = vmatpush.msra.mxu0 %v3595
    %4520 = vmatpush.msra.mxu0 %v3591
    %4521 = vmatpush.msra.mxu0 %v3587
    %4522 = vmatpush.msra.mxu0 %v3583
    %4523 = vmatpush.msra.mxu0 %v3579
    %4524 = vmatpush.msra.mxu0 %v3575
    %4525 = vmatpush.msra.mxu0 %v3571
    %4526 = vmatpush.msra.mxu0 %v3567
    %4527 = vmatpush.msra.mxu0 %v3563
    %4528 = vmatpush.msra.mxu0 %v3559
    %4529 = vmatpush.msra.mxu0 %v3555
    %4530 = vmatpush.msra.mxu0 %v3551
    %4531 = vmatpush.msra.mxu0 %v3547
    %4532 = vmatpush.msra.mxu0 %v3543
    %4533 = vmatmul.f32.gmra.mxu0 %v4512
    %v4534 = vpop.f32.mrf.mxu0
    %v4535 = vadd.f32 0.0, %v4534
    %4536 = vdwg.mxu0
    %4537 = vmatpush.msra.mxu0 %v3604
    %4538 = vmatpush.msra.mxu0 %v3600
    %4539 = vmatpush.msra.mxu0 %v3596
    %4540 = vmatpush.msra.mxu0 %v3592
    %4541 = vmatpush.msra.mxu0 %v3588
    %4542 = vmatpush.msra.mxu0 %v3584
    %4543 = vmatpush.msra.mxu0 %v3580
    %4544 = vmatpush.msra.mxu0 %v3576
    %4545 = vmatpush.msra.mxu0 %v3572
    %4546 = vmatpush.msra.mxu0 %v3568
    %4547 = vmatpush.msra.mxu0 %v3564
    %4548 = vmatpush.msra.mxu0 %v3560
    %4549 = vmatpush.msra.mxu0 %v3556
    %4550 = vmatpush.msra.mxu0 %v3552
    %4551 = vmatpush.msra.mxu0 %v3548
    %4552 = vmatpush.msra.mxu0 %v3544
    %4553 = vmatmul.f32.gmra.mxu0 %v4512
    %v4554 = vpop.f32.mrf.mxu0
    %v4555 = vadd.f32 0.0, %v4554
    %4556 = vdwg.mxu0
    %4557 = vmatpush.msra.mxu0 %v3605
    %4558 = vmatpush.msra.mxu0 %v3601
    %4559 = vmatpush.msra.mxu0 %v3597
    %4560 = vmatpush.msra.mxu0 %v3593
    %4561 = vmatpush.msra.mxu0 %v3589
    %4562 = vmatpush.msra.mxu0 %v3585
    %4563 = vmatpush.msra.mxu0 %v3581
    %4564 = vmatpush.msra.mxu0 %v3577
    %4565 = vmatpush.msra.mxu0 %v3573
    %4566 = vmatpush.msra.mxu0 %v3569
    %4567 = vmatpush.msra.mxu0 %v3565
    %4568 = vmatpush.msra.mxu0 %v3561
    %4569 = vmatpush.msra.mxu0 %v3557
    %4570 = vmatpush.msra.mxu0 %v3553
    %4571 = vmatpush.msra.mxu0 %v3549
    %4572 = vmatpush.msra.mxu0 %v3545
    %4573 = vmatmul.f32.gmra.mxu0 %v4512
    %v4574 = vpop.f32.mrf.mxu0
    %v4575 = vadd.f32 0.0, %v4574
    %4576 = vdwg.mxu0
    %4577 = vmatpush.msra.mxu0 %v3606
    %4578 = vmatpush.msra.mxu0 %v3602
    %4579 = vmatpush.msra.mxu0 %v3598
    %4580 = vmatpush.msra.mxu0 %v3594
    %4581 = vmatpush.msra.mxu0 %v3590
    %4582 = vmatpush.msra.mxu0 %v3586
    %4583 = vmatpush.msra.mxu0 %v3582
    %4584 = vmatpush.msra.mxu0 %v3578
    %4585 = vmatpush.msra.mxu0 %v3574
    %4586 = vmatpush.msra.mxu0 %v3570
    %4587 = vmatpush.msra.mxu0 %v3566
    %4588 = vmatpush.msra.mxu0 %v3562
    %4589 = vmatpush.msra.mxu0 %v3558
    %4590 = vmatpush.msra.mxu0 %v3554
    %4591 = vmatpush.msra.mxu0 %v3550
    %4592 = vmatpush.msra.mxu0 %v3546
    %4593 = vmatmul.f32.gmra.mxu0 %v4512
    %v4594 = vpop.f32.mrf.mxu0
    %v4595 = vadd.f32 0.0, %v4594
    %4596 = vdwg.mxu0
    %v4597 = vadd.f32 %v4513, %v4535
    %v4598 = vadd.f32 %v4514, %v4555
    %v4599 = vadd.f32 %v4515, %v4575
    %v4600 = vadd.f32 %v4516, %v4595
    %v4601 = vxor.u32 %v4597, 2147483648
    %v4602 = vxor.u32 %v4598, 2147483648
    %v4603 = vxor.u32 %v4599, 2147483648
    %v4604 = vmul.f32 %v4601, 1.442695
    %v4605 = vpow.pop %v4604
    %v4606 = vmul.f32 %v4602, 1.442695
    %v4607 = vpow.pop %v4606
    %v4608 = vmul.f32 %v4603, 1.442695
    %v4609 = vpow.pop %v4608
    %v4610 = vadd.f32 %v4605, 1.0
    %v4611 = vadd.f32 %v4607, 1.0
    %v4612 = vadd.f32 %v4609, 1.0
    %v4613 = vrcp.pop %v4610
    %v4614 = vmul.f32 %v4610, %v4613
    %v4615 = vsub.f32 1.0, %v4614
    %v4616 = vmul.f32 %v4613, %v4615
    %v4617 = vadd.f32 %v4613, %v4616
    %vm4618 = vweird.f32 %v4610
    %vm4619 = vweird.f32 %v4613
    %vm4620 = vmor %vm4618, %vm4619
    %v4621 = vsel %vm4620, %v4613, %v4617
    %v4622 = vand.u32 2147483647, %v4610
    %vm4623 = vcmp.eq.f32.partialorder %v4622, 8.507059e+37
    %v4624 = vand.u32 %v4610, 2147483648
    %v4625 = vor.u32 1.1754944e-38, %v4624
    %v4626 = vsel %vm4623, %v4625, %v4621
    %v4627 = vmul.f32 1.0, %v4626
    %v4628 = vrcp.pop %v4611
    %v4629 = vmul.f32 %v4611, %v4628
    %v4630 = vsub.f32 1.0, %v4629
    %v4631 = vmul.f32 %v4628, %v4630
    %v4632 = vadd.f32 %v4628, %v4631
    %vm4633 = vweird.f32 %v4611
    %vm4634 = vweird.f32 %v4628
    %vm4635 = vmor %vm4633, %vm4634
    %v4636 = vsel %vm4635, %v4628, %v4632
    %v4637 = vand.u32 2147483647, %v4611
    %vm4638 = vcmp.eq.f32.partialorder %v4637, 8.507059e+37
    %v4639 = vand.u32 %v4611, 2147483648
    %v4640 = vor.u32 1.1754944e-38, %v4639
    %v4641 = vsel %vm4638, %v4640, %v4636
    %v4642 = vmul.f32 1.0, %v4641
    %v4643 = vrcp.pop %v4612
    %v4644 = vmul.f32 %v4612, %v4643
    %v4645 = vsub.f32 1.0, %v4644
    %v4646 = vmul.f32 %v4643, %v4645
    %v4647 = vadd.f32 %v4643, %v4646
    %vm4648 = vweird.f32 %v4612
    %vm4649 = vweird.f32 %v4643
    %vm4650 = vmor %vm4648, %vm4649
    %v4651 = vsel %vm4650, %v4643, %v4647
    %v4652 = vand.u32 2147483647, %v4612
    %vm4653 = vcmp.eq.f32.partialorder %v4652, 8.507059e+37
    %v4654 = vand.u32 %v4612, 2147483648
    %v4655 = vor.u32 1.1754944e-38, %v4654
    %v4656 = vsel %vm4653, %v4655, %v4651
    %v4657 = vmul.f32 1.0, %v4656
    %v4658 = vtanh.pop %v4600
    %v4659 = vmul.f32 %v4642, %v4510
    %v4660 = vmul.f32 %v4627, %v4658
    %v4661 = vadd.f32 %v4659, %v4660
    %v4662 = vtanh.pop %v4661
    %v4663 = vmul.f32 %v4657, %v4662
    %v4664 = vld [vmem:[%s1553] sm:$0xff]
    %v4665 = vld [vmem:[%s1553 + $0x8] sm:$0xff]
    %v4666 = vld [vmem:[%s1553 + $0x10] sm:$0xff]
    %v4667 = vld [vmem:[%s1553 + $0x18] sm:$0xff]
    %4668 = vmatpush.msra.mxu0 %v3603
    %4669 = vmatpush.msra.mxu0 %v3599
    %4670 = vmatpush.msra.mxu0 %v3595
    %4671 = vmatpush.msra.mxu0 %v3591
    %4672 = vmatpush.msra.mxu0 %v3587
    %4673 = vmatpush.msra.mxu0 %v3583
    %4674 = vmatpush.msra.mxu0 %v3579
    %4675 = vmatpush.msra.mxu0 %v3575
    %4676 = vmatpush.msra.mxu0 %v3571
    %4677 = vmatpush.msra.mxu0 %v3567
    %4678 = vmatpush.msra.mxu0 %v3563
    %4679 = vmatpush.msra.mxu0 %v3559
    %4680 = vmatpush.msra.mxu0 %v3555
    %4681 = vmatpush.msra.mxu0 %v3551
    %4682 = vmatpush.msra.mxu0 %v3547
    %4683 = vmatpush.msra.mxu0 %v3543
    %4684 = vmatmul.f32.gmra.mxu0 %v4663
    %v4685 = vpop.f32.mrf.mxu0
    %v4686 = vadd.f32 0.0, %v4685
    %4687 = vdwg.mxu0
    %4688 = vmatpush.msra.mxu0 %v3604
    %4689 = vmatpush.msra.mxu0 %v3600
    %4690 = vmatpush.msra.mxu0 %v3596
    %4691 = vmatpush.msra.mxu0 %v3592
    %4692 = vmatpush.msra.mxu0 %v3588
    %4693 = vmatpush.msra.mxu0 %v3584
    %4694 = vmatpush.msra.mxu0 %v3580
    %4695 = vmatpush.msra.mxu0 %v3576
    %4696 = vmatpush.msra.mxu0 %v3572
    %4697 = vmatpush.msra.mxu0 %v3568
    %4698 = vmatpush.msra.mxu0 %v3564
    %4699 = vmatpush.msra.mxu0 %v3560
    %4700 = vmatpush.msra.mxu0 %v3556
    %4701 = vmatpush.msra.mxu0 %v3552
    %4702 = vmatpush.msra.mxu0 %v3548
    %4703 = vmatpush.msra.mxu0 %v3544
    %4704 = vmatmul.f32.gmra.mxu0 %v4663
    %v4705 = vpop.f32.mrf.mxu0
    %v4706 = vadd.f32 0.0, %v4705
    %4707 = vdwg.mxu0
    %4708 = vmatpush.msra.mxu0 %v3605
    %4709 = vmatpush.msra.mxu0 %v3601
    %4710 = vmatpush.msra.mxu0 %v3597
    %4711 = vmatpush.msra.mxu0 %v3593
    %4712 = vmatpush.msra.mxu0 %v3589
    %4713 = vmatpush.msra.mxu0 %v3585
    %4714 = vmatpush.msra.mxu0 %v3581
    %4715 = vmatpush.msra.mxu0 %v3577
    %4716 = vmatpush.msra.mxu0 %v3573
    %4717 = vmatpush.msra.mxu0 %v3569
    %4718 = vmatpush.msra.mxu0 %v3565
    %4719 = vmatpush.msra.mxu0 %v3561
    %4720 = vmatpush.msra.mxu0 %v3557
    %4721 = vmatpush.msra.mxu0 %v3553
    %4722 = vmatpush.msra.mxu0 %v3549
    %4723 = vmatpush.msra.mxu0 %v3545
    %4724 = vmatmul.f32.gmra.mxu0 %v4663
    %v4725 = vpop.f32.mrf.mxu0
    %v4726 = vadd.f32 0.0, %v4725
    %4727 = vdwg.mxu0
    %4728 = vmatpush.msra.mxu0 %v3606
    %4729 = vmatpush.msra.mxu0 %v3602
    %4730 = vmatpush.msra.mxu0 %v3598
    %4731 = vmatpush.msra.mxu0 %v3594
    %4732 = vmatpush.msra.mxu0 %v3590
    %4733 = vmatpush.msra.mxu0 %v3586
    %4734 = vmatpush.msra.mxu0 %v3582
    %4735 = vmatpush.msra.mxu0 %v3578
    %4736 = vmatpush.msra.mxu0 %v3574
    %4737 = vmatpush.msra.mxu0 %v3570
    %4738 = vmatpush.msra.mxu0 %v3566
    %4739 = vmatpush.msra.mxu0 %v3562
    %4740 = vmatpush.msra.mxu0 %v3558
    %4741 = vmatpush.msra.mxu0 %v3554
    %4742 = vmatpush.msra.mxu0 %v3550
    %4743 = vmatpush.msra.mxu0 %v3546
    %4744 = vmatmul.f32.gmra.mxu0 %v4663
    %v4745 = vpop.f32.mrf.mxu0
    %v4746 = vadd.f32 0.0, %v4745
    %4747 = vdwg.mxu0
    %v4748 = vadd.f32 %v4664, %v4686
    %v4749 = vadd.f32 %v4665, %v4706
    %v4750 = vadd.f32 %v4666, %v4726
    %v4751 = vadd.f32 %v4667, %v4746
    %v4752 = vxor.u32 %v4748, 2147483648
    %v4753 = vxor.u32 %v4749, 2147483648
    %v4754 = vxor.u32 %v4750, 2147483648
    %v4755 = vmul.f32 %v4752, 1.442695
    %v4756 = vpow.pop %v4755
    %v4757 = vmul.f32 %v4753, 1.442695
    %v4758 = vpow.pop %v4757
    %v4759 = vmul.f32 %v4754, 1.442695
    %v4760 = vpow.pop %v4759
    %v4761 = vadd.f32 %v4756, 1.0
    %v4762 = vadd.f32 %v4758, 1.0
    %v4763 = vadd.f32 %v4760, 1.0
    %v4764 = vrcp.pop %v4761
    %v4765 = vmul.f32 %v4761, %v4764
    %v4766 = vsub.f32 1.0, %v4765
    %v4767 = vmul.f32 %v4764, %v4766
    %v4768 = vadd.f32 %v4764, %v4767
    %vm4769 = vweird.f32 %v4761
    %vm4770 = vweird.f32 %v4764
    %vm4771 = vmor %vm4769, %vm4770
    %v4772 = vsel %vm4771, %v4764, %v4768
    %v4773 = vand.u32 2147483647, %v4761
    %vm4774 = vcmp.eq.f32.partialorder %v4773, 8.507059e+37
    %v4775 = vand.u32 %v4761, 2147483648
    %v4776 = vor.u32 1.1754944e-38, %v4775
    %v4777 = vsel %vm4774, %v4776, %v4772
    %v4778 = vmul.f32 1.0, %v4777
    %v4779 = vrcp.pop %v4762
    %v4780 = vmul.f32 %v4762, %v4779
    %v4781 = vsub.f32 1.0, %v4780
    %v4782 = vmul.f32 %v4779, %v4781
    %v4783 = vadd.f32 %v4779, %v4782
    %vm4784 = vweird.f32 %v4762
    %vm4785 = vweird.f32 %v4779
    %vm4786 = vmor %vm4784, %vm4785
    %v4787 = vsel %vm4786, %v4779, %v4783
    %v4788 = vand.u32 2147483647, %v4762
    %vm4789 = vcmp.eq.f32.partialorder %v4788, 8.507059e+37
    %v4790 = vand.u32 %v4762, 2147483648
    %v4791 = vor.u32 1.1754944e-38, %v4790
    %v4792 = vsel %vm4789, %v4791, %v4787
    %v4793 = vmul.f32 1.0, %v4792
    %v4794 = vrcp.pop %v4763
    %v4795 = vmul.f32 %v4763, %v4794
    %v4796 = vsub.f32 1.0, %v4795
    %v4797 = vmul.f32 %v4794, %v4796
    %v4798 = vadd.f32 %v4794, %v4797
    %vm4799 = vweird.f32 %v4763
    %vm4800 = vweird.f32 %v4794
    %vm4801 = vmor %vm4799, %vm4800
    %v4802 = vsel %vm4801, %v4794, %v4798
    %v4803 = vand.u32 2147483647, %v4763
    %vm4804 = vcmp.eq.f32.partialorder %v4803, 8.507059e+37
    %v4805 = vand.u32 %v4763, 2147483648
    %v4806 = vor.u32 1.1754944e-38, %v4805
    %v4807 = vsel %vm4804, %v4806, %v4802
    %v4808 = vmul.f32 1.0, %v4807
    %v4809 = vtanh.pop %v4751
    %v4810 = vmul.f32 %v4793, %v4661
    %v4811 = vmul.f32 %v4778, %v4809
    %v4812 = vadd.f32 %v4810, %v4811
    %v4813 = vtanh.pop %v4812
    %v4814 = vmul.f32 %v4808, %v4813
    %v4815 = vld [vmem:[%s10] sm:$0xff]
    %v4816 = vld [vmem:[%s10 + $0x8] sm:$0xff]
    %v4817 = vld [vmem:[%s10 + $0x10] sm:$0xff]
    %v4818 = vld [vmem:[%s10 + $0x18] sm:$0xff]
    %v4819 = vld [vmem:[%s10 + $0x20] sm:$0xff]
    %v4820 = vld [vmem:[%s10 + $0x28] sm:$0xff]
    %v4821 = vld [vmem:[%s10 + $0x30] sm:$0xff]
    %v4822 = vld [vmem:[%s10 + $0x38] sm:$0xff]
    %v4823 = vld [vmem:[%s10 + $0x40] sm:$0xff]
    %v4824 = vld [vmem:[%s10 + $0x48] sm:$0xff]
    %v4825 = vld [vmem:[%s10 + $0x50] sm:$0xff]
    %v4826 = vld [vmem:[%s10 + $0x58] sm:$0xff]
    %v4827 = vld [vmem:[%s10 + $0x60] sm:$0xff]
    %v4828 = vld [vmem:[%s10 + $0x68] sm:$0xff]
    %v4829 = vld [vmem:[%s10 + $0x70] sm:$0xff]
    %v4830 = vld [vmem:[%s10 + $0x78] sm:$0xff]
    %v4831 = vld [vmem:[%s11] sm:$0x1]
    %v4833 = vperm.slane %v4831, 0
    %4835 = vmatpush.msra.mxu0 %v4830
    %4836 = vmatpush.msra.mxu0 %v4829
    %4837 = vmatpush.msra.mxu0 %v4828
    %4838 = vmatpush.msra.mxu0 %v4827
    %4839 = vmatpush.msra.mxu0 %v4826
    %4840 = vmatpush.msra.mxu0 %v4825
    %4841 = vmatpush.msra.mxu0 %v4824
    %4842 = vmatpush.msra.mxu0 %v4823
    %4843 = vmatpush.msra.mxu0 %v4822
    %4844 = vmatpush.msra.mxu0 %v4821
    %4845 = vmatpush.msra.mxu0 %v4820
    %4846 = vmatpush.msra.mxu0 %v4819
    %4847 = vmatpush.msra.mxu0 %v4818
    %4848 = vmatpush.msra.mxu0 %v4817
    %4849 = vmatpush.msra.mxu0 %v4816
    %4850 = vmatpush.msra.mxu0 %v4815
    %4851 = vmatmul.f32.gmra.mxu0 %v4814
    %v4852 = vpop.f32.mrf.mxu0
    %v4853 = vadd.f32 %v4833, %v4852
    %4854 = vdwg.mxu0
    %vm4855 = vcmask 15360
    %4856 = vst.msk [vmem:[%s12] sm:$0xff] %vm4855, %v4853
    // Predicated region
    $region74: #{tpu_custom_call.1} parent=1 // pred_check
      _
    $region75: #{tpu_custom_call.1} parent=1 // pred_check_branch
      %4858 = sbr.rel (0) target = $region77
    $region76: #{tpu_custom_call.1} parent=1 // pred_region
      _
    $region77: #{tpu_custom_call.1} parent=1 // pred_fallthru
      _
    // Predicated region
    $region78: #{tpu_custom_call.1} parent=1 // pred_check
      _
    $region79: #{tpu_custom_call.1} parent=1 // pred_check_branch
      %4860 = sbr.rel (0) target = $region81
    $region80: #{tpu_custom_call.1} parent=1 // pred_region
      _
    $region81: #{tpu_custom_call.1} parent=1 // pred_fallthru
      _
    %4861 = vsyncpa [#allocation5], 1
    %4862 = vsyncpa [#allocation7], 1
    %4863 = vsyncpa [#allocation10], 1
    %4864 = vsyncpa [#allocation13], 1

</llo_original>
